<compile_context>
chip_gen: v7x
topology: tpu7x:2x2x1
jax: 0.10.0
libtpu: 0.0.40
codegen_flags: <defaults>
</compile_context>

<pallas_src>
import math

import jax
import jax.numpy as jnp
from jax.experimental import pallas as pl
from jax.experimental.pallas import tpu as pltpu

EPS = 1e-10
LANE = 128                               # vreg lane width
VMEM_LIMIT_BYTES = 48 * 1024 * 1024      # < v7x's 64 MiB physical VMEM
VMEM_BUDGET_BYTES = 40 * 1024 * 1024     # what we budget our own buffers against
_MXU_PRECISION = jax.lax.Precision.HIGHEST


def _cdiv(a, b):
    return -(-a // b)


def _make_fused_nalu_kernel(num_layers):
    """Fused forward over all NALU layers for one (features, batch-tile) block."""

    def kernel(*refs):
        x_ref = refs[0]
        w_refs = refs[1:1 + 2 * num_layers]          # [W0, G0, W1, G1, ...]
        o_ref = refs[1 + 2 * num_layers]

        # Lane-dense layout: features on sublanes, batch on the 128-wide lanes.
        act = x_ref[...].astype(jnp.float32)          # (d_in, bt)
        for l in range(num_layers):                   # static unroll; act stays on-chip
            w = w_refs[2 * l][...]                    # (d_out, d_in)  NAC weight
            gw = w_refs[2 * l + 1][...]               # (d_out, d_in)  gate weight
            log_act = jnp.log(jnp.abs(act) + EPS)
            # Three skinny MXU dots: no activation concat, no discarded quadrant.
            a = jnp.dot(w, act, precision=_MXU_PRECISION,
                        preferred_element_type=jnp.float32)
            g = jax.nn.sigmoid(jnp.dot(gw, act, precision=_MXU_PRECISION,
                                       preferred_element_type=jnp.float32))
            m = jnp.exp(jnp.dot(w, log_act, precision=_MXU_PRECISION,
                                preferred_element_type=jnp.float32))
            act = m + g * (a - m)                     # == g*a + (1-g)*m
        o_ref[...] = act.astype(o_ref.dtype)

    return kernel


def prepare_nalu_weights(params):
    """Effective NAC weight W = tanh(W_hat)*sigmoid(M_hat), computed once in XLA.

    Returns the flat list [W0, G0, W1, G1, ...] fed to the kernel."""
    flat = []
    for layer in params:
        w = jnp.tanh(layer["w_hat"]) * jax.nn.sigmoid(layer["m_hat"])   # (out, in)
        flat.append(w)
        flat.append(layer["g"])
    return flat


def _choose_batch_tile(batch, layer_dims):
    """Pick a lane-multiple batch tile that fits the VMEM budget and (when the
    batch allows) yields >= 2 grid steps so both v7x TensorCores get work."""
    if batch <= LANE:
        return batch, batch                 # single full-extent tile (valid block)
    in_dim, out_dim, max_dim = layer_dims[0], layer_dims[-1], max(layer_dims)
    # W + G per layer, double-buffered by the input pipeline.
    weight_bytes = 2 * sum(2 * layer_dims[i] * layer_dims[i + 1] * 4
                           for i in range(len(layer_dims) - 1))
    # Per batch column: double-buffered x/out tiles + live f32 intermediates
    # (act, log_act, a, g, m) with slack for Mosaic scratch.
    bytes_per_col = 4 * (2 * in_dim + 2 * out_dim + 8 * max_dim)
    bt_max = max(LANE, (VMEM_BUDGET_BYTES - weight_bytes) // bytes_per_col)
    bt = max(LANE, min(1024, (bt_max // LANE) * LANE))
    while bt > LANE and _cdiv(batch, bt) < 2:         # keep both v7x TCs busy
        bt = max(LANE, ((bt // 2) // LANE) * LANE)
    return bt, _cdiv(batch, bt) * bt


def nalu_forward_prepared(x, flat_weights, layer_dims):
    batch, in_dim = x.shape
    assert in_dim == layer_dims[0]
    num_layers = len(flat_weights) // 2
    out_dim = layer_dims[-1]
    bt, padded_batch = _choose_batch_tile(batch, layer_dims)

    # Transpose (and pad) in the XLA wrapper so the kernel sees batch on lanes.
    x_t = x.T.astype(jnp.float32)                                 # (in_dim, batch)
    if padded_batch != batch:
        # Pad with ones: log(|1| + eps) ~ 0 keeps the dead columns finite.
        x_t = jnp.pad(x_t, ((0, 0), (0, padded_batch - batch)), constant_values=1.0)

    in_specs = [pl.BlockSpec((in_dim, bt), lambda i: (0, i))]
    for w in flat_weights:
        # Constant index map -> weights stay VMEM-resident across batch tiles.
        in_specs.append(pl.BlockSpec(w.shape, lambda i: (0, 0)))
    out_specs = pl.BlockSpec((out_dim, bt), lambda i: (0, i))

    out_t = pl.pallas_call(
        _make_fused_nalu_kernel(num_layers),
        out_shape=jax.ShapeDtypeStruct((out_dim, padded_batch), jnp.float32),
        grid=(padded_batch // bt,),
        in_specs=in_specs,
        out_specs=out_specs,
        compiler_params=pltpu.CompilerParams(
            dimension_semantics=("parallel",),        # shard batch tiles across TCs
            vmem_limit_bytes=VMEM_LIMIT_BYTES,
        ),
    )(x_t, *flat_weights)

    return out_t[:, :batch].T.astype(x.dtype)                    # (batch, out_dim)


def nalu_forward(x, params):
    layer_dims = [params[0]["w_hat"].shape[1]] + [p["w_hat"].shape[0] for p in params]
    return nalu_forward_prepared(x, prepare_nalu_weights(params), layer_dims)


def kaiming_uniform(key, shape, a=math.sqrt(5.0)):
    # torch.nn.init.kaiming_uniform_(mode='fan_in', nonlinearity='leaky_relu')
    fan_in = shape[1]
    gain = math.sqrt(2.0 / (1.0 + a * a))
    bound = gain * math.sqrt(3.0 / fan_in)
    return jax.random.uniform(key, shape, jnp.float32, minval=-bound, maxval=bound)


def init_nalu_params(key, num_layers, in_dim, hidden_dim, out_dim):
    params = []
    for i in range(num_layers):
        d_in = hidden_dim if i > 0 else in_dim
        d_out = hidden_dim if i < num_layers - 1 else out_dim
        key, k_w, k_m, k_g = jax.random.split(key, 4)
        params.append(dict(
            w_hat=kaiming_uniform(k_w, (d_out, d_in)),
            m_hat=kaiming_uniform(k_m, (d_out, d_in)),
            g=kaiming_uniform(k_g, (d_out, d_in)),
        ))
    return params


def nalu_reference(x, params):
    # Pure-JAX forward matching the PyTorch NALU module.
    out = x
    for layer in params:
        w = jnp.tanh(layer["w_hat"]) * jax.nn.sigmoid(layer["m_hat"])
        a = jnp.dot(out, w.T, precision=_MXU_PRECISION)
        g = jax.nn.sigmoid(jnp.dot(out, layer["g"].T, precision=_MXU_PRECISION))
        m = jnp.exp(jnp.dot(jnp.log(jnp.abs(out) + EPS), w.T, precision=_MXU_PRECISION))
        out = g * a + (1.0 - g) * m
    return out


if __name__ == "__main__":
    num_layers, in_dim, hidden_dim, out_dim = 2, 16, 32, 8

    key = jax.random.PRNGKey(0)
    key, kx, kx2 = jax.random.split(key, 3)
    params = init_nalu_params(key, num_layers, in_dim, hidden_dim, out_dim)

    # Small batch: single full-extent tile.
    x = jax.random.normal(kx, (4, in_dim), jnp.float32)
    y = jax.block_until_ready(nalu_forward(x, params))
    y_ref = nalu_reference(x, params)
    assert y.shape == (4, out_dim)
    assert jnp.allclose(y, y_ref, atol=2e-3, rtol=2e-3)

    # Non-lane-multiple batch: exercises padding + the 2-step parallel grid.
    x2 = jax.random.uniform(kx2, (300, in_dim), jnp.float32, minval=0.5, maxval=1.5)
    y2 = jax.block_until_ready(nalu_forward(x2, params))
    y2_ref = nalu_reference(x2, params)
    assert y2.shape == (300, out_dim)
    assert jnp.allclose(y2, y2_ref, atol=2e-3, rtol=2e-3)

    print("KERNEL_OK")
</pallas_src>

<mosaic_0001>
module attributes {stable_mosaic.version = 11 : i64} {
  func.func @kernel(%arg0: i32, %arg1: memref<16x4xf32, #tpu.memory_space<vmem>>, %arg2: memref<32x16xf32, #tpu.memory_space<vmem>>, %arg3: memref<32x16xf32, #tpu.memory_space<vmem>>, %arg4: memref<8x32xf32, #tpu.memory_space<vmem>>, %arg5: memref<8x32xf32, #tpu.memory_space<vmem>>, %arg6: memref<8x4xf32, #tpu.memory_space<vmem>>) attributes {dimension_semantics = [#tpu.dimension_semantics<parallel>], iteration_bounds = array<i64: 1>, scalar_prefetch = 0 : i64, scratch_operands = 0 : i64, tpu.core_type = #tpu.core_type<tc>, window_params = [{transform_indices = @transform_0, window_bounds = array<i64: 16, 4>}, {pipeline_mode = #tpu.pipeline_mode<synchronous>, transform_indices = @transform_1, window_bounds = array<i64: 32, 16>}, {pipeline_mode = #tpu.pipeline_mode<synchronous>, transform_indices = @transform_2, window_bounds = array<i64: 32, 16>}, {pipeline_mode = #tpu.pipeline_mode<synchronous>, transform_indices = @transform_3, window_bounds = array<i64: 8, 32>}, {pipeline_mode = #tpu.pipeline_mode<synchronous>, transform_indices = @transform_4, window_bounds = array<i64: 8, 32>}, {transform_indices = @transform_5, window_bounds = array<i64: 8, 4>}]} {
    %c0 = arith.constant 0 : index
    %c0_0 = arith.constant 0 : index
    %0 = vector.load %arg1[%c0, %c0_0] : memref<16x4xf32, #tpu.memory_space<vmem>>, vector<16x4xf32>
    %c0_1 = arith.constant 0 : index
    %c0_2 = arith.constant 0 : index
    %1 = vector.load %arg2[%c0_1, %c0_2] : memref<32x16xf32, #tpu.memory_space<vmem>>, vector<32x16xf32>
    %c0_3 = arith.constant 0 : index
    %c0_4 = arith.constant 0 : index
    %2 = vector.load %arg3[%c0_3, %c0_4] : memref<32x16xf32, #tpu.memory_space<vmem>>, vector<32x16xf32>
    %3 = math.absf %0 : vector<16x4xf32>
    %cst = arith.constant 1.000000e-10 : f32
    %4 = vector.broadcast %cst : f32 to vector<16x4xf32>
    %5 = arith.addf %3, %4 : vector<16x4xf32>
    %6 = math.log %5 : vector<16x4xf32>
    %cst_5 = arith.constant dense<0.000000e+00> : vector<32x4xf32>
    %7 = tpu.matmul %1, %0, %cst_5 {dimension_numbers = #tpu.dot_dimension_numbers<[1], [0], [0], [1], [0, 0, 1, 1], [], []>, precision = #tpu.contract_precision<fp32>} : vector<32x16xf32>, vector<16x4xf32>, vector<32x4xf32> -> vector<32x4xf32>
    %cst_6 = arith.constant dense<0.000000e+00> : vector<32x4xf32>
    %8 = tpu.matmul %2, %0, %cst_6 {dimension_numbers = #tpu.dot_dimension_numbers<[1], [0], [0], [1], [0, 0, 1, 1], [], []>, precision = #tpu.contract_precision<fp32>} : vector<32x16xf32>, vector<16x4xf32>, vector<32x4xf32> -> vector<32x4xf32>
    %9 = arith.negf %8 : vector<32x4xf32>
    %10 = math.exp %9 : vector<32x4xf32>
    %cst_7 = arith.constant 1.000000e+00 : f32
    %11 = vector.broadcast %cst_7 : f32 to vector<32x4xf32>
    %12 = arith.addf %11, %10 : vector<32x4xf32>
    %13 = arith.divf %11, %12 : vector<32x4xf32>
    %cst_8 = arith.constant dense<0.000000e+00> : vector<32x4xf32>
    %14 = tpu.matmul %1, %6, %cst_8 {dimension_numbers = #tpu.dot_dimension_numbers<[1], [0], [0], [1], [0, 0, 1, 1], [], []>, precision = #tpu.contract_precision<fp32>} : vector<32x16xf32>, vector<16x4xf32>, vector<32x4xf32> -> vector<32x4xf32>
    %15 = math.exp %14 : vector<32x4xf32>
    %16 = arith.subf %7, %15 : vector<32x4xf32>
    %17 = arith.mulf %13, %16 : vector<32x4xf32>
    %18 = arith.addf %15, %17 : vector<32x4xf32>
    %c0_9 = arith.constant 0 : index
    %c0_10 = arith.constant 0 : index
    %19 = vector.load %arg4[%c0_9, %c0_10] : memref<8x32xf32, #tpu.memory_space<vmem>>, vector<8x32xf32>
    %c0_11 = arith.constant 0 : index
    %c0_12 = arith.constant 0 : index
    %20 = vector.load %arg5[%c0_11, %c0_12] : memref<8x32xf32, #tpu.memory_space<vmem>>, vector<8x32xf32>
    %21 = math.absf %18 : vector<32x4xf32>
    %cst_13 = arith.constant 1.000000e-10 : f32
    %22 = vector.broadcast %cst_13 : f32 to vector<32x4xf32>
    %23 = arith.addf %21, %22 : vector<32x4xf32>
    %24 = math.log %23 : vector<32x4xf32>
    %cst_14 = arith.constant dense<0.000000e+00> : vector<8x4xf32>
    %25 = tpu.matmul %19, %18, %cst_14 {dimension_numbers = #tpu.dot_dimension_numbers<[1], [0], [0], [1], [0, 0, 1, 1], [], []>, precision = #tpu.contract_precision<fp32>} : vector<8x32xf32>, vector<32x4xf32>, vector<8x4xf32> -> vector<8x4xf32>
    %cst_15 = arith.constant dense<0.000000e+00> : vector<8x4xf32>
    %26 = tpu.matmul %20, %18, %cst_15 {dimension_numbers = #tpu.dot_dimension_numbers<[1], [0], [0], [1], [0, 0, 1, 1], [], []>, precision = #tpu.contract_precision<fp32>} : vector<8x32xf32>, vector<32x4xf32>, vector<8x4xf32> -> vector<8x4xf32>
    %27 = arith.negf %26 : vector<8x4xf32>
    %28 = math.exp %27 : vector<8x4xf32>
    %cst_16 = arith.constant 1.000000e+00 : f32
    %29 = vector.broadcast %cst_16 : f32 to vector<8x4xf32>
    %30 = arith.addf %29, %28 : vector<8x4xf32>
    %31 = arith.divf %29, %30 : vector<8x4xf32>
    %cst_17 = arith.constant dense<0.000000e+00> : vector<8x4xf32>
    %32 = tpu.matmul %19, %24, %cst_17 {dimension_numbers = #tpu.dot_dimension_numbers<[1], [0], [0], [1], [0, 0, 1, 1], [], []>, precision = #tpu.contract_precision<fp32>} : vector<8x32xf32>, vector<32x4xf32>, vector<8x4xf32> -> vector<8x4xf32>
    %33 = math.exp %32 : vector<8x4xf32>
    %34 = arith.subf %25, %33 : vector<8x4xf32>
    %35 = arith.mulf %31, %34 : vector<8x4xf32>
    %36 = arith.addf %33, %35 : vector<8x4xf32>
    %c0_18 = arith.constant 0 : index
    %c0_19 = arith.constant 0 : index
    %37 = vector.load %arg6[%c0_18, %c0_19] : memref<8x4xf32, #tpu.memory_space<vmem>>, vector<8x4xf32>
    tpu.vector_store %arg6[%c0_18, %c0_19], %36 {strides = array<i32>} : memref<8x4xf32, #tpu.memory_space<vmem>>, vector<8x4xf32>,
    return
  }
  func.func @transform_0(%arg0: i32) -> (i32, i32) {
    %c0_i32 = arith.constant 0 : i32
    %c0_i32_0 = arith.constant 0 : i32
    return %c0_i32, %arg0 : i32, i32
  }
  func.func @transform_1(%arg0: i32) -> (i32, i32) {
    %c0_i32 = arith.constant 0 : i32
    %c0_i32_0 = arith.constant 0 : i32
    %c0_i32_1 = arith.constant 0 : i32
    return %c0_i32, %c0_i32_0 : i32, i32
  }
  func.func @transform_2(%arg0: i32) -> (i32, i32) {
    %c0_i32 = arith.constant 0 : i32
    %c0_i32_0 = arith.constant 0 : i32
    %c0_i32_1 = arith.constant 0 : i32
    return %c0_i32, %c0_i32_0 : i32, i32
  }
  func.func @transform_3(%arg0: i32) -> (i32, i32) {
    %c0_i32 = arith.constant 0 : i32
    %c0_i32_0 = arith.constant 0 : i32
    %c0_i32_1 = arith.constant 0 : i32
    return %c0_i32, %c0_i32_0 : i32, i32
  }
  func.func @transform_4(%arg0: i32) -> (i32, i32) {
    %c0_i32 = arith.constant 0 : i32
    %c0_i32_0 = arith.constant 0 : i32
    %c0_i32_1 = arith.constant 0 : i32
    return %c0_i32, %c0_i32_0 : i32, i32
  }
  func.func @transform_5(%arg0: i32) -> (i32, i32) {
    %c0_i32 = arith.constant 0 : i32
    %c0_i32_0 = arith.constant 0 : i32
    return %c0_i32, %arg0 : i32, i32
  }
}

</mosaic_0001>

<llo_original>
// kernel: tpu_custom_call.1
$region0: #{tpu_custom_call.1}
  #allocation0 [shape = 'u32[]', space=smem, size = 0x4, offset = 0x4, fixed_abs, tag = 'smem constant byte address 0x4 - core index']
  #allocation1 [shape = 'u32[144,128]{1,0:T(1,128)}', space=vmem, size = 0x12000, scoped, tag = 'internal scratch']
  %s0 = inlined_call_operand.vmem [shape: f32[16,4], index: 0, kind: input, shape index: {}]
  %s1 = inlined_call_operand.vmem [shape: f32[32,16], index: 1, kind: input, shape index: {}]
  %s2 = inlined_call_operand.vmem [shape: f32[32,16], index: 2, kind: input, shape index: {}]
  %s3 = inlined_call_operand.vmem [shape: f32[8,32], index: 3, kind: input, shape index: {}]
  %s4 = inlined_call_operand.vmem [shape: f32[8,32], index: 4, kind: input, shape index: {}]
  %s5 = inlined_call_operand.vmem [shape: f32[8,4], index: 5, kind: output, shape index: {}]
  %s6 = sld [smem:[#allocation0]]
  $region30: #{tpu_custom_call.1} parent=0
    _
  %s8 = ssub.s32 1, %s6
  %s9 = scalar_select 0, %s8, %s6
  // Predicated region
  $region2: #{tpu_custom_call.1} parent=0 // pred_check
    _
  $region3: #{tpu_custom_call.1} parent=0 // pred_check_branch
    %11 = sbr.rel (0) target = $region5
  $region4: #{tpu_custom_call.1} parent=0 // pred_region
    _
  $region5: #{tpu_custom_call.1} parent=0 // pred_fallthru
    _
  // Predicated region
  $region6: #{tpu_custom_call.1} parent=0 // pred_check
    _
  $region7: #{tpu_custom_call.1} parent=0 // pred_check_branch
    %13 = sbr.rel (0) target = $region9
  $region8: #{tpu_custom_call.1} parent=0 // pred_region
    _
  $region9: #{tpu_custom_call.1} parent=0 // pred_fallthru
    _
  // Predicated region
  $region10: #{tpu_custom_call.1} parent=0 // pred_check
    _
  $region11: #{tpu_custom_call.1} parent=0 // pred_check_branch
    %15 = sbr.rel (0) target = $region13
  $region12: #{tpu_custom_call.1} parent=0 // pred_region
    _
  $region13: #{tpu_custom_call.1} parent=0 // pred_fallthru
    _
  // Predicated region
  $region14: #{tpu_custom_call.1} parent=0 // pred_check
    _
  $region15: #{tpu_custom_call.1} parent=0 // pred_check_branch
    %17 = sbr.rel (0) target = $region17
  $region16: #{tpu_custom_call.1} parent=0 // pred_region
    _
  $region17: #{tpu_custom_call.1} parent=0 // pred_fallthru
    _
  // Predicated region
  $region18: #{tpu_custom_call.1} parent=0 // pred_check
    _
  $region19: #{tpu_custom_call.1} parent=0 // pred_check_branch
    %19 = sbr.rel (0) target = $region21
  $region20: #{tpu_custom_call.1} parent=0 // pred_region
    _
  $region21: #{tpu_custom_call.1} parent=0 // pred_fallthru
    _
  %v20 = vld [vmem:[%s0] sm:$0xff]
  %v21 = vld [vmem:[%s0 + $0x8] sm:$0xff]
  %v22 = vld [vmem:[%s1] sm:$0xff]
  %v23 = vld [vmem:[%s1 + $0x8] sm:$0xff]
  %v24 = vld [vmem:[%s1 + $0x10] sm:$0xff]
  %v25 = vld [vmem:[%s1 + $0x18] sm:$0xff]
  %v26 = vld [vmem:[%s2] sm:$0xff]
  %v27 = vld [vmem:[%s2 + $0x8] sm:$0xff]
  %v28 = vld [vmem:[%s2 + $0x10] sm:$0xff]
  %v29 = vld [vmem:[%s2 + $0x18] sm:$0xff]
  %v30 = vand.u32 2147483647, %v20
  %v31 = vand.u32 2147483647, %v21
  %v32 = vadd.f32 %v30, 1e-10
  %v33 = vadd.f32 %v31, 1e-10
  %v34 = vlog2.pop %v32
  %v35 = vmul.f32 %v34, 0.6931472
  %v36 = vlog2.pop %v33
  %v37 = vmul.f32 %v36, 0.6931472
  %vm38 = vcmask 130048
  %v40 = vsel %vm38, %v22, 0
  %v43 = vsel %vm38, %v23, 0
  %v46 = vsel %vm38, %v24, 0
  %v49 = vsel %vm38, %v25, 0
  %51 = vmatprep.subr.mxu0 0.0
  %v52 = vand.u32 %v20, 4294901760
  %53 = vmatpush1.msra.mxu0 %v52
  %54 = vmatprep.subr.mxu0 0.0
  %v55 = vand.u32 %v21, 4294901760
  %56 = vmatpush1.msra.mxu0 %v55
  %57 = vmatprep.subr.mxu0 0.0
  %58 = vmatpush1.msra.mxu0 0.0
  %59 = vmatprep.subr.mxu0 0.0
  %60 = vmatpush1.msra.mxu0 0.0
  %61 = vmatprep.subr.mxu0 0.0
  %62 = vmatpush1.msra.mxu0 0.0
  %63 = vmatprep.subr.mxu0 0.0
  %64 = vmatpush1.msra.mxu0 0.0
  %65 = vmatprep.subr.mxu0 0.0
  %66 = vmatpush1.msra.mxu0 0.0
  %67 = vmatprep.subr.mxu0 0.0
  %68 = vmatpush1.msra.mxu0 0.0
  %69 = vmatprep.subr.mxu0 0.0
  %70 = vmatpush1.msra.mxu0 0.0
  %71 = vmatprep.subr.mxu0 0.0
  %72 = vmatpush1.msra.mxu0 0.0
  %73 = vmatprep.subr.mxu0 0.0
  %74 = vmatpush1.msra.mxu0 0.0
  %75 = vmatprep.subr.mxu0 0.0
  %76 = vmatpush1.msra.mxu0 0.0
  %77 = vmatprep.subr.mxu0 0.0
  %78 = vmatpush1.msra.mxu0 0.0
  %79 = vmatprep.subr.mxu0 0.0
  %80 = vmatpush1.msra.mxu0 0.0
  %81 = vmatprep.subr.mxu0 0.0
  %82 = vmatpush1.msra.mxu0 0.0
  %83 = vmatprep.subr.mxu0 0.0
  %84 = vmatpush1.msra.mxu0 0.0
  %85 = vmatprep.subr.mxu0 0.0
  %86 = vmatpush1.msra.mxu0 0.0
  %87 = vmatprep.subr.mxu0 0.0
  %88 = vmatpush1.msra.mxu0 0.0
  %89 = vmatprep.subr.mxu0 0.0
  %90 = vmatpush1.msra.mxu0 0.0
  %91 = vmatprep.subr.mxu0 0.0
  %92 = vmatpush1.msra.mxu0 0.0
  %93 = vmatprep.subr.mxu0 0.0
  %94 = vmatpush1.msra.mxu0 0.0
  %95 = vmatprep.subr.mxu0 0.0
  %96 = vmatpush1.msra.mxu0 0.0
  %97 = vmatprep.subr.mxu0 0.0
  %98 = vmatpush1.msra.mxu0 0.0
  %99 = vmatprep.subr.mxu0 0.0
  %100 = vmatpush1.msra.mxu0 0.0
  %101 = vmatprep.subr.mxu0 0.0
  %102 = vmatpush1.msra.mxu0 0.0
  %103 = vmatprep.subr.mxu0 0.0
  %104 = vmatpush1.msra.mxu0 0.0
  %105 = vmatprep.subr.mxu0 0.0
  %106 = vmatpush1.msra.mxu0 0.0
  %107 = vmatprep.subr.mxu0 0.0
  %108 = vmatpush1.msra.mxu0 0.0
  %109 = vmatprep.subr.mxu0 0.0
  %110 = vmatpush1.msra.mxu0 0.0
  %111 = vmatprep.subr.mxu0 0.0
  %112 = vmatpush1.msra.mxu0 0.0
  %113 = vmatprep.subr.mxu0 0.0
  %114 = vmatpush1.msra.mxu0 0.0
  %115 = vmatprep.subr.mxu0 0.0
  %116 = vmatpush1.msra.mxu0 0.0
  %117 = vmatprep.mubr.f32.mxu0 0.0
  %v118 = vand.u32 %v40, 4294901760
  %v119 = vsub.f32 %v40, %v118
  %v120 = vand.u32 %v119, 4294901760
  %v121 = vsub.f32 %v119, %v120
  %v122 = vand.u32 %v121, 4294901760
  %123 = vmatmul.mubr.f32.gmra.mrb[0].mxu0 %v122
  %v124 = vpop.f32.mrb[0].mxu0
  %v125 = vadd.f32 0.0, %v124
  %v126 = vpop.f32.mrb[0].mxu0
  %127 = vmatprep.mubr.f32.mxu0 0.0
  %v128 = vand.u32 %v43, 4294901760
  %v129 = vsub.f32 %v43, %v128
  %v130 = vand.u32 %v129, 4294901760
  %v131 = vsub.f32 %v129, %v130
  %v132 = vand.u32 %v131, 4294901760
  %133 = vmatmul.mubr.f32.gmra.mrb[0].mxu0 %v132
  %v134 = vpop.f32.mrb[0].mxu0
  %v135 = vadd.f32 0.0, %v134
  %v136 = vpop.f32.mrb[0].mxu0
  %137 = vmatprep.mubr.f32.mxu0 0.0
  %v138 = vand.u32 %v46, 4294901760
  %v139 = vsub.f32 %v46, %v138
  %v140 = vand.u32 %v139, 4294901760
  %v141 = vsub.f32 %v139, %v140
  %v142 = vand.u32 %v141, 4294901760
  %143 = vmatmul.mubr.f32.gmra.mrb[0].mxu0 %v142
  %v144 = vpop.f32.mrb[0].mxu0
  %v145 = vadd.f32 0.0, %v144
  %v146 = vpop.f32.mrb[0].mxu0
  %147 = vmatprep.mubr.f32.mxu0 0.0
  %v148 = vand.u32 %v49, 4294901760
  %v149 = vsub.f32 %v49, %v148
  %v150 = vand.u32 %v149, 4294901760
  %v151 = vsub.f32 %v149, %v150
  %v152 = vand.u32 %v151, 4294901760
  %153 = vmatmul.mubr.f32.gmra.mrb[0].mxu0 %v152
  %v154 = vpop.f32.mrb[0].mxu0
  %v155 = vadd.f32 0.0, %v154
  %v156 = vpop.f32.mrb[0].mxu0
  %157 = vdwg.mxu0
  %158 = vmatprep.subr.mxu0 0.0
  %v159 = vand.u32 %v20, 4294901760
  %v160 = vsub.f32 %v20, %v159
  %v161 = vand.u32 %v160, 4294901760
  %v162 = vsub.f32 %v160, %v161
  %v163 = vand.u32 %v162, 4294901760
  %164 = vmatpush1.msra.mxu0 %v163
  %165 = vmatprep.subr.mxu0 0.0
  %v166 = vand.u32 %v21, 4294901760
  %v167 = vsub.f32 %v21, %v166
  %v168 = vand.u32 %v167, 4294901760
  %v169 = vsub.f32 %v167, %v168
  %v170 = vand.u32 %v169, 4294901760
  %171 = vmatpush1.msra.mxu0 %v170
  %172 = vmatprep.subr.mxu0 0.0
  %173 = vmatpush1.msra.mxu0 0.0
  %174 = vmatprep.subr.mxu0 0.0
  %175 = vmatpush1.msra.mxu0 0.0
  %176 = vmatprep.subr.mxu0 0.0
  %177 = vmatpush1.msra.mxu0 0.0
  %178 = vmatprep.subr.mxu0 0.0
  %179 = vmatpush1.msra.mxu0 0.0
  %180 = vmatprep.subr.mxu0 0.0
  %181 = vmatpush1.msra.mxu0 0.0
  %182 = vmatprep.subr.mxu0 0.0
  %183 = vmatpush1.msra.mxu0 0.0
  %184 = vmatprep.subr.mxu0 0.0
  %185 = vmatpush1.msra.mxu0 0.0
  %186 = vmatprep.subr.mxu0 0.0
  %187 = vmatpush1.msra.mxu0 0.0
  %188 = vmatprep.subr.mxu0 0.0
  %189 = vmatpush1.msra.mxu0 0.0
  %190 = vmatprep.subr.mxu0 0.0
  %191 = vmatpush1.msra.mxu0 0.0
  %192 = vmatprep.subr.mxu0 0.0
  %193 = vmatpush1.msra.mxu0 0.0
  %194 = vmatprep.subr.mxu0 0.0
  %195 = vmatpush1.msra.mxu0 0.0
  %196 = vmatprep.subr.mxu0 0.0
  %197 = vmatpush1.msra.mxu0 0.0
  %198 = vmatprep.subr.mxu0 0.0
  %199 = vmatpush1.msra.mxu0 0.0
  %200 = vmatprep.subr.mxu0 0.0
  %201 = vmatpush1.msra.mxu0 0.0
  %202 = vmatprep.subr.mxu0 0.0
  %203 = vmatpush1.msra.mxu0 0.0
  %204 = vmatprep.subr.mxu0 0.0
  %205 = vmatpush1.msra.mxu0 0.0
  %206 = vmatprep.subr.mxu0 0.0
  %207 = vmatpush1.msra.mxu0 0.0
  %208 = vmatprep.subr.mxu0 0.0
  %209 = vmatpush1.msra.mxu0 0.0
  %210 = vmatprep.subr.mxu0 0.0
  %211 = vmatpush1.msra.mxu0 0.0
  %212 = vmatprep.subr.mxu0 0.0
  %213 = vmatpush1.msra.mxu0 0.0
  %214 = vmatprep.subr.mxu0 0.0
  %215 = vmatpush1.msra.mxu0 0.0
  %216 = vmatprep.subr.mxu0 0.0
  %217 = vmatpush1.msra.mxu0 0.0
  %218 = vmatprep.subr.mxu0 0.0
  %219 = vmatpush1.msra.mxu0 0.0
  %220 = vmatprep.subr.mxu0 0.0
  %221 = vmatpush1.msra.mxu0 0.0
  %222 = vmatprep.subr.mxu0 0.0
  %223 = vmatpush1.msra.mxu0 0.0
  %224 = vmatprep.subr.mxu0 0.0
  %225 = vmatpush1.msra.mxu0 0.0
  %226 = vmatprep.subr.mxu0 0.0
  %227 = vmatpush1.msra.mxu0 0.0
  %228 = vmatprep.subr.mxu0 0.0
  %229 = vmatpush1.msra.mxu0 0.0
  %230 = vmatprep.subr.mxu0 0.0
  %231 = vmatpush1.msra.mxu0 0.0
  %232 = vmatprep.mubr.f32.mxu0 0.0
  %v233 = vand.u32 %v40, 4294901760
  %234 = vmatmul.mubr.f32.gmra.mrb[0].mxu0 %v233
  %v235 = vpop.f32.mrb[0].mxu0
  %v236 = vadd.f32 %v125, %v235
  %v237 = vpop.f32.mrb[0].mxu0
  %238 = vmatprep.mubr.f32.mxu0 0.0
  %v239 = vand.u32 %v43, 4294901760
  %240 = vmatmul.mubr.f32.gmra.mrb[0].mxu0 %v239
  %v241 = vpop.f32.mrb[0].mxu0
  %v242 = vadd.f32 %v135, %v241
  %v243 = vpop.f32.mrb[0].mxu0
  %244 = vmatprep.mubr.f32.mxu0 0.0
  %v245 = vand.u32 %v46, 4294901760
  %246 = vmatmul.mubr.f32.gmra.mrb[0].mxu0 %v245
  %v247 = vpop.f32.mrb[0].mxu0
  %v248 = vadd.f32 %v145, %v247
  %v249 = vpop.f32.mrb[0].mxu0
  %250 = vmatprep.mubr.f32.mxu0 0.0
  %v251 = vand.u32 %v49, 4294901760
  %252 = vmatmul.mubr.f32.gmra.mrb[0].mxu0 %v251
  %v253 = vpop.f32.mrb[0].mxu0
  %v254 = vadd.f32 %v155, %v253
  %v255 = vpop.f32.mrb[0].mxu0
  %256 = vdwg.mxu0
  %257 = vmatprep.subr.mxu0 0.0
  %v258 = vand.u32 %v20, 4294901760
  %v259 = vsub.f32 %v20, %v258
  %260 = vmatpush1.msra.mxu0 %v259
  %261 = vmatprep.subr.mxu0 0.0
  %v262 = vand.u32 %v21, 4294901760
  %v263 = vsub.f32 %v21, %v262
  %264 = vmatpush1.msra.mxu0 %v263
  %265 = vmatprep.subr.mxu0 0.0
  %266 = vmatpush1.msra.mxu0 0.0
  %267 = vmatprep.subr.mxu0 0.0
  %268 = vmatpush1.msra.mxu0 0.0
  %269 = vmatprep.subr.mxu0 0.0
  %270 = vmatpush1.msra.mxu0 0.0
  %271 = vmatprep.subr.mxu0 0.0
  %272 = vmatpush1.msra.mxu0 0.0
  %273 = vmatprep.subr.mxu0 0.0
  %274 = vmatpush1.msra.mxu0 0.0
  %275 = vmatprep.subr.mxu0 0.0
  %276 = vmatpush1.msra.mxu0 0.0
  %277 = vmatprep.subr.mxu0 0.0
  %278 = vmatpush1.msra.mxu0 0.0
  %279 = vmatprep.subr.mxu0 0.0
  %280 = vmatpush1.msra.mxu0 0.0
  %281 = vmatprep.subr.mxu0 0.0
  %282 = vmatpush1.msra.mxu0 0.0
  %283 = vmatprep.subr.mxu0 0.0
  %284 = vmatpush1.msra.mxu0 0.0
  %285 = vmatprep.subr.mxu0 0.0
  %286 = vmatpush1.msra.mxu0 0.0
  %287 = vmatprep.subr.mxu0 0.0
  %288 = vmatpush1.msra.mxu0 0.0
  %289 = vmatprep.subr.mxu0 0.0
  %290 = vmatpush1.msra.mxu0 0.0
  %291 = vmatprep.subr.mxu0 0.0
  %292 = vmatpush1.msra.mxu0 0.0
  %293 = vmatprep.subr.mxu0 0.0
  %294 = vmatpush1.msra.mxu0 0.0
  %295 = vmatprep.subr.mxu0 0.0
  %296 = vmatpush1.msra.mxu0 0.0
  %297 = vmatprep.subr.mxu0 0.0
  %298 = vmatpush1.msra.mxu0 0.0
  %299 = vmatprep.subr.mxu0 0.0
  %300 = vmatpush1.msra.mxu0 0.0
  %301 = vmatprep.subr.mxu0 0.0
  %302 = vmatpush1.msra.mxu0 0.0
  %303 = vmatprep.subr.mxu0 0.0
  %304 = vmatpush1.msra.mxu0 0.0
  %305 = vmatprep.subr.mxu0 0.0
  %306 = vmatpush1.msra.mxu0 0.0
  %307 = vmatprep.subr.mxu0 0.0
  %308 = vmatpush1.msra.mxu0 0.0
  %309 = vmatprep.subr.mxu0 0.0
  %310 = vmatpush1.msra.mxu0 0.0
  %311 = vmatprep.subr.mxu0 0.0
  %312 = vmatpush1.msra.mxu0 0.0
  %313 = vmatprep.subr.mxu0 0.0
  %314 = vmatpush1.msra.mxu0 0.0
  %315 = vmatprep.subr.mxu0 0.0
  %316 = vmatpush1.msra.mxu0 0.0
  %317 = vmatprep.subr.mxu0 0.0
  %318 = vmatpush1.msra.mxu0 0.0
  %319 = vmatprep.subr.mxu0 0.0
  %320 = vmatpush1.msra.mxu0 0.0
  %321 = vmatprep.subr.mxu0 0.0
  %322 = vmatpush1.msra.mxu0 0.0
  %323 = vmatprep.subr.mxu0 0.0
  %324 = vmatpush1.msra.mxu0 0.0
  %325 = vmatprep.mubr.f32.mxu0 0.0
  %v326 = vand.u32 %v40, 4294901760
  %v327 = vsub.f32 %v40, %v326
  %328 = vmatmul.mubr.f32.gmra.mrb[0].mxu0 %v327
  %v329 = vpop.f32.mrb[0].mxu0
  %v330 = vadd.f32 %v236, %v329
  %v331 = vpop.f32.mrb[0].mxu0
  %332 = vmatprep.mubr.f32.mxu0 0.0
  %v333 = vand.u32 %v43, 4294901760
  %v334 = vsub.f32 %v43, %v333
  %335 = vmatmul.mubr.f32.gmra.mrb[0].mxu0 %v334
  %v336 = vpop.f32.mrb[0].mxu0
  %v337 = vadd.f32 %v242, %v336
  %v338 = vpop.f32.mrb[0].mxu0
  %339 = vmatprep.mubr.f32.mxu0 0.0
  %v340 = vand.u32 %v46, 4294901760
  %v341 = vsub.f32 %v46, %v340
  %342 = vmatmul.mubr.f32.gmra.mrb[0].mxu0 %v341
  %v343 = vpop.f32.mrb[0].mxu0
  %v344 = vadd.f32 %v248, %v343
  %v345 = vpop.f32.mrb[0].mxu0
  %346 = vmatprep.mubr.f32.mxu0 0.0
  %v347 = vand.u32 %v49, 4294901760
  %v348 = vsub.f32 %v49, %v347
  %349 = vmatmul.mubr.f32.gmra.mrb[0].mxu0 %v348
  %v350 = vpop.f32.mrb[0].mxu0
  %v351 = vadd.f32 %v254, %v350
  %v352 = vpop.f32.mrb[0].mxu0
  %353 = vdwg.mxu0
  %354 = vmatprep.subr.mxu0 0.0
  %v355 = vand.u32 %v20, 4294901760
  %356 = vmatpush1.msra.mxu0 %v355
  %357 = vmatprep.subr.mxu0 0.0
  %v358 = vand.u32 %v21, 4294901760
  %359 = vmatpush1.msra.mxu0 %v358
  %360 = vmatprep.subr.mxu0 0.0
  %361 = vmatpush1.msra.mxu0 0.0
  %362 = vmatprep.subr.mxu0 0.0
  %363 = vmatpush1.msra.mxu0 0.0
  %364 = vmatprep.subr.mxu0 0.0
  %365 = vmatpush1.msra.mxu0 0.0
  %366 = vmatprep.subr.mxu0 0.0
  %367 = vmatpush1.msra.mxu0 0.0
  %368 = vmatprep.subr.mxu0 0.0
  %369 = vmatpush1.msra.mxu0 0.0
  %370 = vmatprep.subr.mxu0 0.0
  %371 = vmatpush1.msra.mxu0 0.0
  %372 = vmatprep.subr.mxu0 0.0
  %373 = vmatpush1.msra.mxu0 0.0
  %374 = vmatprep.subr.mxu0 0.0
  %375 = vmatpush1.msra.mxu0 0.0
  %376 = vmatprep.subr.mxu0 0.0
  %377 = vmatpush1.msra.mxu0 0.0
  %378 = vmatprep.subr.mxu0 0.0
  %379 = vmatpush1.msra.mxu0 0.0
  %380 = vmatprep.subr.mxu0 0.0
  %381 = vmatpush1.msra.mxu0 0.0
  %382 = vmatprep.subr.mxu0 0.0
  %383 = vmatpush1.msra.mxu0 0.0
  %384 = vmatprep.subr.mxu0 0.0
  %385 = vmatpush1.msra.mxu0 0.0
  %386 = vmatprep.subr.mxu0 0.0
  %387 = vmatpush1.msra.mxu0 0.0
  %388 = vmatprep.subr.mxu0 0.0
  %389 = vmatpush1.msra.mxu0 0.0
  %390 = vmatprep.subr.mxu0 0.0
  %391 = vmatpush1.msra.mxu0 0.0
  %392 = vmatprep.subr.mxu0 0.0
  %393 = vmatpush1.msra.mxu0 0.0
  %394 = vmatprep.subr.mxu0 0.0
  %395 = vmatpush1.msra.mxu0 0.0
  %396 = vmatprep.subr.mxu0 0.0
  %397 = vmatpush1.msra.mxu0 0.0
  %398 = vmatprep.subr.mxu0 0.0
  %399 = vmatpush1.msra.mxu0 0.0
  %400 = vmatprep.subr.mxu0 0.0
  %401 = vmatpush1.msra.mxu0 0.0
  %402 = vmatprep.subr.mxu0 0.0
  %403 = vmatpush1.msra.mxu0 0.0
  %404 = vmatprep.subr.mxu0 0.0
  %405 = vmatpush1.msra.mxu0 0.0
  %406 = vmatprep.subr.mxu0 0.0
  %407 = vmatpush1.msra.mxu0 0.0
  %408 = vmatprep.subr.mxu0 0.0
  %409 = vmatpush1.msra.mxu0 0.0
  %410 = vmatprep.subr.mxu0 0.0
  %411 = vmatpush1.msra.mxu0 0.0
  %412 = vmatprep.subr.mxu0 0.0
  %413 = vmatpush1.msra.mxu0 0.0
  %414 = vmatprep.subr.mxu0 0.0
  %415 = vmatpush1.msra.mxu0 0.0
  %416 = vmatprep.subr.mxu0 0.0
  %417 = vmatpush1.msra.mxu0 0.0
  %418 = vmatprep.subr.mxu0 0.0
  %419 = vmatpush1.msra.mxu0 0.0
  %420 = vmatprep.mubr.f32.mxu0 0.0
  %v421 = vand.u32 %v40, 4294901760
  %v422 = vsub.f32 %v40, %v421
  %v423 = vand.u32 %v422, 4294901760
  %424 = vmatmul.mubr.f32.gmra.mrb[0].mxu0 %v423
  %v425 = vpop.f32.mrb[0].mxu0
  %v426 = vadd.f32 %v330, %v425
  %v427 = vpop.f32.mrb[0].mxu0
  %428 = vmatprep.mubr.f32.mxu0 0.0
  %v429 = vand.u32 %v43, 4294901760
  %v430 = vsub.f32 %v43, %v429
  %v431 = vand.u32 %v430, 4294901760
  %432 = vmatmul.mubr.f32.gmra.mrb[0].mxu0 %v431
  %v433 = vpop.f32.mrb[0].mxu0
  %v434 = vadd.f32 %v337, %v433
  %v435 = vpop.f32.mrb[0].mxu0
  %436 = vmatprep.mubr.f32.mxu0 0.0
  %v437 = vand.u32 %v46, 4294901760
  %v438 = vsub.f32 %v46, %v437
  %v439 = vand.u32 %v438, 4294901760
  %440 = vmatmul.mubr.f32.gmra.mrb[0].mxu0 %v439
  %v441 = vpop.f32.mrb[0].mxu0
  %v442 = vadd.f32 %v344, %v441
  %v443 = vpop.f32.mrb[0].mxu0
  %444 = vmatprep.mubr.f32.mxu0 0.0
  %v445 = vand.u32 %v49, 4294901760
  %v446 = vsub.f32 %v49, %v445
  %v447 = vand.u32 %v446, 4294901760
  %448 = vmatmul.mubr.f32.gmra.mrb[0].mxu0 %v447
  %v449 = vpop.f32.mrb[0].mxu0
  %v450 = vadd.f32 %v351, %v449
  %v451 = vpop.f32.mrb[0].mxu0
  %452 = vdwg.mxu0
  %453 = vmatprep.subr.mxu0 0.0
  %v454 = vand.u32 %v20, 4294901760
  %v455 = vsub.f32 %v20, %v454
  %v456 = vand.u32 %v455, 4294901760
  %457 = vmatpush1.msra.mxu0 %v456
  %458 = vmatprep.subr.mxu0 0.0
  %v459 = vand.u32 %v21, 4294901760
  %v460 = vsub.f32 %v21, %v459
  %v461 = vand.u32 %v460, 4294901760
  %462 = vmatpush1.msra.mxu0 %v461
  %463 = vmatprep.subr.mxu0 0.0
  %464 = vmatpush1.msra.mxu0 0.0
  %465 = vmatprep.subr.mxu0 0.0
  %466 = vmatpush1.msra.mxu0 0.0
  %467 = vmatprep.subr.mxu0 0.0
  %468 = vmatpush1.msra.mxu0 0.0
  %469 = vmatprep.subr.mxu0 0.0
  %470 = vmatpush1.msra.mxu0 0.0
  %471 = vmatprep.subr.mxu0 0.0
  %472 = vmatpush1.msra.mxu0 0.0
  %473 = vmatprep.subr.mxu0 0.0
  %474 = vmatpush1.msra.mxu0 0.0
  %475 = vmatprep.subr.mxu0 0.0
  %476 = vmatpush1.msra.mxu0 0.0
  %477 = vmatprep.subr.mxu0 0.0
  %478 = vmatpush1.msra.mxu0 0.0
  %479 = vmatprep.subr.mxu0 0.0
  %480 = vmatpush1.msra.mxu0 0.0
  %481 = vmatprep.subr.mxu0 0.0
  %482 = vmatpush1.msra.mxu0 0.0
  %483 = vmatprep.subr.mxu0 0.0
  %484 = vmatpush1.msra.mxu0 0.0
  %485 = vmatprep.subr.mxu0 0.0
  %486 = vmatpush1.msra.mxu0 0.0
  %487 = vmatprep.subr.mxu0 0.0
  %488 = vmatpush1.msra.mxu0 0.0
  %489 = vmatprep.subr.mxu0 0.0
  %490 = vmatpush1.msra.mxu0 0.0
  %491 = vmatprep.subr.mxu0 0.0
  %492 = vmatpush1.msra.mxu0 0.0
  %493 = vmatprep.subr.mxu0 0.0
  %494 = vmatpush1.msra.mxu0 0.0
  %495 = vmatprep.subr.mxu0 0.0
  %496 = vmatpush1.msra.mxu0 0.0
  %497 = vmatprep.subr.mxu0 0.0
  %498 = vmatpush1.msra.mxu0 0.0
  %499 = vmatprep.subr.mxu0 0.0
  %500 = vmatpush1.msra.mxu0 0.0
  %501 = vmatprep.subr.mxu0 0.0
  %502 = vmatpush1.msra.mxu0 0.0
  %503 = vmatprep.subr.mxu0 0.0
  %504 = vmatpush1.msra.mxu0 0.0
  %505 = vmatprep.subr.mxu0 0.0
  %506 = vmatpush1.msra.mxu0 0.0
  %507 = vmatprep.subr.mxu0 0.0
  %508 = vmatpush1.msra.mxu0 0.0
  %509 = vmatprep.subr.mxu0 0.0
  %510 = vmatpush1.msra.mxu0 0.0
  %511 = vmatprep.subr.mxu0 0.0
  %512 = vmatpush1.msra.mxu0 0.0
  %513 = vmatprep.subr.mxu0 0.0
  %514 = vmatpush1.msra.mxu0 0.0
  %515 = vmatprep.subr.mxu0 0.0
  %516 = vmatpush1.msra.mxu0 0.0
  %517 = vmatprep.subr.mxu0 0.0
  %518 = vmatpush1.msra.mxu0 0.0
  %519 = vmatprep.subr.mxu0 0.0
  %520 = vmatpush1.msra.mxu0 0.0
  %521 = vmatprep.subr.mxu0 0.0
  %522 = vmatpush1.msra.mxu0 0.0
  %523 = vmatprep.mubr.f32.mxu0 0.0
  %v524 = vand.u32 %v40, 4294901760
  %525 = vmatmul.mubr.f32.gmra.mrb[0].mxu0 %v524
  %v526 = vpop.f32.mrb[0].mxu0
  %v527 = vadd.f32 %v426, %v526
  %v528 = vpop.f32.mrb[0].mxu0
  %529 = vmatprep.mubr.f32.mxu0 0.0
  %v530 = vand.u32 %v43, 4294901760
  %531 = vmatmul.mubr.f32.gmra.mrb[0].mxu0 %v530
  %v532 = vpop.f32.mrb[0].mxu0
  %v533 = vadd.f32 %v434, %v532
  %v534 = vpop.f32.mrb[0].mxu0
  %535 = vmatprep.mubr.f32.mxu0 0.0
  %v536 = vand.u32 %v46, 4294901760
  %537 = vmatmul.mubr.f32.gmra.mrb[0].mxu0 %v536
  %v538 = vpop.f32.mrb[0].mxu0
  %v539 = vadd.f32 %v442, %v538
  %v540 = vpop.f32.mrb[0].mxu0
  %541 = vmatprep.mubr.f32.mxu0 0.0
  %v542 = vand.u32 %v49, 4294901760
  %543 = vmatmul.mubr.f32.gmra.mrb[0].mxu0 %v542
  %v544 = vpop.f32.mrb[0].mxu0
  %v545 = vadd.f32 %v450, %v544
  %v546 = vpop.f32.mrb[0].mxu0
  %547 = vdwg.mxu0
  %548 = vmatprep.subr.mxu0 0.0
  %v549 = vand.u32 %v20, 4294901760
  %550 = vmatpush1.msra.mxu0 %v549
  %551 = vmatprep.subr.mxu0 0.0
  %v552 = vand.u32 %v21, 4294901760
  %553 = vmatpush1.msra.mxu0 %v552
  %554 = vmatprep.subr.mxu0 0.0
  %555 = vmatpush1.msra.mxu0 0.0
  %556 = vmatprep.subr.mxu0 0.0
  %557 = vmatpush1.msra.mxu0 0.0
  %558 = vmatprep.subr.mxu0 0.0
  %559 = vmatpush1.msra.mxu0 0.0
  %560 = vmatprep.subr.mxu0 0.0
  %561 = vmatpush1.msra.mxu0 0.0
  %562 = vmatprep.subr.mxu0 0.0
  %563 = vmatpush1.msra.mxu0 0.0
  %564 = vmatprep.subr.mxu0 0.0
  %565 = vmatpush1.msra.mxu0 0.0
  %566 = vmatprep.subr.mxu0 0.0
  %567 = vmatpush1.msra.mxu0 0.0
  %568 = vmatprep.subr.mxu0 0.0
  %569 = vmatpush1.msra.mxu0 0.0
  %570 = vmatprep.subr.mxu0 0.0
  %571 = vmatpush1.msra.mxu0 0.0
  %572 = vmatprep.subr.mxu0 0.0
  %573 = vmatpush1.msra.mxu0 0.0
  %574 = vmatprep.subr.mxu0 0.0
  %575 = vmatpush1.msra.mxu0 0.0
  %576 = vmatprep.subr.mxu0 0.0
  %577 = vmatpush1.msra.mxu0 0.0
  %578 = vmatprep.subr.mxu0 0.0
  %579 = vmatpush1.msra.mxu0 0.0
  %580 = vmatprep.subr.mxu0 0.0
  %581 = vmatpush1.msra.mxu0 0.0
  %582 = vmatprep.subr.mxu0 0.0
  %583 = vmatpush1.msra.mxu0 0.0
  %584 = vmatprep.subr.mxu0 0.0
  %585 = vmatpush1.msra.mxu0 0.0
  %586 = vmatprep.subr.mxu0 0.0
  %587 = vmatpush1.msra.mxu0 0.0
  %588 = vmatprep.subr.mxu0 0.0
  %589 = vmatpush1.msra.mxu0 0.0
  %590 = vmatprep.subr.mxu0 0.0
  %591 = vmatpush1.msra.mxu0 0.0
  %592 = vmatprep.subr.mxu0 0.0
  %593 = vmatpush1.msra.mxu0 0.0
  %594 = vmatprep.subr.mxu0 0.0
  %595 = vmatpush1.msra.mxu0 0.0
  %596 = vmatprep.subr.mxu0 0.0
  %597 = vmatpush1.msra.mxu0 0.0
  %598 = vmatprep.subr.mxu0 0.0
  %599 = vmatpush1.msra.mxu0 0.0
  %600 = vmatprep.subr.mxu0 0.0
  %601 = vmatpush1.msra.mxu0 0.0
  %602 = vmatprep.subr.mxu0 0.0
  %603 = vmatpush1.msra.mxu0 0.0
  %604 = vmatprep.subr.mxu0 0.0
  %605 = vmatpush1.msra.mxu0 0.0
  %606 = vmatprep.subr.mxu0 0.0
  %607 = vmatpush1.msra.mxu0 0.0
  %608 = vmatprep.subr.mxu0 0.0
  %609 = vmatpush1.msra.mxu0 0.0
  %610 = vmatprep.subr.mxu0 0.0
  %611 = vmatpush1.msra.mxu0 0.0
  %612 = vmatprep.subr.mxu0 0.0
  %613 = vmatpush1.msra.mxu0 0.0
  %614 = vmatprep.mubr.f32.mxu0 0.0
  %v615 = vand.u32 %v40, 4294901760
  %616 = vmatmul.mubr.f32.gmra.mrb[0].mxu0 %v615
  %v617 = vpop.f32.mrb[0].mxu0
  %v618 = vadd.f32 %v527, %v617
  %v619 = vpop.f32.mrb[0].mxu0
  %620 = vmatprep.mubr.f32.mxu0 0.0
  %v621 = vand.u32 %v43, 4294901760
  %622 = vmatmul.mubr.f32.gmra.mrb[0].mxu0 %v621
  %v623 = vpop.f32.mrb[0].mxu0
  %v624 = vadd.f32 %v533, %v623
  %v625 = vpop.f32.mrb[0].mxu0
  %626 = vmatprep.mubr.f32.mxu0 0.0
  %v627 = vand.u32 %v46, 4294901760
  %628 = vmatmul.mubr.f32.gmra.mrb[0].mxu0 %v627
  %v629 = vpop.f32.mrb[0].mxu0
  %v630 = vadd.f32 %v539, %v629
  %v631 = vpop.f32.mrb[0].mxu0
  %632 = vmatprep.mubr.f32.mxu0 0.0
  %v633 = vand.u32 %v49, 4294901760
  %634 = vmatmul.mubr.f32.gmra.mrb[0].mxu0 %v633
  %v635 = vpop.f32.mrb[0].mxu0
  %v636 = vadd.f32 %v545, %v635
  %v637 = vpop.f32.mrb[0].mxu0
  %638 = vdwg.mxu0
  %v640 = vsel %vm38, %v26, 0
  %v643 = vsel %vm38, %v27, 0
  %v646 = vsel %vm38, %v28, 0
  %v649 = vsel %vm38, %v29, 0
  %651 = vmatprep.subr.mxu0 0.0
  %v652 = vand.u32 %v20, 4294901760
  %653 = vmatpush1.msra.mxu0 %v652
  %654 = vmatprep.subr.mxu0 0.0
  %v655 = vand.u32 %v21, 4294901760
  %656 = vmatpush1.msra.mxu0 %v655
  %657 = vmatprep.subr.mxu0 0.0
  %658 = vmatpush1.msra.mxu0 0.0
  %659 = vmatprep.subr.mxu0 0.0
  %660 = vmatpush1.msra.mxu0 0.0
  %661 = vmatprep.subr.mxu0 0.0
  %662 = vmatpush1.msra.mxu0 0.0
  %663 = vmatprep.subr.mxu0 0.0
  %664 = vmatpush1.msra.mxu0 0.0
  %665 = vmatprep.subr.mxu0 0.0
  %666 = vmatpush1.msra.mxu0 0.0
  %667 = vmatprep.subr.mxu0 0.0
  %668 = vmatpush1.msra.mxu0 0.0
  %669 = vmatprep.subr.mxu0 0.0
  %670 = vmatpush1.msra.mxu0 0.0
  %671 = vmatprep.subr.mxu0 0.0
  %672 = vmatpush1.msra.mxu0 0.0
  %673 = vmatprep.subr.mxu0 0.0
  %674 = vmatpush1.msra.mxu0 0.0
  %675 = vmatprep.subr.mxu0 0.0
  %676 = vmatpush1.msra.mxu0 0.0
  %677 = vmatprep.subr.mxu0 0.0
  %678 = vmatpush1.msra.mxu0 0.0
  %679 = vmatprep.subr.mxu0 0.0
  %680 = vmatpush1.msra.mxu0 0.0
  %681 = vmatprep.subr.mxu0 0.0
  %682 = vmatpush1.msra.mxu0 0.0
  %683 = vmatprep.subr.mxu0 0.0
  %684 = vmatpush1.msra.mxu0 0.0
  %685 = vmatprep.subr.mxu0 0.0
  %686 = vmatpush1.msra.mxu0 0.0
  %687 = vmatprep.subr.mxu0 0.0
  %688 = vmatpush1.msra.mxu0 0.0
  %689 = vmatprep.subr.mxu0 0.0
  %690 = vmatpush1.msra.mxu0 0.0
  %691 = vmatprep.subr.mxu0 0.0
  %692 = vmatpush1.msra.mxu0 0.0
  %693 = vmatprep.subr.mxu0 0.0
  %694 = vmatpush1.msra.mxu0 0.0
  %695 = vmatprep.subr.mxu0 0.0
  %696 = vmatpush1.msra.mxu0 0.0
  %697 = vmatprep.subr.mxu0 0.0
  %698 = vmatpush1.msra.mxu0 0.0
  %699 = vmatprep.subr.mxu0 0.0
  %700 = vmatpush1.msra.mxu0 0.0
  %701 = vmatprep.subr.mxu0 0.0
  %702 = vmatpush1.msra.mxu0 0.0
  %703 = vmatprep.subr.mxu0 0.0
  %704 = vmatpush1.msra.mxu0 0.0
  %705 = vmatprep.subr.mxu0 0.0
  %706 = vmatpush1.msra.mxu0 0.0
  %707 = vmatprep.subr.mxu0 0.0
  %708 = vmatpush1.msra.mxu0 0.0
  %709 = vmatprep.subr.mxu0 0.0
  %710 = vmatpush1.msra.mxu0 0.0
  %711 = vmatprep.subr.mxu0 0.0
  %712 = vmatpush1.msra.mxu0 0.0
  %713 = vmatprep.subr.mxu0 0.0
  %714 = vmatpush1.msra.mxu0 0.0
  %715 = vmatprep.subr.mxu0 0.0
  %716 = vmatpush1.msra.mxu0 0.0
  %717 = vmatprep.mubr.f32.mxu0 0.0
  %v718 = vand.u32 %v640, 4294901760
  %v719 = vsub.f32 %v640, %v718
  %v720 = vand.u32 %v719, 4294901760
  %v721 = vsub.f32 %v719, %v720
  %v722 = vand.u32 %v721, 4294901760
  %723 = vmatmul.mubr.f32.gmra.mrb[0].mxu0 %v722
  %v724 = vpop.f32.mrb[0].mxu0
  %v725 = vadd.f32 0.0, %v724
  %v726 = vpop.f32.mrb[0].mxu0
  %727 = vmatprep.mubr.f32.mxu0 0.0
  %v728 = vand.u32 %v643, 4294901760
  %v729 = vsub.f32 %v643, %v728
  %v730 = vand.u32 %v729, 4294901760
  %v731 = vsub.f32 %v729, %v730
  %v732 = vand.u32 %v731, 4294901760
  %733 = vmatmul.mubr.f32.gmra.mrb[0].mxu0 %v732
  %v734 = vpop.f32.mrb[0].mxu0
  %v735 = vadd.f32 0.0, %v734
  %v736 = vpop.f32.mrb[0].mxu0
  %737 = vmatprep.mubr.f32.mxu0 0.0
  %v738 = vand.u32 %v646, 4294901760
  %v739 = vsub.f32 %v646, %v738
  %v740 = vand.u32 %v739, 4294901760
  %v741 = vsub.f32 %v739, %v740
  %v742 = vand.u32 %v741, 4294901760
  %743 = vmatmul.mubr.f32.gmra.mrb[0].mxu0 %v742
  %v744 = vpop.f32.mrb[0].mxu0
  %v745 = vadd.f32 0.0, %v744
  %v746 = vpop.f32.mrb[0].mxu0
  %747 = vmatprep.mubr.f32.mxu0 0.0
  %v748 = vand.u32 %v649, 4294901760
  %v749 = vsub.f32 %v649, %v748
  %v750 = vand.u32 %v749, 4294901760
  %v751 = vsub.f32 %v749, %v750
  %v752 = vand.u32 %v751, 4294901760
  %753 = vmatmul.mubr.f32.gmra.mrb[0].mxu0 %v752
  %v754 = vpop.f32.mrb[0].mxu0
  %v755 = vadd.f32 0.0, %v754
  %v756 = vpop.f32.mrb[0].mxu0
  %757 = vdwg.mxu0
  %758 = vmatprep.subr.mxu0 0.0
  %v759 = vand.u32 %v20, 4294901760
  %v760 = vsub.f32 %v20, %v759
  %v761 = vand.u32 %v760, 4294901760
  %v762 = vsub.f32 %v760, %v761
  %v763 = vand.u32 %v762, 4294901760
  %764 = vmatpush1.msra.mxu0 %v763
  %765 = vmatprep.subr.mxu0 0.0
  %v766 = vand.u32 %v21, 4294901760
  %v767 = vsub.f32 %v21, %v766
  %v768 = vand.u32 %v767, 4294901760
  %v769 = vsub.f32 %v767, %v768
  %v770 = vand.u32 %v769, 4294901760
  %771 = vmatpush1.msra.mxu0 %v770
  %772 = vmatprep.subr.mxu0 0.0
  %773 = vmatpush1.msra.mxu0 0.0
  %774 = vmatprep.subr.mxu0 0.0
  %775 = vmatpush1.msra.mxu0 0.0
  %776 = vmatprep.subr.mxu0 0.0
  %777 = vmatpush1.msra.mxu0 0.0
  %778 = vmatprep.subr.mxu0 0.0
  %779 = vmatpush1.msra.mxu0 0.0
  %780 = vmatprep.subr.mxu0 0.0
  %781 = vmatpush1.msra.mxu0 0.0
  %782 = vmatprep.subr.mxu0 0.0
  %783 = vmatpush1.msra.mxu0 0.0
  %784 = vmatprep.subr.mxu0 0.0
  %785 = vmatpush1.msra.mxu0 0.0
  %786 = vmatprep.subr.mxu0 0.0
  %787 = vmatpush1.msra.mxu0 0.0
  %788 = vmatprep.subr.mxu0 0.0
  %789 = vmatpush1.msra.mxu0 0.0
  %790 = vmatprep.subr.mxu0 0.0
  %791 = vmatpush1.msra.mxu0 0.0
  %792 = vmatprep.subr.mxu0 0.0
  %793 = vmatpush1.msra.mxu0 0.0
  %794 = vmatprep.subr.mxu0 0.0
  %795 = vmatpush1.msra.mxu0 0.0
  %796 = vmatprep.subr.mxu0 0.0
  %797 = vmatpush1.msra.mxu0 0.0
  %798 = vmatprep.subr.mxu0 0.0
  %799 = vmatpush1.msra.mxu0 0.0
  %800 = vmatprep.subr.mxu0 0.0
  %801 = vmatpush1.msra.mxu0 0.0
  %802 = vmatprep.subr.mxu0 0.0
  %803 = vmatpush1.msra.mxu0 0.0
  %804 = vmatprep.subr.mxu0 0.0
  %805 = vmatpush1.msra.mxu0 0.0
  %806 = vmatprep.subr.mxu0 0.0
  %807 = vmatpush1.msra.mxu0 0.0
  %808 = vmatprep.subr.mxu0 0.0
  %809 = vmatpush1.msra.mxu0 0.0
  %810 = vmatprep.subr.mxu0 0.0
  %811 = vmatpush1.msra.mxu0 0.0
  %812 = vmatprep.subr.mxu0 0.0
  %813 = vmatpush1.msra.mxu0 0.0
  %814 = vmatprep.subr.mxu0 0.0
  %815 = vmatpush1.msra.mxu0 0.0
  %816 = vmatprep.subr.mxu0 0.0
  %817 = vmatpush1.msra.mxu0 0.0
  %818 = vmatprep.subr.mxu0 0.0
  %819 = vmatpush1.msra.mxu0 0.0
  %820 = vmatprep.subr.mxu0 0.0
  %821 = vmatpush1.msra.mxu0 0.0
  %822 = vmatprep.subr.mxu0 0.0
  %823 = vmatpush1.msra.mxu0 0.0
  %824 = vmatprep.subr.mxu0 0.0
  %825 = vmatpush1.msra.mxu0 0.0
  %826 = vmatprep.subr.mxu0 0.0
  %827 = vmatpush1.msra.mxu0 0.0
  %828 = vmatprep.subr.mxu0 0.0
  %829 = vmatpush1.msra.mxu0 0.0
  %830 = vmatprep.subr.mxu0 0.0
  %831 = vmatpush1.msra.mxu0 0.0
  %832 = vmatprep.mubr.f32.mxu0 0.0
  %v833 = vand.u32 %v640, 4294901760
  %834 = vmatmul.mubr.f32.gmra.mrb[0].mxu0 %v833
  %v835 = vpop.f32.mrb[0].mxu0
  %v836 = vadd.f32 %v725, %v835
  %v837 = vpop.f32.mrb[0].mxu0
  %838 = vmatprep.mubr.f32.mxu0 0.0
  %v839 = vand.u32 %v643, 4294901760
  %840 = vmatmul.mubr.f32.gmra.mrb[0].mxu0 %v839
  %v841 = vpop.f32.mrb[0].mxu0
  %v842 = vadd.f32 %v735, %v841
  %v843 = vpop.f32.mrb[0].mxu0
  %844 = vmatprep.mubr.f32.mxu0 0.0
  %v845 = vand.u32 %v646, 4294901760
  %846 = vmatmul.mubr.f32.gmra.mrb[0].mxu0 %v845
  %v847 = vpop.f32.mrb[0].mxu0
  %v848 = vadd.f32 %v745, %v847
  %v849 = vpop.f32.mrb[0].mxu0
  %850 = vmatprep.mubr.f32.mxu0 0.0
  %v851 = vand.u32 %v649, 4294901760
  %852 = vmatmul.mubr.f32.gmra.mrb[0].mxu0 %v851
  %v853 = vpop.f32.mrb[0].mxu0
  %v854 = vadd.f32 %v755, %v853
  %v855 = vpop.f32.mrb[0].mxu0
  %856 = vdwg.mxu0
  %857 = vmatprep.subr.mxu0 0.0
  %v858 = vand.u32 %v20, 4294901760
  %v859 = vsub.f32 %v20, %v858
  %860 = vmatpush1.msra.mxu0 %v859
  %861 = vmatprep.subr.mxu0 0.0
  %v862 = vand.u32 %v21, 4294901760
  %v863 = vsub.f32 %v21, %v862
  %864 = vmatpush1.msra.mxu0 %v863
  %865 = vmatprep.subr.mxu0 0.0
  %866 = vmatpush1.msra.mxu0 0.0
  %867 = vmatprep.subr.mxu0 0.0
  %868 = vmatpush1.msra.mxu0 0.0
  %869 = vmatprep.subr.mxu0 0.0
  %870 = vmatpush1.msra.mxu0 0.0
  %871 = vmatprep.subr.mxu0 0.0
  %872 = vmatpush1.msra.mxu0 0.0
  %873 = vmatprep.subr.mxu0 0.0
  %874 = vmatpush1.msra.mxu0 0.0
  %875 = vmatprep.subr.mxu0 0.0
  %876 = vmatpush1.msra.mxu0 0.0
  %877 = vmatprep.subr.mxu0 0.0
  %878 = vmatpush1.msra.mxu0 0.0
  %879 = vmatprep.subr.mxu0 0.0
  %880 = vmatpush1.msra.mxu0 0.0
  %881 = vmatprep.subr.mxu0 0.0
  %882 = vmatpush1.msra.mxu0 0.0
  %883 = vmatprep.subr.mxu0 0.0
  %884 = vmatpush1.msra.mxu0 0.0
  %885 = vmatprep.subr.mxu0 0.0
  %886 = vmatpush1.msra.mxu0 0.0
  %887 = vmatprep.subr.mxu0 0.0
  %888 = vmatpush1.msra.mxu0 0.0
  %889 = vmatprep.subr.mxu0 0.0
  %890 = vmatpush1.msra.mxu0 0.0
  %891 = vmatprep.subr.mxu0 0.0
  %892 = vmatpush1.msra.mxu0 0.0
  %893 = vmatprep.subr.mxu0 0.0
  %894 = vmatpush1.msra.mxu0 0.0
  %895 = vmatprep.subr.mxu0 0.0
  %896 = vmatpush1.msra.mxu0 0.0
  %897 = vmatprep.subr.mxu0 0.0
  %898 = vmatpush1.msra.mxu0 0.0
  %899 = vmatprep.subr.mxu0 0.0
  %900 = vmatpush1.msra.mxu0 0.0
  %901 = vmatprep.subr.mxu0 0.0
  %902 = vmatpush1.msra.mxu0 0.0
  %903 = vmatprep.subr.mxu0 0.0
  %904 = vmatpush1.msra.mxu0 0.0
  %905 = vmatprep.subr.mxu0 0.0
  %906 = vmatpush1.msra.mxu0 0.0
  %907 = vmatprep.subr.mxu0 0.0
  %908 = vmatpush1.msra.mxu0 0.0
  %909 = vmatprep.subr.mxu0 0.0
  %910 = vmatpush1.msra.mxu0 0.0
  %911 = vmatprep.subr.mxu0 0.0
  %912 = vmatpush1.msra.mxu0 0.0
  %913 = vmatprep.subr.mxu0 0.0
  %914 = vmatpush1.msra.mxu0 0.0
  %915 = vmatprep.subr.mxu0 0.0
  %916 = vmatpush1.msra.mxu0 0.0
  %917 = vmatprep.subr.mxu0 0.0
  %918 = vmatpush1.msra.mxu0 0.0
  %919 = vmatprep.subr.mxu0 0.0
  %920 = vmatpush1.msra.mxu0 0.0
  %921 = vmatprep.subr.mxu0 0.0
  %922 = vmatpush1.msra.mxu0 0.0
  %923 = vmatprep.subr.mxu0 0.0
  %924 = vmatpush1.msra.mxu0 0.0
  %925 = vmatprep.mubr.f32.mxu0 0.0
  %v926 = vand.u32 %v640, 4294901760
  %v927 = vsub.f32 %v640, %v926
  %928 = vmatmul.mubr.f32.gmra.mrb[0].mxu0 %v927
  %v929 = vpop.f32.mrb[0].mxu0
  %v930 = vadd.f32 %v836, %v929
  %v931 = vpop.f32.mrb[0].mxu0
  %932 = vmatprep.mubr.f32.mxu0 0.0
  %v933 = vand.u32 %v643, 4294901760
  %v934 = vsub.f32 %v643, %v933
  %935 = vmatmul.mubr.f32.gmra.mrb[0].mxu0 %v934
  %v936 = vpop.f32.mrb[0].mxu0
  %v937 = vadd.f32 %v842, %v936
  %v938 = vpop.f32.mrb[0].mxu0
  %939 = vmatprep.mubr.f32.mxu0 0.0
  %v940 = vand.u32 %v646, 4294901760
  %v941 = vsub.f32 %v646, %v940
  %942 = vmatmul.mubr.f32.gmra.mrb[0].mxu0 %v941
  %v943 = vpop.f32.mrb[0].mxu0
  %v944 = vadd.f32 %v848, %v943
  %v945 = vpop.f32.mrb[0].mxu0
  %946 = vmatprep.mubr.f32.mxu0 0.0
  %v947 = vand.u32 %v649, 4294901760
  %v948 = vsub.f32 %v649, %v947
  %949 = vmatmul.mubr.f32.gmra.mrb[0].mxu0 %v948
  %v950 = vpop.f32.mrb[0].mxu0
  %v951 = vadd.f32 %v854, %v950
  %v952 = vpop.f32.mrb[0].mxu0
  %953 = vdwg.mxu0
  %954 = vmatprep.subr.mxu0 0.0
  %v955 = vand.u32 %v20, 4294901760
  %956 = vmatpush1.msra.mxu0 %v955
  %957 = vmatprep.subr.mxu0 0.0
  %v958 = vand.u32 %v21, 4294901760
  %959 = vmatpush1.msra.mxu0 %v958
  %960 = vmatprep.subr.mxu0 0.0
  %961 = vmatpush1.msra.mxu0 0.0
  %962 = vmatprep.subr.mxu0 0.0
  %963 = vmatpush1.msra.mxu0 0.0
  %964 = vmatprep.subr.mxu0 0.0
  %965 = vmatpush1.msra.mxu0 0.0
  %966 = vmatprep.subr.mxu0 0.0
  %967 = vmatpush1.msra.mxu0 0.0
  %968 = vmatprep.subr.mxu0 0.0
  %969 = vmatpush1.msra.mxu0 0.0
  %970 = vmatprep.subr.mxu0 0.0
  %971 = vmatpush1.msra.mxu0 0.0
  %972 = vmatprep.subr.mxu0 0.0
  %973 = vmatpush1.msra.mxu0 0.0
  %974 = vmatprep.subr.mxu0 0.0
  %975 = vmatpush1.msra.mxu0 0.0
  %976 = vmatprep.subr.mxu0 0.0
  %977 = vmatpush1.msra.mxu0 0.0
  %978 = vmatprep.subr.mxu0 0.0
  %979 = vmatpush1.msra.mxu0 0.0
  %980 = vmatprep.subr.mxu0 0.0
  %981 = vmatpush1.msra.mxu0 0.0
  %982 = vmatprep.subr.mxu0 0.0
  %983 = vmatpush1.msra.mxu0 0.0
  %984 = vmatprep.subr.mxu0 0.0
  %985 = vmatpush1.msra.mxu0 0.0
  %986 = vmatprep.subr.mxu0 0.0
  %987 = vmatpush1.msra.mxu0 0.0
  %988 = vmatprep.subr.mxu0 0.0
  %989 = vmatpush1.msra.mxu0 0.0
  %990 = vmatprep.subr.mxu0 0.0
  %991 = vmatpush1.msra.mxu0 0.0
  %992 = vmatprep.subr.mxu0 0.0
  %993 = vmatpush1.msra.mxu0 0.0
  %994 = vmatprep.subr.mxu0 0.0
  %995 = vmatpush1.msra.mxu0 0.0
  %996 = vmatprep.subr.mxu0 0.0
  %997 = vmatpush1.msra.mxu0 0.0
  %998 = vmatprep.subr.mxu0 0.0
  %999 = vmatpush1.msra.mxu0 0.0
  %1000 = vmatprep.subr.mxu0 0.0
  %1001 = vmatpush1.msra.mxu0 0.0
  %1002 = vmatprep.subr.mxu0 0.0
  %1003 = vmatpush1.msra.mxu0 0.0
  %1004 = vmatprep.subr.mxu0 0.0
  %1005 = vmatpush1.msra.mxu0 0.0
  %1006 = vmatprep.subr.mxu0 0.0
  %1007 = vmatpush1.msra.mxu0 0.0
  %1008 = vmatprep.subr.mxu0 0.0
  %1009 = vmatpush1.msra.mxu0 0.0
  %1010 = vmatprep.subr.mxu0 0.0
  %1011 = vmatpush1.msra.mxu0 0.0
  %1012 = vmatprep.subr.mxu0 0.0
  %1013 = vmatpush1.msra.mxu0 0.0
  %1014 = vmatprep.subr.mxu0 0.0
  %1015 = vmatpush1.msra.mxu0 0.0
  %1016 = vmatprep.subr.mxu0 0.0
  %1017 = vmatpush1.msra.mxu0 0.0
  %1018 = vmatprep.subr.mxu0 0.0
  %1019 = vmatpush1.msra.mxu0 0.0
  %1020 = vmatprep.mubr.f32.mxu0 0.0
  %v1021 = vand.u32 %v640, 4294901760
  %v1022 = vsub.f32 %v640, %v1021
  %v1023 = vand.u32 %v1022, 4294901760
  %1024 = vmatmul.mubr.f32.gmra.mrb[0].mxu0 %v1023
  %v1025 = vpop.f32.mrb[0].mxu0
  %v1026 = vadd.f32 %v930, %v1025
  %v1027 = vpop.f32.mrb[0].mxu0
  %1028 = vmatprep.mubr.f32.mxu0 0.0
  %v1029 = vand.u32 %v643, 4294901760
  %v1030 = vsub.f32 %v643, %v1029
  %v1031 = vand.u32 %v1030, 4294901760
  %1032 = vmatmul.mubr.f32.gmra.mrb[0].mxu0 %v1031
  %v1033 = vpop.f32.mrb[0].mxu0
  %v1034 = vadd.f32 %v937, %v1033
  %v1035 = vpop.f32.mrb[0].mxu0
  %1036 = vmatprep.mubr.f32.mxu0 0.0
  %v1037 = vand.u32 %v646, 4294901760
  %v1038 = vsub.f32 %v646, %v1037
  %v1039 = vand.u32 %v1038, 4294901760
  %1040 = vmatmul.mubr.f32.gmra.mrb[0].mxu0 %v1039
  %v1041 = vpop.f32.mrb[0].mxu0
  %v1042 = vadd.f32 %v944, %v1041
  %v1043 = vpop.f32.mrb[0].mxu0
  %1044 = vmatprep.mubr.f32.mxu0 0.0
  %v1045 = vand.u32 %v649, 4294901760
  %v1046 = vsub.f32 %v649, %v1045
  %v1047 = vand.u32 %v1046, 4294901760
  %1048 = vmatmul.mubr.f32.gmra.mrb[0].mxu0 %v1047
  %v1049 = vpop.f32.mrb[0].mxu0
  %v1050 = vadd.f32 %v951, %v1049
  %v1051 = vpop.f32.mrb[0].mxu0
  %1052 = vdwg.mxu0
  %1053 = vmatprep.subr.mxu0 0.0
  %v1054 = vand.u32 %v20, 4294901760
  %v1055 = vsub.f32 %v20, %v1054
  %v1056 = vand.u32 %v1055, 4294901760
  %1057 = vmatpush1.msra.mxu0 %v1056
  %1058 = vmatprep.subr.mxu0 0.0
  %v1059 = vand.u32 %v21, 4294901760
  %v1060 = vsub.f32 %v21, %v1059
  %v1061 = vand.u32 %v1060, 4294901760
  %1062 = vmatpush1.msra.mxu0 %v1061
  %1063 = vmatprep.subr.mxu0 0.0
  %1064 = vmatpush1.msra.mxu0 0.0
  %1065 = vmatprep.subr.mxu0 0.0
  %1066 = vmatpush1.msra.mxu0 0.0
  %1067 = vmatprep.subr.mxu0 0.0
  %1068 = vmatpush1.msra.mxu0 0.0
  %1069 = vmatprep.subr.mxu0 0.0
  %1070 = vmatpush1.msra.mxu0 0.0
  %1071 = vmatprep.subr.mxu0 0.0
  %1072 = vmatpush1.msra.mxu0 0.0
  %1073 = vmatprep.subr.mxu0 0.0
  %1074 = vmatpush1.msra.mxu0 0.0
  %1075 = vmatprep.subr.mxu0 0.0
  %1076 = vmatpush1.msra.mxu0 0.0
  %1077 = vmatprep.subr.mxu0 0.0
  %1078 = vmatpush1.msra.mxu0 0.0
  %1079 = vmatprep.subr.mxu0 0.0
  %1080 = vmatpush1.msra.mxu0 0.0
  %1081 = vmatprep.subr.mxu0 0.0
  %1082 = vmatpush1.msra.mxu0 0.0
  %1083 = vmatprep.subr.mxu0 0.0
  %1084 = vmatpush1.msra.mxu0 0.0
  %1085 = vmatprep.subr.mxu0 0.0
  %1086 = vmatpush1.msra.mxu0 0.0
  %1087 = vmatprep.subr.mxu0 0.0
  %1088 = vmatpush1.msra.mxu0 0.0
  %1089 = vmatprep.subr.mxu0 0.0
  %1090 = vmatpush1.msra.mxu0 0.0
  %1091 = vmatprep.subr.mxu0 0.0
  %1092 = vmatpush1.msra.mxu0 0.0
  %1093 = vmatprep.subr.mxu0 0.0
  %1094 = vmatpush1.msra.mxu0 0.0
  %1095 = vmatprep.subr.mxu0 0.0
  %1096 = vmatpush1.msra.mxu0 0.0
  %1097 = vmatprep.subr.mxu0 0.0
  %1098 = vmatpush1.msra.mxu0 0.0
  %1099 = vmatprep.subr.mxu0 0.0
  %1100 = vmatpush1.msra.mxu0 0.0
  %1101 = vmatprep.subr.mxu0 0.0
  %1102 = vmatpush1.msra.mxu0 0.0
  %1103 = vmatprep.subr.mxu0 0.0
  %1104 = vmatpush1.msra.mxu0 0.0
  %1105 = vmatprep.subr.mxu0 0.0
  %1106 = vmatpush1.msra.mxu0 0.0
  %1107 = vmatprep.subr.mxu0 0.0
  %1108 = vmatpush1.msra.mxu0 0.0
  %1109 = vmatprep.subr.mxu0 0.0
  %1110 = vmatpush1.msra.mxu0 0.0
  %1111 = vmatprep.subr.mxu0 0.0
  %1112 = vmatpush1.msra.mxu0 0.0
  %1113 = vmatprep.subr.mxu0 0.0
  %1114 = vmatpush1.msra.mxu0 0.0
  %1115 = vmatprep.subr.mxu0 0.0
  %1116 = vmatpush1.msra.mxu0 0.0
  %1117 = vmatprep.subr.mxu0 0.0
  %1118 = vmatpush1.msra.mxu0 0.0
  %1119 = vmatprep.subr.mxu0 0.0
  %1120 = vmatpush1.msra.mxu0 0.0
  %1121 = vmatprep.subr.mxu0 0.0
  %1122 = vmatpush1.msra.mxu0 0.0
  %1123 = vmatprep.mubr.f32.mxu0 0.0
  %v1124 = vand.u32 %v640, 4294901760
  %1125 = vmatmul.mubr.f32.gmra.mrb[0].mxu0 %v1124
  %v1126 = vpop.f32.mrb[0].mxu0
  %v1127 = vadd.f32 %v1026, %v1126
  %v1128 = vpop.f32.mrb[0].mxu0
  %1129 = vmatprep.mubr.f32.mxu0 0.0
  %v1130 = vand.u32 %v643, 4294901760
  %1131 = vmatmul.mubr.f32.gmra.mrb[0].mxu0 %v1130
  %v1132 = vpop.f32.mrb[0].mxu0
  %v1133 = vadd.f32 %v1034, %v1132
  %v1134 = vpop.f32.mrb[0].mxu0
  %1135 = vmatprep.mubr.f32.mxu0 0.0
  %v1136 = vand.u32 %v646, 4294901760
  %1137 = vmatmul.mubr.f32.gmra.mrb[0].mxu0 %v1136
  %v1138 = vpop.f32.mrb[0].mxu0
  %v1139 = vadd.f32 %v1042, %v1138
  %v1140 = vpop.f32.mrb[0].mxu0
  %1141 = vmatprep.mubr.f32.mxu0 0.0
  %v1142 = vand.u32 %v649, 4294901760
  %1143 = vmatmul.mubr.f32.gmra.mrb[0].mxu0 %v1142
  %v1144 = vpop.f32.mrb[0].mxu0
  %v1145 = vadd.f32 %v1050, %v1144
  %v1146 = vpop.f32.mrb[0].mxu0
  %1147 = vdwg.mxu0
  %1148 = vmatprep.subr.mxu0 0.0
  %v1149 = vand.u32 %v20, 4294901760
  %1150 = vmatpush1.msra.mxu0 %v1149
  %1151 = vmatprep.subr.mxu0 0.0
  %v1152 = vand.u32 %v21, 4294901760
  %1153 = vmatpush1.msra.mxu0 %v1152
  %1154 = vmatprep.subr.mxu0 0.0
  %1155 = vmatpush1.msra.mxu0 0.0
  %1156 = vmatprep.subr.mxu0 0.0
  %1157 = vmatpush1.msra.mxu0 0.0
  %1158 = vmatprep.subr.mxu0 0.0
  %1159 = vmatpush1.msra.mxu0 0.0
  %1160 = vmatprep.subr.mxu0 0.0
  %1161 = vmatpush1.msra.mxu0 0.0
  %1162 = vmatprep.subr.mxu0 0.0
  %1163 = vmatpush1.msra.mxu0 0.0
  %1164 = vmatprep.subr.mxu0 0.0
  %1165 = vmatpush1.msra.mxu0 0.0
  %1166 = vmatprep.subr.mxu0 0.0
  %1167 = vmatpush1.msra.mxu0 0.0
  %1168 = vmatprep.subr.mxu0 0.0
  %1169 = vmatpush1.msra.mxu0 0.0
  %1170 = vmatprep.subr.mxu0 0.0
  %1171 = vmatpush1.msra.mxu0 0.0
  %1172 = vmatprep.subr.mxu0 0.0
  %1173 = vmatpush1.msra.mxu0 0.0
  %1174 = vmatprep.subr.mxu0 0.0
  %1175 = vmatpush1.msra.mxu0 0.0
  %1176 = vmatprep.subr.mxu0 0.0
  %1177 = vmatpush1.msra.mxu0 0.0
  %1178 = vmatprep.subr.mxu0 0.0
  %1179 = vmatpush1.msra.mxu0 0.0
  %1180 = vmatprep.subr.mxu0 0.0
  %1181 = vmatpush1.msra.mxu0 0.0
  %1182 = vmatprep.subr.mxu0 0.0
  %1183 = vmatpush1.msra.mxu0 0.0
  %1184 = vmatprep.subr.mxu0 0.0
  %1185 = vmatpush1.msra.mxu0 0.0
  %1186 = vmatprep.subr.mxu0 0.0
  %1187 = vmatpush1.msra.mxu0 0.0
  %1188 = vmatprep.subr.mxu0 0.0
  %1189 = vmatpush1.msra.mxu0 0.0
  %1190 = vmatprep.subr.mxu0 0.0
  %1191 = vmatpush1.msra.mxu0 0.0
  %1192 = vmatprep.subr.mxu0 0.0
  %1193 = vmatpush1.msra.mxu0 0.0
  %1194 = vmatprep.subr.mxu0 0.0
  %1195 = vmatpush1.msra.mxu0 0.0
  %1196 = vmatprep.subr.mxu0 0.0
  %1197 = vmatpush1.msra.mxu0 0.0
  %1198 = vmatprep.subr.mxu0 0.0
  %1199 = vmatpush1.msra.mxu0 0.0
  %1200 = vmatprep.subr.mxu0 0.0
  %1201 = vmatpush1.msra.mxu0 0.0
  %1202 = vmatprep.subr.mxu0 0.0
  %1203 = vmatpush1.msra.mxu0 0.0
  %1204 = vmatprep.subr.mxu0 0.0
  %1205 = vmatpush1.msra.mxu0 0.0
  %1206 = vmatprep.subr.mxu0 0.0
  %1207 = vmatpush1.msra.mxu0 0.0
  %1208 = vmatprep.subr.mxu0 0.0
  %1209 = vmatpush1.msra.mxu0 0.0
  %1210 = vmatprep.subr.mxu0 0.0
  %1211 = vmatpush1.msra.mxu0 0.0
  %1212 = vmatprep.subr.mxu0 0.0
  %1213 = vmatpush1.msra.mxu0 0.0
  %1214 = vmatprep.mubr.f32.mxu0 0.0
  %v1215 = vand.u32 %v640, 4294901760
  %1216 = vmatmul.mubr.f32.gmra.mrb[0].mxu0 %v1215
  %v1217 = vpop.f32.mrb[0].mxu0
  %v1218 = vadd.f32 %v1127, %v1217
  %v1219 = vpop.f32.mrb[0].mxu0
  %1220 = vmatprep.mubr.f32.mxu0 0.0
  %v1221 = vand.u32 %v643, 4294901760
  %1222 = vmatmul.mubr.f32.gmra.mrb[0].mxu0 %v1221
  %v1223 = vpop.f32.mrb[0].mxu0
  %v1224 = vadd.f32 %v1133, %v1223
  %v1225 = vpop.f32.mrb[0].mxu0
  %1226 = vmatprep.mubr.f32.mxu0 0.0
  %v1227 = vand.u32 %v646, 4294901760
  %1228 = vmatmul.mubr.f32.gmra.mrb[0].mxu0 %v1227
  %v1229 = vpop.f32.mrb[0].mxu0
  %v1230 = vadd.f32 %v1139, %v1229
  %v1231 = vpop.f32.mrb[0].mxu0
  %1232 = vmatprep.mubr.f32.mxu0 0.0
  %v1233 = vand.u32 %v649, 4294901760
  %1234 = vmatmul.mubr.f32.gmra.mrb[0].mxu0 %v1233
  %v1235 = vpop.f32.mrb[0].mxu0
  %v1236 = vadd.f32 %v1145, %v1235
  %v1237 = vpop.f32.mrb[0].mxu0
  %1238 = vdwg.mxu0
  %v1239 = vxor.u32 %v1218, 2147483648
  %v1240 = vxor.u32 %v1224, 2147483648
  %v1241 = vxor.u32 %v1230, 2147483648
  %v1242 = vxor.u32 %v1236, 2147483648
  %v1243 = vmul.f32 %v1239, 1.442695
  %v1244 = vpow.pop %v1243
  %v1245 = vmul.f32 %v1240, 1.442695
  %v1246 = vpow.pop %v1245
  %v1247 = vmul.f32 %v1241, 1.442695
  %v1248 = vpow.pop %v1247
  %v1249 = vmul.f32 %v1242, 1.442695
  %v1250 = vpow.pop %v1249
  %v1251 = vadd.f32 %v1244, 1.0
  %v1252 = vadd.f32 %v1246, 1.0
  %v1253 = vadd.f32 %v1248, 1.0
  %v1254 = vadd.f32 %v1250, 1.0
  %v1255 = vrcp.pop %v1251
  %v1256 = vmul.f32 1.0, %v1255
  %v1257 = vrcp.pop %v1252
  %v1258 = vmul.f32 1.0, %v1257
  %v1259 = vrcp.pop %v1253
  %v1260 = vmul.f32 1.0, %v1259
  %v1261 = vrcp.pop %v1254
  %v1262 = vmul.f32 1.0, %v1261
  %1263 = vmatprep.subr.mxu0 0.0
  %v1264 = vand.u32 %v35, 4294901760
  %1265 = vmatpush1.msra.mxu0 %v1264
  %1266 = vmatprep.subr.mxu0 0.0
  %v1267 = vand.u32 %v37, 4294901760
  %1268 = vmatpush1.msra.mxu0 %v1267
  %1269 = vmatprep.subr.mxu0 0.0
  %1270 = vmatpush1.msra.mxu0 0.0
  %1271 = vmatprep.subr.mxu0 0.0
  %1272 = vmatpush1.msra.mxu0 0.0
  %1273 = vmatprep.subr.mxu0 0.0
  %1274 = vmatpush1.msra.mxu0 0.0
  %1275 = vmatprep.subr.mxu0 0.0
  %1276 = vmatpush1.msra.mxu0 0.0
  %1277 = vmatprep.subr.mxu0 0.0
  %1278 = vmatpush1.msra.mxu0 0.0
  %1279 = vmatprep.subr.mxu0 0.0
  %1280 = vmatpush1.msra.mxu0 0.0
  %1281 = vmatprep.subr.mxu0 0.0
  %1282 = vmatpush1.msra.mxu0 0.0
  %1283 = vmatprep.subr.mxu0 0.0
  %1284 = vmatpush1.msra.mxu0 0.0
  %1285 = vmatprep.subr.mxu0 0.0
  %1286 = vmatpush1.msra.mxu0 0.0
  %1287 = vmatprep.subr.mxu0 0.0
  %1288 = vmatpush1.msra.mxu0 0.0
  %1289 = vmatprep.subr.mxu0 0.0
  %1290 = vmatpush1.msra.mxu0 0.0
  %1291 = vmatprep.subr.mxu0 0.0
  %1292 = vmatpush1.msra.mxu0 0.0
  %1293 = vmatprep.subr.mxu0 0.0
  %1294 = vmatpush1.msra.mxu0 0.0
  %1295 = vmatprep.subr.mxu0 0.0
  %1296 = vmatpush1.msra.mxu0 0.0
  %1297 = vmatprep.subr.mxu0 0.0
  %1298 = vmatpush1.msra.mxu0 0.0
  %1299 = vmatprep.subr.mxu0 0.0
  %1300 = vmatpush1.msra.mxu0 0.0
  %1301 = vmatprep.subr.mxu0 0.0
  %1302 = vmatpush1.msra.mxu0 0.0
  %1303 = vmatprep.subr.mxu0 0.0
  %1304 = vmatpush1.msra.mxu0 0.0
  %1305 = vmatprep.subr.mxu0 0.0
  %1306 = vmatpush1.msra.mxu0 0.0
  %1307 = vmatprep.subr.mxu0 0.0
  %1308 = vmatpush1.msra.mxu0 0.0
  %1309 = vmatprep.subr.mxu0 0.0
  %1310 = vmatpush1.msra.mxu0 0.0
  %1311 = vmatprep.subr.mxu0 0.0
  %1312 = vmatpush1.msra.mxu0 0.0
  %1313 = vmatprep.subr.mxu0 0.0
  %1314 = vmatpush1.msra.mxu0 0.0
  %1315 = vmatprep.subr.mxu0 0.0
  %1316 = vmatpush1.msra.mxu0 0.0
  %1317 = vmatprep.subr.mxu0 0.0
  %1318 = vmatpush1.msra.mxu0 0.0
  %1319 = vmatprep.subr.mxu0 0.0
  %1320 = vmatpush1.msra.mxu0 0.0
  %1321 = vmatprep.subr.mxu0 0.0
  %1322 = vmatpush1.msra.mxu0 0.0
  %1323 = vmatprep.subr.mxu0 0.0
  %1324 = vmatpush1.msra.mxu0 0.0
  %1325 = vmatprep.subr.mxu0 0.0
  %1326 = vmatpush1.msra.mxu0 0.0
  %1327 = vmatprep.subr.mxu0 0.0
  %1328 = vmatpush1.msra.mxu0 0.0
  %1329 = vmatprep.mubr.f32.mxu0 0.0
  %v1330 = vand.u32 %v40, 4294901760
  %v1331 = vsub.f32 %v40, %v1330
  %v1332 = vand.u32 %v1331, 4294901760
  %v1333 = vsub.f32 %v1331, %v1332
  %v1334 = vand.u32 %v1333, 4294901760
  %1335 = vmatmul.mubr.f32.gmra.mrb[0].mxu0 %v1334
  %v1336 = vpop.f32.mrb[0].mxu0
  %v1337 = vadd.f32 0.0, %v1336
  %v1338 = vpop.f32.mrb[0].mxu0
  %1339 = vmatprep.mubr.f32.mxu0 0.0
  %v1340 = vand.u32 %v43, 4294901760
  %v1341 = vsub.f32 %v43, %v1340
  %v1342 = vand.u32 %v1341, 4294901760
  %v1343 = vsub.f32 %v1341, %v1342
  %v1344 = vand.u32 %v1343, 4294901760
  %1345 = vmatmul.mubr.f32.gmra.mrb[0].mxu0 %v1344
  %v1346 = vpop.f32.mrb[0].mxu0
  %v1347 = vadd.f32 0.0, %v1346
  %v1348 = vpop.f32.mrb[0].mxu0
  %1349 = vmatprep.mubr.f32.mxu0 0.0
  %v1350 = vand.u32 %v46, 4294901760
  %v1351 = vsub.f32 %v46, %v1350
  %v1352 = vand.u32 %v1351, 4294901760
  %v1353 = vsub.f32 %v1351, %v1352
  %v1354 = vand.u32 %v1353, 4294901760
  %1355 = vmatmul.mubr.f32.gmra.mrb[0].mxu0 %v1354
  %v1356 = vpop.f32.mrb[0].mxu0
  %v1357 = vadd.f32 0.0, %v1356
  %v1358 = vpop.f32.mrb[0].mxu0
  %1359 = vmatprep.mubr.f32.mxu0 0.0
  %v1360 = vand.u32 %v49, 4294901760
  %v1361 = vsub.f32 %v49, %v1360
  %v1362 = vand.u32 %v1361, 4294901760
  %v1363 = vsub.f32 %v1361, %v1362
  %v1364 = vand.u32 %v1363, 4294901760
  %1365 = vmatmul.mubr.f32.gmra.mrb[0].mxu0 %v1364
  %v1366 = vpop.f32.mrb[0].mxu0
  %v1367 = vadd.f32 0.0, %v1366
  %v1368 = vpop.f32.mrb[0].mxu0
  %1369 = vdwg.mxu0
  %1370 = vmatprep.subr.mxu0 0.0
  %v1371 = vand.u32 %v35, 4294901760
  %v1372 = vsub.f32 %v35, %v1371
  %v1373 = vand.u32 %v1372, 4294901760
  %v1374 = vsub.f32 %v1372, %v1373
  %v1375 = vand.u32 %v1374, 4294901760
  %1376 = vmatpush1.msra.mxu0 %v1375
  %1377 = vmatprep.subr.mxu0 0.0
  %v1378 = vand.u32 %v37, 4294901760
  %v1379 = vsub.f32 %v37, %v1378
  %v1380 = vand.u32 %v1379, 4294901760
  %v1381 = vsub.f32 %v1379, %v1380
  %v1382 = vand.u32 %v1381, 4294901760
  %1383 = vmatpush1.msra.mxu0 %v1382
  %1384 = vmatprep.subr.mxu0 0.0
  %1385 = vmatpush1.msra.mxu0 0.0
  %1386 = vmatprep.subr.mxu0 0.0
  %1387 = vmatpush1.msra.mxu0 0.0
  %1388 = vmatprep.subr.mxu0 0.0
  %1389 = vmatpush1.msra.mxu0 0.0
  %1390 = vmatprep.subr.mxu0 0.0
  %1391 = vmatpush1.msra.mxu0 0.0
  %1392 = vmatprep.subr.mxu0 0.0
  %1393 = vmatpush1.msra.mxu0 0.0
  %1394 = vmatprep.subr.mxu0 0.0
  %1395 = vmatpush1.msra.mxu0 0.0
  %1396 = vmatprep.subr.mxu0 0.0
  %1397 = vmatpush1.msra.mxu0 0.0
  %1398 = vmatprep.subr.mxu0 0.0
  %1399 = vmatpush1.msra.mxu0 0.0
  %1400 = vmatprep.subr.mxu0 0.0
  %1401 = vmatpush1.msra.mxu0 0.0
  %1402 = vmatprep.subr.mxu0 0.0
  %1403 = vmatpush1.msra.mxu0 0.0
  %1404 = vmatprep.subr.mxu0 0.0
  %1405 = vmatpush1.msra.mxu0 0.0
  %1406 = vmatprep.subr.mxu0 0.0
  %1407 = vmatpush1.msra.mxu0 0.0
  %1408 = vmatprep.subr.mxu0 0.0
  %1409 = vmatpush1.msra.mxu0 0.0
  %1410 = vmatprep.subr.mxu0 0.0
  %1411 = vmatpush1.msra.mxu0 0.0
  %1412 = vmatprep.subr.mxu0 0.0
  %1413 = vmatpush1.msra.mxu0 0.0
  %1414 = vmatprep.subr.mxu0 0.0
  %1415 = vmatpush1.msra.mxu0 0.0
  %1416 = vmatprep.subr.mxu0 0.0
  %1417 = vmatpush1.msra.mxu0 0.0
  %1418 = vmatprep.subr.mxu0 0.0
  %1419 = vmatpush1.msra.mxu0 0.0
  %1420 = vmatprep.subr.mxu0 0.0
  %1421 = vmatpush1.msra.mxu0 0.0
  %1422 = vmatprep.subr.mxu0 0.0
  %1423 = vmatpush1.msra.mxu0 0.0
  %1424 = vmatprep.subr.mxu0 0.0
  %1425 = vmatpush1.msra.mxu0 0.0
  %1426 = vmatprep.subr.mxu0 0.0
  %1427 = vmatpush1.msra.mxu0 0.0
  %1428 = vmatprep.subr.mxu0 0.0
  %1429 = vmatpush1.msra.mxu0 0.0
  %1430 = vmatprep.subr.mxu0 0.0
  %1431 = vmatpush1.msra.mxu0 0.0
  %1432 = vmatprep.subr.mxu0 0.0
  %1433 = vmatpush1.msra.mxu0 0.0
  %1434 = vmatprep.subr.mxu0 0.0
  %1435 = vmatpush1.msra.mxu0 0.0
  %1436 = vmatprep.subr.mxu0 0.0
  %1437 = vmatpush1.msra.mxu0 0.0
  %1438 = vmatprep.subr.mxu0 0.0
  %1439 = vmatpush1.msra.mxu0 0.0
  %1440 = vmatprep.subr.mxu0 0.0
  %1441 = vmatpush1.msra.mxu0 0.0
  %1442 = vmatprep.subr.mxu0 0.0
  %1443 = vmatpush1.msra.mxu0 0.0
  %1444 = vmatprep.mubr.f32.mxu0 0.0
  %v1445 = vand.u32 %v40, 4294901760
  %1446 = vmatmul.mubr.f32.gmra.mrb[0].mxu0 %v1445
  %v1447 = vpop.f32.mrb[0].mxu0
  %v1448 = vadd.f32 %v1337, %v1447
  %v1449 = vpop.f32.mrb[0].mxu0
  %1450 = vmatprep.mubr.f32.mxu0 0.0
  %v1451 = vand.u32 %v43, 4294901760
  %1452 = vmatmul.mubr.f32.gmra.mrb[0].mxu0 %v1451
  %v1453 = vpop.f32.mrb[0].mxu0
  %v1454 = vadd.f32 %v1347, %v1453
  %v1455 = vpop.f32.mrb[0].mxu0
  %1456 = vmatprep.mubr.f32.mxu0 0.0
  %v1457 = vand.u32 %v46, 4294901760
  %1458 = vmatmul.mubr.f32.gmra.mrb[0].mxu0 %v1457
  %v1459 = vpop.f32.mrb[0].mxu0
  %v1460 = vadd.f32 %v1357, %v1459
  %v1461 = vpop.f32.mrb[0].mxu0
  %1462 = vmatprep.mubr.f32.mxu0 0.0
  %v1463 = vand.u32 %v49, 4294901760
  %1464 = vmatmul.mubr.f32.gmra.mrb[0].mxu0 %v1463
  %v1465 = vpop.f32.mrb[0].mxu0
  %v1466 = vadd.f32 %v1367, %v1465
  %v1467 = vpop.f32.mrb[0].mxu0
  %1468 = vdwg.mxu0
  %1469 = vmatprep.subr.mxu0 0.0
  %v1470 = vand.u32 %v35, 4294901760
  %v1471 = vsub.f32 %v35, %v1470
  %1472 = vmatpush1.msra.mxu0 %v1471
  %1473 = vmatprep.subr.mxu0 0.0
  %v1474 = vand.u32 %v37, 4294901760
  %v1475 = vsub.f32 %v37, %v1474
  %1476 = vmatpush1.msra.mxu0 %v1475
  %1477 = vmatprep.subr.mxu0 0.0
  %1478 = vmatpush1.msra.mxu0 0.0
  %1479 = vmatprep.subr.mxu0 0.0
  %1480 = vmatpush1.msra.mxu0 0.0
  %1481 = vmatprep.subr.mxu0 0.0
  %1482 = vmatpush1.msra.mxu0 0.0
  %1483 = vmatprep.subr.mxu0 0.0
  %1484 = vmatpush1.msra.mxu0 0.0
  %1485 = vmatprep.subr.mxu0 0.0
  %1486 = vmatpush1.msra.mxu0 0.0
  %1487 = vmatprep.subr.mxu0 0.0
  %1488 = vmatpush1.msra.mxu0 0.0
  %1489 = vmatprep.subr.mxu0 0.0
  %1490 = vmatpush1.msra.mxu0 0.0
  %1491 = vmatprep.subr.mxu0 0.0
  %1492 = vmatpush1.msra.mxu0 0.0
  %1493 = vmatprep.subr.mxu0 0.0
  %1494 = vmatpush1.msra.mxu0 0.0
  %1495 = vmatprep.subr.mxu0 0.0
  %1496 = vmatpush1.msra.mxu0 0.0
  %1497 = vmatprep.subr.mxu0 0.0
  %1498 = vmatpush1.msra.mxu0 0.0
  %1499 = vmatprep.subr.mxu0 0.0
  %1500 = vmatpush1.msra.mxu0 0.0
  %1501 = vmatprep.subr.mxu0 0.0
  %1502 = vmatpush1.msra.mxu0 0.0
  %1503 = vmatprep.subr.mxu0 0.0
  %1504 = vmatpush1.msra.mxu0 0.0
  %1505 = vmatprep.subr.mxu0 0.0
  %1506 = vmatpush1.msra.mxu0 0.0
  %1507 = vmatprep.subr.mxu0 0.0
  %1508 = vmatpush1.msra.mxu0 0.0
  %1509 = vmatprep.subr.mxu0 0.0
  %1510 = vmatpush1.msra.mxu0 0.0
  %1511 = vmatprep.subr.mxu0 0.0
  %1512 = vmatpush1.msra.mxu0 0.0
  %1513 = vmatprep.subr.mxu0 0.0
  %1514 = vmatpush1.msra.mxu0 0.0
  %1515 = vmatprep.subr.mxu0 0.0
  %1516 = vmatpush1.msra.mxu0 0.0
  %1517 = vmatprep.subr.mxu0 0.0
  %1518 = vmatpush1.msra.mxu0 0.0
  %1519 = vmatprep.subr.mxu0 0.0
  %1520 = vmatpush1.msra.mxu0 0.0
  %1521 = vmatprep.subr.mxu0 0.0
  %1522 = vmatpush1.msra.mxu0 0.0
  %1523 = vmatprep.subr.mxu0 0.0
  %1524 = vmatpush1.msra.mxu0 0.0
  %1525 = vmatprep.subr.mxu0 0.0
  %1526 = vmatpush1.msra.mxu0 0.0
  %1527 = vmatprep.subr.mxu0 0.0
  %1528 = vmatpush1.msra.mxu0 0.0
  %1529 = vmatprep.subr.mxu0 0.0
  %1530 = vmatpush1.msra.mxu0 0.0
  %1531 = vmatprep.subr.mxu0 0.0
  %1532 = vmatpush1.msra.mxu0 0.0
  %1533 = vmatprep.subr.mxu0 0.0
  %1534 = vmatpush1.msra.mxu0 0.0
  %1535 = vmatprep.subr.mxu0 0.0
  %1536 = vmatpush1.msra.mxu0 0.0
  %1537 = vmatprep.mubr.f32.mxu0 0.0
  %v1538 = vand.u32 %v40, 4294901760
  %v1539 = vsub.f32 %v40, %v1538
  %1540 = vmatmul.mubr.f32.gmra.mrb[0].mxu0 %v1539
  %v1541 = vpop.f32.mrb[0].mxu0
  %v1542 = vadd.f32 %v1448, %v1541
  %v1543 = vpop.f32.mrb[0].mxu0
  %1544 = vmatprep.mubr.f32.mxu0 0.0
  %v1545 = vand.u32 %v43, 4294901760
  %v1546 = vsub.f32 %v43, %v1545
  %1547 = vmatmul.mubr.f32.gmra.mrb[0].mxu0 %v1546
  %v1548 = vpop.f32.mrb[0].mxu0
  %v1549 = vadd.f32 %v1454, %v1548
  %v1550 = vpop.f32.mrb[0].mxu0
  %1551 = vmatprep.mubr.f32.mxu0 0.0
  %v1552 = vand.u32 %v46, 4294901760
  %v1553 = vsub.f32 %v46, %v1552
  %1554 = vmatmul.mubr.f32.gmra.mrb[0].mxu0 %v1553
  %v1555 = vpop.f32.mrb[0].mxu0
  %v1556 = vadd.f32 %v1460, %v1555
  %v1557 = vpop.f32.mrb[0].mxu0
  %1558 = vmatprep.mubr.f32.mxu0 0.0
  %v1559 = vand.u32 %v49, 4294901760
  %v1560 = vsub.f32 %v49, %v1559
  %1561 = vmatmul.mubr.f32.gmra.mrb[0].mxu0 %v1560
  %v1562 = vpop.f32.mrb[0].mxu0
  %v1563 = vadd.f32 %v1466, %v1562
  %v1564 = vpop.f32.mrb[0].mxu0
  %1565 = vdwg.mxu0
  %1566 = vmatprep.subr.mxu0 0.0
  %v1567 = vand.u32 %v35, 4294901760
  %1568 = vmatpush1.msra.mxu0 %v1567
  %1569 = vmatprep.subr.mxu0 0.0
  %v1570 = vand.u32 %v37, 4294901760
  %1571 = vmatpush1.msra.mxu0 %v1570
  %1572 = vmatprep.subr.mxu0 0.0
  %1573 = vmatpush1.msra.mxu0 0.0
  %1574 = vmatprep.subr.mxu0 0.0
  %1575 = vmatpush1.msra.mxu0 0.0
  %1576 = vmatprep.subr.mxu0 0.0
  %1577 = vmatpush1.msra.mxu0 0.0
  %1578 = vmatprep.subr.mxu0 0.0
  %1579 = vmatpush1.msra.mxu0 0.0
  %1580 = vmatprep.subr.mxu0 0.0
  %1581 = vmatpush1.msra.mxu0 0.0
  %1582 = vmatprep.subr.mxu0 0.0
  %1583 = vmatpush1.msra.mxu0 0.0
  %1584 = vmatprep.subr.mxu0 0.0
  %1585 = vmatpush1.msra.mxu0 0.0
  %1586 = vmatprep.subr.mxu0 0.0
  %1587 = vmatpush1.msra.mxu0 0.0
  %1588 = vmatprep.subr.mxu0 0.0
  %1589 = vmatpush1.msra.mxu0 0.0
  %1590 = vmatprep.subr.mxu0 0.0
  %1591 = vmatpush1.msra.mxu0 0.0
  %1592 = vmatprep.subr.mxu0 0.0
  %1593 = vmatpush1.msra.mxu0 0.0
  %1594 = vmatprep.subr.mxu0 0.0
  %1595 = vmatpush1.msra.mxu0 0.0
  %1596 = vmatprep.subr.mxu0 0.0
  %1597 = vmatpush1.msra.mxu0 0.0
  %1598 = vmatprep.subr.mxu0 0.0
  %1599 = vmatpush1.msra.mxu0 0.0
  %1600 = vmatprep.subr.mxu0 0.0
  %1601 = vmatpush1.msra.mxu0 0.0
  %1602 = vmatprep.subr.mxu0 0.0
  %1603 = vmatpush1.msra.mxu0 0.0
  %1604 = vmatprep.subr.mxu0 0.0
  %1605 = vmatpush1.msra.mxu0 0.0
  %1606 = vmatprep.subr.mxu0 0.0
  %1607 = vmatpush1.msra.mxu0 0.0
  %1608 = vmatprep.subr.mxu0 0.0
  %1609 = vmatpush1.msra.mxu0 0.0
  %1610 = vmatprep.subr.mxu0 0.0
  %1611 = vmatpush1.msra.mxu0 0.0
  %1612 = vmatprep.subr.mxu0 0.0
  %1613 = vmatpush1.msra.mxu0 0.0
  %1614 = vmatprep.subr.mxu0 0.0
  %1615 = vmatpush1.msra.mxu0 0.0
  %1616 = vmatprep.subr.mxu0 0.0
  %1617 = vmatpush1.msra.mxu0 0.0
  %1618 = vmatprep.subr.mxu0 0.0
  %1619 = vmatpush1.msra.mxu0 0.0
  %1620 = vmatprep.subr.mxu0 0.0
  %1621 = vmatpush1.msra.mxu0 0.0
  %1622 = vmatprep.subr.mxu0 0.0
  %1623 = vmatpush1.msra.mxu0 0.0
  %1624 = vmatprep.subr.mxu0 0.0
  %1625 = vmatpush1.msra.mxu0 0.0
  %1626 = vmatprep.subr.mxu0 0.0
  %1627 = vmatpush1.msra.mxu0 0.0
  %1628 = vmatprep.subr.mxu0 0.0
  %1629 = vmatpush1.msra.mxu0 0.0
  %1630 = vmatprep.subr.mxu0 0.0
  %1631 = vmatpush1.msra.mxu0 0.0
  %1632 = vmatprep.mubr.f32.mxu0 0.0
  %v1633 = vand.u32 %v40, 4294901760
  %v1634 = vsub.f32 %v40, %v1633
  %v1635 = vand.u32 %v1634, 4294901760
  %1636 = vmatmul.mubr.f32.gmra.mrb[0].mxu0 %v1635
  %v1637 = vpop.f32.mrb[0].mxu0
  %v1638 = vadd.f32 %v1542, %v1637
  %v1639 = vpop.f32.mrb[0].mxu0
  %1640 = vmatprep.mubr.f32.mxu0 0.0
  %v1641 = vand.u32 %v43, 4294901760
  %v1642 = vsub.f32 %v43, %v1641
  %v1643 = vand.u32 %v1642, 4294901760
  %1644 = vmatmul.mubr.f32.gmra.mrb[0].mxu0 %v1643
  %v1645 = vpop.f32.mrb[0].mxu0
  %v1646 = vadd.f32 %v1549, %v1645
  %v1647 = vpop.f32.mrb[0].mxu0
  %1648 = vmatprep.mubr.f32.mxu0 0.0
  %v1649 = vand.u32 %v46, 4294901760
  %v1650 = vsub.f32 %v46, %v1649
  %v1651 = vand.u32 %v1650, 4294901760
  %1652 = vmatmul.mubr.f32.gmra.mrb[0].mxu0 %v1651
  %v1653 = vpop.f32.mrb[0].mxu0
  %v1654 = vadd.f32 %v1556, %v1653
  %v1655 = vpop.f32.mrb[0].mxu0
  %1656 = vmatprep.mubr.f32.mxu0 0.0
  %v1657 = vand.u32 %v49, 4294901760
  %v1658 = vsub.f32 %v49, %v1657
  %v1659 = vand.u32 %v1658, 4294901760
  %1660 = vmatmul.mubr.f32.gmra.mrb[0].mxu0 %v1659
  %v1661 = vpop.f32.mrb[0].mxu0
  %v1662 = vadd.f32 %v1563, %v1661
  %v1663 = vpop.f32.mrb[0].mxu0
  %1664 = vdwg.mxu0
  %1665 = vmatprep.subr.mxu0 0.0
  %v1666 = vand.u32 %v35, 4294901760
  %v1667 = vsub.f32 %v35, %v1666
  %v1668 = vand.u32 %v1667, 4294901760
  %1669 = vmatpush1.msra.mxu0 %v1668
  %1670 = vmatprep.subr.mxu0 0.0
  %v1671 = vand.u32 %v37, 4294901760
  %v1672 = vsub.f32 %v37, %v1671
  %v1673 = vand.u32 %v1672, 4294901760
  %1674 = vmatpush1.msra.mxu0 %v1673
  %1675 = vmatprep.subr.mxu0 0.0
  %1676 = vmatpush1.msra.mxu0 0.0
  %1677 = vmatprep.subr.mxu0 0.0
  %1678 = vmatpush1.msra.mxu0 0.0
  %1679 = vmatprep.subr.mxu0 0.0
  %1680 = vmatpush1.msra.mxu0 0.0
  %1681 = vmatprep.subr.mxu0 0.0
  %1682 = vmatpush1.msra.mxu0 0.0
  %1683 = vmatprep.subr.mxu0 0.0
  %1684 = vmatpush1.msra.mxu0 0.0
  %1685 = vmatprep.subr.mxu0 0.0
  %1686 = vmatpush1.msra.mxu0 0.0
  %1687 = vmatprep.subr.mxu0 0.0
  %1688 = vmatpush1.msra.mxu0 0.0
  %1689 = vmatprep.subr.mxu0 0.0
  %1690 = vmatpush1.msra.mxu0 0.0
  %1691 = vmatprep.subr.mxu0 0.0
  %1692 = vmatpush1.msra.mxu0 0.0
  %1693 = vmatprep.subr.mxu0 0.0
  %1694 = vmatpush1.msra.mxu0 0.0
  %1695 = vmatprep.subr.mxu0 0.0
  %1696 = vmatpush1.msra.mxu0 0.0
  %1697 = vmatprep.subr.mxu0 0.0
  %1698 = vmatpush1.msra.mxu0 0.0
  %1699 = vmatprep.subr.mxu0 0.0
  %1700 = vmatpush1.msra.mxu0 0.0
  %1701 = vmatprep.subr.mxu0 0.0
  %1702 = vmatpush1.msra.mxu0 0.0
  %1703 = vmatprep.subr.mxu0 0.0
  %1704 = vmatpush1.msra.mxu0 0.0
  %1705 = vmatprep.subr.mxu0 0.0
  %1706 = vmatpush1.msra.mxu0 0.0
  %1707 = vmatprep.subr.mxu0 0.0
  %1708 = vmatpush1.msra.mxu0 0.0
  %1709 = vmatprep.subr.mxu0 0.0
  %1710 = vmatpush1.msra.mxu0 0.0
  %1711 = vmatprep.subr.mxu0 0.0
  %1712 = vmatpush1.msra.mxu0 0.0
  %1713 = vmatprep.subr.mxu0 0.0
  %1714 = vmatpush1.msra.mxu0 0.0
  %1715 = vmatprep.subr.mxu0 0.0
  %1716 = vmatpush1.msra.mxu0 0.0
  %1717 = vmatprep.subr.mxu0 0.0
  %1718 = vmatpush1.msra.mxu0 0.0
  %1719 = vmatprep.subr.mxu0 0.0
  %1720 = vmatpush1.msra.mxu0 0.0
  %1721 = vmatprep.subr.mxu0 0.0
  %1722 = vmatpush1.msra.mxu0 0.0
  %1723 = vmatprep.subr.mxu0 0.0
  %1724 = vmatpush1.msra.mxu0 0.0
  %1725 = vmatprep.subr.mxu0 0.0
  %1726 = vmatpush1.msra.mxu0 0.0
  %1727 = vmatprep.subr.mxu0 0.0
  %1728 = vmatpush1.msra.mxu0 0.0
  %1729 = vmatprep.subr.mxu0 0.0
  %1730 = vmatpush1.msra.mxu0 0.0
  %1731 = vmatprep.subr.mxu0 0.0
  %1732 = vmatpush1.msra.mxu0 0.0
  %1733 = vmatprep.subr.mxu0 0.0
  %1734 = vmatpush1.msra.mxu0 0.0
  %1735 = vmatprep.mubr.f32.mxu0 0.0
  %v1736 = vand.u32 %v40, 4294901760
  %1737 = vmatmul.mubr.f32.gmra.mrb[0].mxu0 %v1736
  %v1738 = vpop.f32.mrb[0].mxu0
  %v1739 = vadd.f32 %v1638, %v1738
  %v1740 = vpop.f32.mrb[0].mxu0
  %1741 = vmatprep.mubr.f32.mxu0 0.0
  %v1742 = vand.u32 %v43, 4294901760
  %1743 = vmatmul.mubr.f32.gmra.mrb[0].mxu0 %v1742
  %v1744 = vpop.f32.mrb[0].mxu0
  %v1745 = vadd.f32 %v1646, %v1744
  %v1746 = vpop.f32.mrb[0].mxu0
  %1747 = vmatprep.mubr.f32.mxu0 0.0
  %v1748 = vand.u32 %v46, 4294901760
  %1749 = vmatmul.mubr.f32.gmra.mrb[0].mxu0 %v1748
  %v1750 = vpop.f32.mrb[0].mxu0
  %v1751 = vadd.f32 %v1654, %v1750
  %v1752 = vpop.f32.mrb[0].mxu0
  %1753 = vmatprep.mubr.f32.mxu0 0.0
  %v1754 = vand.u32 %v49, 4294901760
  %1755 = vmatmul.mubr.f32.gmra.mrb[0].mxu0 %v1754
  %v1756 = vpop.f32.mrb[0].mxu0
  %v1757 = vadd.f32 %v1662, %v1756
  %v1758 = vpop.f32.mrb[0].mxu0
  %1759 = vdwg.mxu0
  %1760 = vmatprep.subr.mxu0 0.0
  %v1761 = vand.u32 %v35, 4294901760
  %1762 = vmatpush1.msra.mxu0 %v1761
  %1763 = vmatprep.subr.mxu0 0.0
  %v1764 = vand.u32 %v37, 4294901760
  %1765 = vmatpush1.msra.mxu0 %v1764
  %1766 = vmatprep.subr.mxu0 0.0
  %1767 = vmatpush1.msra.mxu0 0.0
  %1768 = vmatprep.subr.mxu0 0.0
  %1769 = vmatpush1.msra.mxu0 0.0
  %1770 = vmatprep.subr.mxu0 0.0
  %1771 = vmatpush1.msra.mxu0 0.0
  %1772 = vmatprep.subr.mxu0 0.0
  %1773 = vmatpush1.msra.mxu0 0.0
  %1774 = vmatprep.subr.mxu0 0.0
  %1775 = vmatpush1.msra.mxu0 0.0
  %1776 = vmatprep.subr.mxu0 0.0
  %1777 = vmatpush1.msra.mxu0 0.0
  %1778 = vmatprep.subr.mxu0 0.0
  %1779 = vmatpush1.msra.mxu0 0.0
  %1780 = vmatprep.subr.mxu0 0.0
  %1781 = vmatpush1.msra.mxu0 0.0
  %1782 = vmatprep.subr.mxu0 0.0
  %1783 = vmatpush1.msra.mxu0 0.0
  %1784 = vmatprep.subr.mxu0 0.0
  %1785 = vmatpush1.msra.mxu0 0.0
  %1786 = vmatprep.subr.mxu0 0.0
  %1787 = vmatpush1.msra.mxu0 0.0
  %1788 = vmatprep.subr.mxu0 0.0
  %1789 = vmatpush1.msra.mxu0 0.0
  %1790 = vmatprep.subr.mxu0 0.0
  %1791 = vmatpush1.msra.mxu0 0.0
  %1792 = vmatprep.subr.mxu0 0.0
  %1793 = vmatpush1.msra.mxu0 0.0
  %1794 = vmatprep.subr.mxu0 0.0
  %1795 = vmatpush1.msra.mxu0 0.0
  %1796 = vmatprep.subr.mxu0 0.0
  %1797 = vmatpush1.msra.mxu0 0.0
  %1798 = vmatprep.subr.mxu0 0.0
  %1799 = vmatpush1.msra.mxu0 0.0
  %1800 = vmatprep.subr.mxu0 0.0
  %1801 = vmatpush1.msra.mxu0 0.0
  %1802 = vmatprep.subr.mxu0 0.0
  %1803 = vmatpush1.msra.mxu0 0.0
  %1804 = vmatprep.subr.mxu0 0.0
  %1805 = vmatpush1.msra.mxu0 0.0
  %1806 = vmatprep.subr.mxu0 0.0
  %1807 = vmatpush1.msra.mxu0 0.0
  %1808 = vmatprep.subr.mxu0 0.0
  %1809 = vmatpush1.msra.mxu0 0.0
  %1810 = vmatprep.subr.mxu0 0.0
  %1811 = vmatpush1.msra.mxu0 0.0
  %1812 = vmatprep.subr.mxu0 0.0
  %1813 = vmatpush1.msra.mxu0 0.0
  %1814 = vmatprep.subr.mxu0 0.0
  %1815 = vmatpush1.msra.mxu0 0.0
  %1816 = vmatprep.subr.mxu0 0.0
  %1817 = vmatpush1.msra.mxu0 0.0
  %1818 = vmatprep.subr.mxu0 0.0
  %1819 = vmatpush1.msra.mxu0 0.0
  %1820 = vmatprep.subr.mxu0 0.0
  %1821 = vmatpush1.msra.mxu0 0.0
  %1822 = vmatprep.subr.mxu0 0.0
  %1823 = vmatpush1.msra.mxu0 0.0
  %1824 = vmatprep.subr.mxu0 0.0
  %1825 = vmatpush1.msra.mxu0 0.0
  %1826 = vmatprep.mubr.f32.mxu0 0.0
  %v1827 = vand.u32 %v40, 4294901760
  %1828 = vmatmul.mubr.f32.gmra.mrb[0].mxu0 %v1827
  %v1829 = vpop.f32.mrb[0].mxu0
  %v1830 = vadd.f32 %v1739, %v1829
  %v1831 = vpop.f32.mrb[0].mxu0
  %1832 = vmatprep.mubr.f32.mxu0 0.0
  %v1833 = vand.u32 %v43, 4294901760
  %1834 = vmatmul.mubr.f32.gmra.mrb[0].mxu0 %v1833
  %v1835 = vpop.f32.mrb[0].mxu0
  %v1836 = vadd.f32 %v1745, %v1835
  %v1837 = vpop.f32.mrb[0].mxu0
  %1838 = vmatprep.mubr.f32.mxu0 0.0
  %v1839 = vand.u32 %v46, 4294901760
  %1840 = vmatmul.mubr.f32.gmra.mrb[0].mxu0 %v1839
  %v1841 = vpop.f32.mrb[0].mxu0
  %v1842 = vadd.f32 %v1751, %v1841
  %v1843 = vpop.f32.mrb[0].mxu0
  %1844 = vmatprep.mubr.f32.mxu0 0.0
  %v1845 = vand.u32 %v49, 4294901760
  %1846 = vmatmul.mubr.f32.gmra.mrb[0].mxu0 %v1845
  %v1847 = vpop.f32.mrb[0].mxu0
  %v1848 = vadd.f32 %v1757, %v1847
  %v1849 = vpop.f32.mrb[0].mxu0
  %1850 = vdwg.mxu0
  %v1851 = vmul.f32 %v1830, 1.442695
  %v1852 = vpow.pop %v1851
  %v1853 = vmul.f32 %v1836, 1.442695
  %v1854 = vpow.pop %v1853
  %v1855 = vmul.f32 %v1842, 1.442695
  %v1856 = vpow.pop %v1855
  %v1857 = vmul.f32 %v1848, 1.442695
  %v1858 = vpow.pop %v1857
  %v1859 = vsub.f32 %v618, %v1852
  %v1860 = vsub.f32 %v624, %v1854
  %v1861 = vsub.f32 %v630, %v1856
  %v1862 = vsub.f32 %v636, %v1858
  %v1863 = vmul.f32 %v1256, %v1859
  %v1864 = vmul.f32 %v1258, %v1860
  %v1865 = vmul.f32 %v1260, %v1861
  %v1866 = vmul.f32 %v1262, %v1862
  %v1867 = vadd.f32 %v1852, %v1863
  %v1868 = vadd.f32 %v1854, %v1864
  %v1869 = vadd.f32 %v1856, %v1865
  %v1870 = vadd.f32 %v1858, %v1866
  %v1871 = vld [vmem:[%s3] sm:$0xff]
  %v1872 = vld [vmem:[%s4] sm:$0xff]
  %v1873 = vand.u32 2147483647, %v1867
  %v1874 = vand.u32 2147483647, %v1868
  %v1875 = vand.u32 2147483647, %v1869
  %v1876 = vand.u32 2147483647, %v1870
  %v1877 = vadd.f32 %v1873, 1e-10
  %v1878 = vadd.f32 %v1874, 1e-10
  %v1879 = vadd.f32 %v1875, 1e-10
  %v1880 = vadd.f32 %v1876, 1e-10
  %v1881 = vlog2.pop %v1877
  %v1882 = vmul.f32 %v1881, 0.6931472
  %v1883 = vlog2.pop %v1878
  %v1884 = vmul.f32 %v1883, 0.6931472
  %v1885 = vlog2.pop %v1879
  %v1886 = vmul.f32 %v1885, 0.6931472
  %v1887 = vlog2.pop %v1880
  %v1888 = vmul.f32 %v1887, 0.6931472
  %vm1889 = vcmask 261120
  %v1891 = vsel %vm1889, %v1871, 0
  %1893 = vmatprep.subr.mxu0 0.0
  %v1894 = vand.u32 %v1867, 4294901760
  %1895 = vmatpush1.msra.mxu0 %v1894
  %1896 = vmatprep.subr.mxu0 0.0
  %v1897 = vand.u32 %v1868, 4294901760
  %1898 = vmatpush1.msra.mxu0 %v1897
  %1899 = vmatprep.subr.mxu0 0.0
  %v1900 = vand.u32 %v1869, 4294901760
  %1901 = vmatpush1.msra.mxu0 %v1900
  %1902 = vmatprep.subr.mxu0 0.0
  %v1903 = vand.u32 %v1870, 4294901760
  %1904 = vmatpush1.msra.mxu0 %v1903
  %1905 = vmatprep.subr.mxu0 0.0
  %1906 = vmatpush1.msra.mxu0 0.0
  %1907 = vmatprep.subr.mxu0 0.0
  %1908 = vmatpush1.msra.mxu0 0.0
  %1909 = vmatprep.subr.mxu0 0.0
  %1910 = vmatpush1.msra.mxu0 0.0
  %1911 = vmatprep.subr.mxu0 0.0
  %1912 = vmatpush1.msra.mxu0 0.0
  %1913 = vmatprep.subr.mxu0 0.0
  %1914 = vmatpush1.msra.mxu0 0.0
  %1915 = vmatprep.subr.mxu0 0.0
  %1916 = vmatpush1.msra.mxu0 0.0
  %1917 = vmatprep.subr.mxu0 0.0
  %1918 = vmatpush1.msra.mxu0 0.0
  %1919 = vmatprep.subr.mxu0 0.0
  %1920 = vmatpush1.msra.mxu0 0.0
  %1921 = vmatprep.subr.mxu0 0.0
  %1922 = vmatpush1.msra.mxu0 0.0
  %1923 = vmatprep.subr.mxu0 0.0
  %1924 = vmatpush1.msra.mxu0 0.0
  %1925 = vmatprep.subr.mxu0 0.0
  %1926 = vmatpush1.msra.mxu0 0.0
  %1927 = vmatprep.subr.mxu0 0.0
  %1928 = vmatpush1.msra.mxu0 0.0
  %1929 = vmatprep.subr.mxu0 0.0
  %1930 = vmatpush1.msra.mxu0 0.0
  %1931 = vmatprep.subr.mxu0 0.0
  %1932 = vmatpush1.msra.mxu0 0.0
  %1933 = vmatprep.subr.mxu0 0.0
  %1934 = vmatpush1.msra.mxu0 0.0
  %1935 = vmatprep.subr.mxu0 0.0
  %1936 = vmatpush1.msra.mxu0 0.0
  %1937 = vmatprep.subr.mxu0 0.0
  %1938 = vmatpush1.msra.mxu0 0.0
  %1939 = vmatprep.subr.mxu0 0.0
  %1940 = vmatpush1.msra.mxu0 0.0
  %1941 = vmatprep.subr.mxu0 0.0
  %1942 = vmatpush1.msra.mxu0 0.0
  %1943 = vmatprep.subr.mxu0 0.0
  %1944 = vmatpush1.msra.mxu0 0.0
  %1945 = vmatprep.subr.mxu0 0.0
  %1946 = vmatpush1.msra.mxu0 0.0
  %1947 = vmatprep.subr.mxu0 0.0
  %1948 = vmatpush1.msra.mxu0 0.0
  %1949 = vmatprep.subr.mxu0 0.0
  %1950 = vmatpush1.msra.mxu0 0.0
  %1951 = vmatprep.subr.mxu0 0.0
  %1952 = vmatpush1.msra.mxu0 0.0
  %1953 = vmatprep.subr.mxu0 0.0
  %1954 = vmatpush1.msra.mxu0 0.0
  %1955 = vmatprep.subr.mxu0 0.0
  %1956 = vmatpush1.msra.mxu0 0.0
  %1957 = vmatprep.subr.mxu0 0.0
  %1958 = vmatpush1.msra.mxu0 0.0
  %1959 = vmatprep.subr.mxu0 0.0
  %1960 = vmatpush1.msra.mxu0 0.0
  %1961 = vmatprep.mubr.f32.mxu0 0.0
  %v1962 = vand.u32 %v1891, 4294901760
  %v1963 = vsub.f32 %v1891, %v1962
  %v1964 = vand.u32 %v1963, 4294901760
  %v1965 = vsub.f32 %v1963, %v1964
  %v1966 = vand.u32 %v1965, 4294901760
  %1967 = vmatmul.mubr.f32.gmra.mrb[0].mxu0 %v1966
  %v1968 = vpop.f32.mrb[0].mxu0
  %v1969 = vadd.f32 0.0, %v1968
  %v1970 = vpop.f32.mrb[0].mxu0
  %1971 = vdwg.mxu0
  %1972 = vmatprep.subr.mxu0 0.0
  %v1973 = vand.u32 %v1867, 4294901760
  %v1974 = vsub.f32 %v1867, %v1973
  %v1975 = vand.u32 %v1974, 4294901760
  %v1976 = vsub.f32 %v1974, %v1975
  %v1977 = vand.u32 %v1976, 4294901760
  %1978 = vmatpush1.msra.mxu0 %v1977
  %1979 = vmatprep.subr.mxu0 0.0
  %v1980 = vand.u32 %v1868, 4294901760
  %v1981 = vsub.f32 %v1868, %v1980
  %v1982 = vand.u32 %v1981, 4294901760
  %v1983 = vsub.f32 %v1981, %v1982
  %v1984 = vand.u32 %v1983, 4294901760
  %1985 = vmatpush1.msra.mxu0 %v1984
  %1986 = vmatprep.subr.mxu0 0.0
  %v1987 = vand.u32 %v1869, 4294901760
  %v1988 = vsub.f32 %v1869, %v1987
  %v1989 = vand.u32 %v1988, 4294901760
  %v1990 = vsub.f32 %v1988, %v1989
  %v1991 = vand.u32 %v1990, 4294901760
  %1992 = vmatpush1.msra.mxu0 %v1991
  %1993 = vmatprep.subr.mxu0 0.0
  %v1994 = vand.u32 %v1870, 4294901760
  %v1995 = vsub.f32 %v1870, %v1994
  %v1996 = vand.u32 %v1995, 4294901760
  %v1997 = vsub.f32 %v1995, %v1996
  %v1998 = vand.u32 %v1997, 4294901760
  %1999 = vmatpush1.msra.mxu0 %v1998
  %2000 = vmatprep.subr.mxu0 0.0
  %2001 = vmatpush1.msra.mxu0 0.0
  %2002 = vmatprep.subr.mxu0 0.0
  %2003 = vmatpush1.msra.mxu0 0.0
  %2004 = vmatprep.subr.mxu0 0.0
  %2005 = vmatpush1.msra.mxu0 0.0
  %2006 = vmatprep.subr.mxu0 0.0
  %2007 = vmatpush1.msra.mxu0 0.0
  %2008 = vmatprep.subr.mxu0 0.0
  %2009 = vmatpush1.msra.mxu0 0.0
  %2010 = vmatprep.subr.mxu0 0.0
  %2011 = vmatpush1.msra.mxu0 0.0
  %2012 = vmatprep.subr.mxu0 0.0
  %2013 = vmatpush1.msra.mxu0 0.0
  %2014 = vmatprep.subr.mxu0 0.0
  %2015 = vmatpush1.msra.mxu0 0.0
  %2016 = vmatprep.subr.mxu0 0.0
  %2017 = vmatpush1.msra.mxu0 0.0
  %2018 = vmatprep.subr.mxu0 0.0
  %2019 = vmatpush1.msra.mxu0 0.0
  %2020 = vmatprep.subr.mxu0 0.0
  %2021 = vmatpush1.msra.mxu0 0.0
  %2022 = vmatprep.subr.mxu0 0.0
  %2023 = vmatpush1.msra.mxu0 0.0
  %2024 = vmatprep.subr.mxu0 0.0
  %2025 = vmatpush1.msra.mxu0 0.0
  %2026 = vmatprep.subr.mxu0 0.0
  %2027 = vmatpush1.msra.mxu0 0.0
  %2028 = vmatprep.subr.mxu0 0.0
  %2029 = vmatpush1.msra.mxu0 0.0
  %2030 = vmatprep.subr.mxu0 0.0
  %2031 = vmatpush1.msra.mxu0 0.0
  %2032 = vmatprep.subr.mxu0 0.0
  %2033 = vmatpush1.msra.mxu0 0.0
  %2034 = vmatprep.subr.mxu0 0.0
  %2035 = vmatpush1.msra.mxu0 0.0
  %2036 = vmatprep.subr.mxu0 0.0
  %2037 = vmatpush1.msra.mxu0 0.0
  %2038 = vmatprep.subr.mxu0 0.0
  %2039 = vmatpush1.msra.mxu0 0.0
  %2040 = vmatprep.subr.mxu0 0.0
  %2041 = vmatpush1.msra.mxu0 0.0
  %2042 = vmatprep.subr.mxu0 0.0
  %2043 = vmatpush1.msra.mxu0 0.0
  %2044 = vmatprep.subr.mxu0 0.0
  %2045 = vmatpush1.msra.mxu0 0.0
  %2046 = vmatprep.subr.mxu0 0.0
  %2047 = vmatpush1.msra.mxu0 0.0
  %2048 = vmatprep.subr.mxu0 0.0
  %2049 = vmatpush1.msra.mxu0 0.0
  %2050 = vmatprep.subr.mxu0 0.0
  %2051 = vmatpush1.msra.mxu0 0.0
  %2052 = vmatprep.subr.mxu0 0.0
  %2053 = vmatpush1.msra.mxu0 0.0
  %2054 = vmatprep.subr.mxu0 0.0
  %2055 = vmatpush1.msra.mxu0 0.0
  %2056 = vmatprep.mubr.f32.mxu0 0.0
  %v2057 = vand.u32 %v1891, 4294901760
  %2058 = vmatmul.mubr.f32.gmra.mrb[0].mxu0 %v2057
  %v2059 = vpop.f32.mrb[0].mxu0
  %v2060 = vadd.f32 %v1969, %v2059
  %v2061 = vpop.f32.mrb[0].mxu0
  %2062 = vdwg.mxu0
  %2063 = vmatprep.subr.mxu0 0.0
  %v2064 = vand.u32 %v1867, 4294901760
  %v2065 = vsub.f32 %v1867, %v2064
  %2066 = vmatpush1.msra.mxu0 %v2065
  %2067 = vmatprep.subr.mxu0 0.0
  %v2068 = vand.u32 %v1868, 4294901760
  %v2069 = vsub.f32 %v1868, %v2068
  %2070 = vmatpush1.msra.mxu0 %v2069
  %2071 = vmatprep.subr.mxu0 0.0
  %v2072 = vand.u32 %v1869, 4294901760
  %v2073 = vsub.f32 %v1869, %v2072
  %2074 = vmatpush1.msra.mxu0 %v2073
  %2075 = vmatprep.subr.mxu0 0.0
  %v2076 = vand.u32 %v1870, 4294901760
  %v2077 = vsub.f32 %v1870, %v2076
  %2078 = vmatpush1.msra.mxu0 %v2077
  %2079 = vmatprep.subr.mxu0 0.0
  %2080 = vmatpush1.msra.mxu0 0.0
  %2081 = vmatprep.subr.mxu0 0.0
  %2082 = vmatpush1.msra.mxu0 0.0
  %2083 = vmatprep.subr.mxu0 0.0
  %2084 = vmatpush1.msra.mxu0 0.0
  %2085 = vmatprep.subr.mxu0 0.0
  %2086 = vmatpush1.msra.mxu0 0.0
  %2087 = vmatprep.subr.mxu0 0.0
  %2088 = vmatpush1.msra.mxu0 0.0
  %2089 = vmatprep.subr.mxu0 0.0
  %2090 = vmatpush1.msra.mxu0 0.0
  %2091 = vmatprep.subr.mxu0 0.0
  %2092 = vmatpush1.msra.mxu0 0.0
  %2093 = vmatprep.subr.mxu0 0.0
  %2094 = vmatpush1.msra.mxu0 0.0
  %2095 = vmatprep.subr.mxu0 0.0
  %2096 = vmatpush1.msra.mxu0 0.0
  %2097 = vmatprep.subr.mxu0 0.0
  %2098 = vmatpush1.msra.mxu0 0.0
  %2099 = vmatprep.subr.mxu0 0.0
  %2100 = vmatpush1.msra.mxu0 0.0
  %2101 = vmatprep.subr.mxu0 0.0
  %2102 = vmatpush1.msra.mxu0 0.0
  %2103 = vmatprep.subr.mxu0 0.0
  %2104 = vmatpush1.msra.mxu0 0.0
  %2105 = vmatprep.subr.mxu0 0.0
  %2106 = vmatpush1.msra.mxu0 0.0
  %2107 = vmatprep.subr.mxu0 0.0
  %2108 = vmatpush1.msra.mxu0 0.0
  %2109 = vmatprep.subr.mxu0 0.0
  %2110 = vmatpush1.msra.mxu0 0.0
  %2111 = vmatprep.subr.mxu0 0.0
  %2112 = vmatpush1.msra.mxu0 0.0
  %2113 = vmatprep.subr.mxu0 0.0
  %2114 = vmatpush1.msra.mxu0 0.0
  %2115 = vmatprep.subr.mxu0 0.0
  %2116 = vmatpush1.msra.mxu0 0.0
  %2117 = vmatprep.subr.mxu0 0.0
  %2118 = vmatpush1.msra.mxu0 0.0
  %2119 = vmatprep.subr.mxu0 0.0
  %2120 = vmatpush1.msra.mxu0 0.0
  %2121 = vmatprep.subr.mxu0 0.0
  %2122 = vmatpush1.msra.mxu0 0.0
  %2123 = vmatprep.subr.mxu0 0.0
  %2124 = vmatpush1.msra.mxu0 0.0
  %2125 = vmatprep.subr.mxu0 0.0
  %2126 = vmatpush1.msra.mxu0 0.0
  %2127 = vmatprep.subr.mxu0 0.0
  %2128 = vmatpush1.msra.mxu0 0.0
  %2129 = vmatprep.subr.mxu0 0.0
  %2130 = vmatpush1.msra.mxu0 0.0
  %2131 = vmatprep.subr.mxu0 0.0
  %2132 = vmatpush1.msra.mxu0 0.0
  %2133 = vmatprep.subr.mxu0 0.0
  %2134 = vmatpush1.msra.mxu0 0.0
  %2135 = vmatprep.mubr.f32.mxu0 0.0
  %v2136 = vand.u32 %v1891, 4294901760
  %v2137 = vsub.f32 %v1891, %v2136
  %2138 = vmatmul.mubr.f32.gmra.mrb[0].mxu0 %v2137
  %v2139 = vpop.f32.mrb[0].mxu0
  %v2140 = vadd.f32 %v2060, %v2139
  %v2141 = vpop.f32.mrb[0].mxu0
  %2142 = vdwg.mxu0
  %2143 = vmatprep.subr.mxu0 0.0
  %v2144 = vand.u32 %v1867, 4294901760
  %2145 = vmatpush1.msra.mxu0 %v2144
  %2146 = vmatprep.subr.mxu0 0.0
  %v2147 = vand.u32 %v1868, 4294901760
  %2148 = vmatpush1.msra.mxu0 %v2147
  %2149 = vmatprep.subr.mxu0 0.0
  %v2150 = vand.u32 %v1869, 4294901760
  %2151 = vmatpush1.msra.mxu0 %v2150
  %2152 = vmatprep.subr.mxu0 0.0
  %v2153 = vand.u32 %v1870, 4294901760
  %2154 = vmatpush1.msra.mxu0 %v2153
  %2155 = vmatprep.subr.mxu0 0.0
  %2156 = vmatpush1.msra.mxu0 0.0
  %2157 = vmatprep.subr.mxu0 0.0
  %2158 = vmatpush1.msra.mxu0 0.0
  %2159 = vmatprep.subr.mxu0 0.0
  %2160 = vmatpush1.msra.mxu0 0.0
  %2161 = vmatprep.subr.mxu0 0.0
  %2162 = vmatpush1.msra.mxu0 0.0
  %2163 = vmatprep.subr.mxu0 0.0
  %2164 = vmatpush1.msra.mxu0 0.0
  %2165 = vmatprep.subr.mxu0 0.0
  %2166 = vmatpush1.msra.mxu0 0.0
  %2167 = vmatprep.subr.mxu0 0.0
  %2168 = vmatpush1.msra.mxu0 0.0
  %2169 = vmatprep.subr.mxu0 0.0
  %2170 = vmatpush1.msra.mxu0 0.0
  %2171 = vmatprep.subr.mxu0 0.0
  %2172 = vmatpush1.msra.mxu0 0.0
  %2173 = vmatprep.subr.mxu0 0.0
  %2174 = vmatpush1.msra.mxu0 0.0
  %2175 = vmatprep.subr.mxu0 0.0
  %2176 = vmatpush1.msra.mxu0 0.0
  %2177 = vmatprep.subr.mxu0 0.0
  %2178 = vmatpush1.msra.mxu0 0.0
  %2179 = vmatprep.subr.mxu0 0.0
  %2180 = vmatpush1.msra.mxu0 0.0
  %2181 = vmatprep.subr.mxu0 0.0
  %2182 = vmatpush1.msra.mxu0 0.0
  %2183 = vmatprep.subr.mxu0 0.0
  %2184 = vmatpush1.msra.mxu0 0.0
  %2185 = vmatprep.subr.mxu0 0.0
  %2186 = vmatpush1.msra.mxu0 0.0
  %2187 = vmatprep.subr.mxu0 0.0
  %2188 = vmatpush1.msra.mxu0 0.0
  %2189 = vmatprep.subr.mxu0 0.0
  %2190 = vmatpush1.msra.mxu0 0.0
  %2191 = vmatprep.subr.mxu0 0.0
  %2192 = vmatpush1.msra.mxu0 0.0
  %2193 = vmatprep.subr.mxu0 0.0
  %2194 = vmatpush1.msra.mxu0 0.0
  %2195 = vmatprep.subr.mxu0 0.0
  %2196 = vmatpush1.msra.mxu0 0.0
  %2197 = vmatprep.subr.mxu0 0.0
  %2198 = vmatpush1.msra.mxu0 0.0
  %2199 = vmatprep.subr.mxu0 0.0
  %2200 = vmatpush1.msra.mxu0 0.0
  %2201 = vmatprep.subr.mxu0 0.0
  %2202 = vmatpush1.msra.mxu0 0.0
  %2203 = vmatprep.subr.mxu0 0.0
  %2204 = vmatpush1.msra.mxu0 0.0
  %2205 = vmatprep.subr.mxu0 0.0
  %2206 = vmatpush1.msra.mxu0 0.0
  %2207 = vmatprep.subr.mxu0 0.0
  %2208 = vmatpush1.msra.mxu0 0.0
  %2209 = vmatprep.subr.mxu0 0.0
  %2210 = vmatpush1.msra.mxu0 0.0
  %2211 = vmatprep.mubr.f32.mxu0 0.0
  %v2212 = vand.u32 %v1891, 4294901760
  %v2213 = vsub.f32 %v1891, %v2212
  %v2214 = vand.u32 %v2213, 4294901760
  %2215 = vmatmul.mubr.f32.gmra.mrb[0].mxu0 %v2214
  %v2216 = vpop.f32.mrb[0].mxu0
  %v2217 = vadd.f32 %v2140, %v2216
  %v2218 = vpop.f32.mrb[0].mxu0
  %2219 = vdwg.mxu0
  %2220 = vmatprep.subr.mxu0 0.0
  %v2221 = vand.u32 %v1867, 4294901760
  %v2222 = vsub.f32 %v1867, %v2221
  %v2223 = vand.u32 %v2222, 4294901760
  %2224 = vmatpush1.msra.mxu0 %v2223
  %2225 = vmatprep.subr.mxu0 0.0
  %v2226 = vand.u32 %v1868, 4294901760
  %v2227 = vsub.f32 %v1868, %v2226
  %v2228 = vand.u32 %v2227, 4294901760
  %2229 = vmatpush1.msra.mxu0 %v2228
  %2230 = vmatprep.subr.mxu0 0.0
  %v2231 = vand.u32 %v1869, 4294901760
  %v2232 = vsub.f32 %v1869, %v2231
  %v2233 = vand.u32 %v2232, 4294901760
  %2234 = vmatpush1.msra.mxu0 %v2233
  %2235 = vmatprep.subr.mxu0 0.0
  %v2236 = vand.u32 %v1870, 4294901760
  %v2237 = vsub.f32 %v1870, %v2236
  %v2238 = vand.u32 %v2237, 4294901760
  %2239 = vmatpush1.msra.mxu0 %v2238
  %2240 = vmatprep.subr.mxu0 0.0
  %2241 = vmatpush1.msra.mxu0 0.0
  %2242 = vmatprep.subr.mxu0 0.0
  %2243 = vmatpush1.msra.mxu0 0.0
  %2244 = vmatprep.subr.mxu0 0.0
  %2245 = vmatpush1.msra.mxu0 0.0
  %2246 = vmatprep.subr.mxu0 0.0
  %2247 = vmatpush1.msra.mxu0 0.0
  %2248 = vmatprep.subr.mxu0 0.0
  %2249 = vmatpush1.msra.mxu0 0.0
  %2250 = vmatprep.subr.mxu0 0.0
  %2251 = vmatpush1.msra.mxu0 0.0
  %2252 = vmatprep.subr.mxu0 0.0
  %2253 = vmatpush1.msra.mxu0 0.0
  %2254 = vmatprep.subr.mxu0 0.0
  %2255 = vmatpush1.msra.mxu0 0.0
  %2256 = vmatprep.subr.mxu0 0.0
  %2257 = vmatpush1.msra.mxu0 0.0
  %2258 = vmatprep.subr.mxu0 0.0
  %2259 = vmatpush1.msra.mxu0 0.0
  %2260 = vmatprep.subr.mxu0 0.0
  %2261 = vmatpush1.msra.mxu0 0.0
  %2262 = vmatprep.subr.mxu0 0.0
  %2263 = vmatpush1.msra.mxu0 0.0
  %2264 = vmatprep.subr.mxu0 0.0
  %2265 = vmatpush1.msra.mxu0 0.0
  %2266 = vmatprep.subr.mxu0 0.0
  %2267 = vmatpush1.msra.mxu0 0.0
  %2268 = vmatprep.subr.mxu0 0.0
  %2269 = vmatpush1.msra.mxu0 0.0
  %2270 = vmatprep.subr.mxu0 0.0
  %2271 = vmatpush1.msra.mxu0 0.0
  %2272 = vmatprep.subr.mxu0 0.0
  %2273 = vmatpush1.msra.mxu0 0.0
  %2274 = vmatprep.subr.mxu0 0.0
  %2275 = vmatpush1.msra.mxu0 0.0
  %2276 = vmatprep.subr.mxu0 0.0
  %2277 = vmatpush1.msra.mxu0 0.0
  %2278 = vmatprep.subr.mxu0 0.0
  %2279 = vmatpush1.msra.mxu0 0.0
  %2280 = vmatprep.subr.mxu0 0.0
  %2281 = vmatpush1.msra.mxu0 0.0
  %2282 = vmatprep.subr.mxu0 0.0
  %2283 = vmatpush1.msra.mxu0 0.0
  %2284 = vmatprep.subr.mxu0 0.0
  %2285 = vmatpush1.msra.mxu0 0.0
  %2286 = vmatprep.subr.mxu0 0.0
  %2287 = vmatpush1.msra.mxu0 0.0
  %2288 = vmatprep.subr.mxu0 0.0
  %2289 = vmatpush1.msra.mxu0 0.0
  %2290 = vmatprep.subr.mxu0 0.0
  %2291 = vmatpush1.msra.mxu0 0.0
  %2292 = vmatprep.subr.mxu0 0.0
  %2293 = vmatpush1.msra.mxu0 0.0
  %2294 = vmatprep.subr.mxu0 0.0
  %2295 = vmatpush1.msra.mxu0 0.0
  %2296 = vmatprep.mubr.f32.mxu0 0.0
  %v2297 = vand.u32 %v1891, 4294901760
  %2298 = vmatmul.mubr.f32.gmra.mrb[0].mxu0 %v2297
  %v2299 = vpop.f32.mrb[0].mxu0
  %v2300 = vadd.f32 %v2217, %v2299
  %v2301 = vpop.f32.mrb[0].mxu0
  %2302 = vdwg.mxu0
  %2303 = vmatprep.subr.mxu0 0.0
  %v2304 = vand.u32 %v1867, 4294901760
  %2305 = vmatpush1.msra.mxu0 %v2304
  %2306 = vmatprep.subr.mxu0 0.0
  %v2307 = vand.u32 %v1868, 4294901760
  %2308 = vmatpush1.msra.mxu0 %v2307
  %2309 = vmatprep.subr.mxu0 0.0
  %v2310 = vand.u32 %v1869, 4294901760
  %2311 = vmatpush1.msra.mxu0 %v2310
  %2312 = vmatprep.subr.mxu0 0.0
  %v2313 = vand.u32 %v1870, 4294901760
  %2314 = vmatpush1.msra.mxu0 %v2313
  %2315 = vmatprep.subr.mxu0 0.0
  %2316 = vmatpush1.msra.mxu0 0.0
  %2317 = vmatprep.subr.mxu0 0.0
  %2318 = vmatpush1.msra.mxu0 0.0
  %2319 = vmatprep.subr.mxu0 0.0
  %2320 = vmatpush1.msra.mxu0 0.0
  %2321 = vmatprep.subr.mxu0 0.0
  %2322 = vmatpush1.msra.mxu0 0.0
  %2323 = vmatprep.subr.mxu0 0.0
  %2324 = vmatpush1.msra.mxu0 0.0
  %2325 = vmatprep.subr.mxu0 0.0
  %2326 = vmatpush1.msra.mxu0 0.0
  %2327 = vmatprep.subr.mxu0 0.0
  %2328 = vmatpush1.msra.mxu0 0.0
  %2329 = vmatprep.subr.mxu0 0.0
  %2330 = vmatpush1.msra.mxu0 0.0
  %2331 = vmatprep.subr.mxu0 0.0
  %2332 = vmatpush1.msra.mxu0 0.0
  %2333 = vmatprep.subr.mxu0 0.0
  %2334 = vmatpush1.msra.mxu0 0.0
  %2335 = vmatprep.subr.mxu0 0.0
  %2336 = vmatpush1.msra.mxu0 0.0
  %2337 = vmatprep.subr.mxu0 0.0
  %2338 = vmatpush1.msra.mxu0 0.0
  %2339 = vmatprep.subr.mxu0 0.0
  %2340 = vmatpush1.msra.mxu0 0.0
  %2341 = vmatprep.subr.mxu0 0.0
  %2342 = vmatpush1.msra.mxu0 0.0
  %2343 = vmatprep.subr.mxu0 0.0
  %2344 = vmatpush1.msra.mxu0 0.0
  %2345 = vmatprep.subr.mxu0 0.0
  %2346 = vmatpush1.msra.mxu0 0.0
  %2347 = vmatprep.subr.mxu0 0.0
  %2348 = vmatpush1.msra.mxu0 0.0
  %2349 = vmatprep.subr.mxu0 0.0
  %2350 = vmatpush1.msra.mxu0 0.0
  %2351 = vmatprep.subr.mxu0 0.0
  %2352 = vmatpush1.msra.mxu0 0.0
  %2353 = vmatprep.subr.mxu0 0.0
  %2354 = vmatpush1.msra.mxu0 0.0
  %2355 = vmatprep.subr.mxu0 0.0
  %2356 = vmatpush1.msra.mxu0 0.0
  %2357 = vmatprep.subr.mxu0 0.0
  %2358 = vmatpush1.msra.mxu0 0.0
  %2359 = vmatprep.subr.mxu0 0.0
  %2360 = vmatpush1.msra.mxu0 0.0
  %2361 = vmatprep.subr.mxu0 0.0
  %2362 = vmatpush1.msra.mxu0 0.0
  %2363 = vmatprep.subr.mxu0 0.0
  %2364 = vmatpush1.msra.mxu0 0.0
  %2365 = vmatprep.subr.mxu0 0.0
  %2366 = vmatpush1.msra.mxu0 0.0
  %2367 = vmatprep.subr.mxu0 0.0
  %2368 = vmatpush1.msra.mxu0 0.0
  %2369 = vmatprep.subr.mxu0 0.0
  %2370 = vmatpush1.msra.mxu0 0.0
  %2371 = vmatprep.mubr.f32.mxu0 0.0
  %v2372 = vand.u32 %v1891, 4294901760
  %2373 = vmatmul.mubr.f32.gmra.mrb[0].mxu0 %v2372
  %v2374 = vpop.f32.mrb[0].mxu0
  %v2375 = vadd.f32 %v2300, %v2374
  %v2376 = vpop.f32.mrb[0].mxu0
  %2377 = vdwg.mxu0
  %v2379 = vsel %vm1889, %v1872, 0
  %2381 = vmatprep.subr.mxu0 0.0
  %v2382 = vand.u32 %v1867, 4294901760
  %2383 = vmatpush1.msra.mxu0 %v2382
  %2384 = vmatprep.subr.mxu0 0.0
  %v2385 = vand.u32 %v1868, 4294901760
  %2386 = vmatpush1.msra.mxu0 %v2385
  %2387 = vmatprep.subr.mxu0 0.0
  %v2388 = vand.u32 %v1869, 4294901760
  %2389 = vmatpush1.msra.mxu0 %v2388
  %2390 = vmatprep.subr.mxu0 0.0
  %v2391 = vand.u32 %v1870, 4294901760
  %2392 = vmatpush1.msra.mxu0 %v2391
  %2393 = vmatprep.subr.mxu0 0.0
  %2394 = vmatpush1.msra.mxu0 0.0
  %2395 = vmatprep.subr.mxu0 0.0
  %2396 = vmatpush1.msra.mxu0 0.0
  %2397 = vmatprep.subr.mxu0 0.0
  %2398 = vmatpush1.msra.mxu0 0.0
  %2399 = vmatprep.subr.mxu0 0.0
  %2400 = vmatpush1.msra.mxu0 0.0
  %2401 = vmatprep.subr.mxu0 0.0
  %2402 = vmatpush1.msra.mxu0 0.0
  %2403 = vmatprep.subr.mxu0 0.0
  %2404 = vmatpush1.msra.mxu0 0.0
  %2405 = vmatprep.subr.mxu0 0.0
  %2406 = vmatpush1.msra.mxu0 0.0
  %2407 = vmatprep.subr.mxu0 0.0
  %2408 = vmatpush1.msra.mxu0 0.0
  %2409 = vmatprep.subr.mxu0 0.0
  %2410 = vmatpush1.msra.mxu0 0.0
  %2411 = vmatprep.subr.mxu0 0.0
  %2412 = vmatpush1.msra.mxu0 0.0
  %2413 = vmatprep.subr.mxu0 0.0
  %2414 = vmatpush1.msra.mxu0 0.0
  %2415 = vmatprep.subr.mxu0 0.0
  %2416 = vmatpush1.msra.mxu0 0.0
  %2417 = vmatprep.subr.mxu0 0.0
  %2418 = vmatpush1.msra.mxu0 0.0
  %2419 = vmatprep.subr.mxu0 0.0
  %2420 = vmatpush1.msra.mxu0 0.0
  %2421 = vmatprep.subr.mxu0 0.0
  %2422 = vmatpush1.msra.mxu0 0.0
  %2423 = vmatprep.subr.mxu0 0.0
  %2424 = vmatpush1.msra.mxu0 0.0
  %2425 = vmatprep.subr.mxu0 0.0
  %2426 = vmatpush1.msra.mxu0 0.0
  %2427 = vmatprep.subr.mxu0 0.0
  %2428 = vmatpush1.msra.mxu0 0.0
  %2429 = vmatprep.subr.mxu0 0.0
  %2430 = vmatpush1.msra.mxu0 0.0
  %2431 = vmatprep.subr.mxu0 0.0
  %2432 = vmatpush1.msra.mxu0 0.0
  %2433 = vmatprep.subr.mxu0 0.0
  %2434 = vmatpush1.msra.mxu0 0.0
  %2435 = vmatprep.subr.mxu0 0.0
  %2436 = vmatpush1.msra.mxu0 0.0
  %2437 = vmatprep.subr.mxu0 0.0
  %2438 = vmatpush1.msra.mxu0 0.0
  %2439 = vmatprep.subr.mxu0 0.0
  %2440 = vmatpush1.msra.mxu0 0.0
  %2441 = vmatprep.subr.mxu0 0.0
  %2442 = vmatpush1.msra.mxu0 0.0
  %2443 = vmatprep.subr.mxu0 0.0
  %2444 = vmatpush1.msra.mxu0 0.0
  %2445 = vmatprep.subr.mxu0 0.0
  %2446 = vmatpush1.msra.mxu0 0.0
  %2447 = vmatprep.subr.mxu0 0.0
  %2448 = vmatpush1.msra.mxu0 0.0
  %2449 = vmatprep.mubr.f32.mxu0 0.0
  %v2450 = vand.u32 %v2379, 4294901760
  %v2451 = vsub.f32 %v2379, %v2450
  %v2452 = vand.u32 %v2451, 4294901760
  %v2453 = vsub.f32 %v2451, %v2452
  %v2454 = vand.u32 %v2453, 4294901760
  %2455 = vmatmul.mubr.f32.gmra.mrb[0].mxu0 %v2454
  %v2456 = vpop.f32.mrb[0].mxu0
  %v2457 = vadd.f32 0.0, %v2456
  %v2458 = vpop.f32.mrb[0].mxu0
  %2459 = vdwg.mxu0
  %2460 = vmatprep.subr.mxu0 0.0
  %v2461 = vand.u32 %v1867, 4294901760
  %v2462 = vsub.f32 %v1867, %v2461
  %v2463 = vand.u32 %v2462, 4294901760
  %v2464 = vsub.f32 %v2462, %v2463
  %v2465 = vand.u32 %v2464, 4294901760
  %2466 = vmatpush1.msra.mxu0 %v2465
  %2467 = vmatprep.subr.mxu0 0.0
  %v2468 = vand.u32 %v1868, 4294901760
  %v2469 = vsub.f32 %v1868, %v2468
  %v2470 = vand.u32 %v2469, 4294901760
  %v2471 = vsub.f32 %v2469, %v2470
  %v2472 = vand.u32 %v2471, 4294901760
  %2473 = vmatpush1.msra.mxu0 %v2472
  %2474 = vmatprep.subr.mxu0 0.0
  %v2475 = vand.u32 %v1869, 4294901760
  %v2476 = vsub.f32 %v1869, %v2475
  %v2477 = vand.u32 %v2476, 4294901760
  %v2478 = vsub.f32 %v2476, %v2477
  %v2479 = vand.u32 %v2478, 4294901760
  %2480 = vmatpush1.msra.mxu0 %v2479
  %2481 = vmatprep.subr.mxu0 0.0
  %v2482 = vand.u32 %v1870, 4294901760
  %v2483 = vsub.f32 %v1870, %v2482
  %v2484 = vand.u32 %v2483, 4294901760
  %v2485 = vsub.f32 %v2483, %v2484
  %v2486 = vand.u32 %v2485, 4294901760
  %2487 = vmatpush1.msra.mxu0 %v2486
  %2488 = vmatprep.subr.mxu0 0.0
  %2489 = vmatpush1.msra.mxu0 0.0
  %2490 = vmatprep.subr.mxu0 0.0
  %2491 = vmatpush1.msra.mxu0 0.0
  %2492 = vmatprep.subr.mxu0 0.0
  %2493 = vmatpush1.msra.mxu0 0.0
  %2494 = vmatprep.subr.mxu0 0.0
  %2495 = vmatpush1.msra.mxu0 0.0
  %2496 = vmatprep.subr.mxu0 0.0
  %2497 = vmatpush1.msra.mxu0 0.0
  %2498 = vmatprep.subr.mxu0 0.0
  %2499 = vmatpush1.msra.mxu0 0.0
  %2500 = vmatprep.subr.mxu0 0.0
  %2501 = vmatpush1.msra.mxu0 0.0
  %2502 = vmatprep.subr.mxu0 0.0
  %2503 = vmatpush1.msra.mxu0 0.0
  %2504 = vmatprep.subr.mxu0 0.0
  %2505 = vmatpush1.msra.mxu0 0.0
  %2506 = vmatprep.subr.mxu0 0.0
  %2507 = vmatpush1.msra.mxu0 0.0
  %2508 = vmatprep.subr.mxu0 0.0
  %2509 = vmatpush1.msra.mxu0 0.0
  %2510 = vmatprep.subr.mxu0 0.0
  %2511 = vmatpush1.msra.mxu0 0.0
  %2512 = vmatprep.subr.mxu0 0.0
  %2513 = vmatpush1.msra.mxu0 0.0
  %2514 = vmatprep.subr.mxu0 0.0
  %2515 = vmatpush1.msra.mxu0 0.0
  %2516 = vmatprep.subr.mxu0 0.0
  %2517 = vmatpush1.msra.mxu0 0.0
  %2518 = vmatprep.subr.mxu0 0.0
  %2519 = vmatpush1.msra.mxu0 0.0
  %2520 = vmatprep.subr.mxu0 0.0
  %2521 = vmatpush1.msra.mxu0 0.0
  %2522 = vmatprep.subr.mxu0 0.0
  %2523 = vmatpush1.msra.mxu0 0.0
  %2524 = vmatprep.subr.mxu0 0.0
  %2525 = vmatpush1.msra.mxu0 0.0
  %2526 = vmatprep.subr.mxu0 0.0
  %2527 = vmatpush1.msra.mxu0 0.0
  %2528 = vmatprep.subr.mxu0 0.0
  %2529 = vmatpush1.msra.mxu0 0.0
  %2530 = vmatprep.subr.mxu0 0.0
  %2531 = vmatpush1.msra.mxu0 0.0
  %2532 = vmatprep.subr.mxu0 0.0
  %2533 = vmatpush1.msra.mxu0 0.0
  %2534 = vmatprep.subr.mxu0 0.0
  %2535 = vmatpush1.msra.mxu0 0.0
  %2536 = vmatprep.subr.mxu0 0.0
  %2537 = vmatpush1.msra.mxu0 0.0
  %2538 = vmatprep.subr.mxu0 0.0
  %2539 = vmatpush1.msra.mxu0 0.0
  %2540 = vmatprep.subr.mxu0 0.0
  %2541 = vmatpush1.msra.mxu0 0.0
  %2542 = vmatprep.subr.mxu0 0.0
  %2543 = vmatpush1.msra.mxu0 0.0
  %2544 = vmatprep.mubr.f32.mxu0 0.0
  %v2545 = vand.u32 %v2379, 4294901760
  %2546 = vmatmul.mubr.f32.gmra.mrb[0].mxu0 %v2545
  %v2547 = vpop.f32.mrb[0].mxu0
  %v2548 = vadd.f32 %v2457, %v2547
  %v2549 = vpop.f32.mrb[0].mxu0
  %2550 = vdwg.mxu0
  %2551 = vmatprep.subr.mxu0 0.0
  %v2552 = vand.u32 %v1867, 4294901760
  %v2553 = vsub.f32 %v1867, %v2552
  %2554 = vmatpush1.msra.mxu0 %v2553
  %2555 = vmatprep.subr.mxu0 0.0
  %v2556 = vand.u32 %v1868, 4294901760
  %v2557 = vsub.f32 %v1868, %v2556
  %2558 = vmatpush1.msra.mxu0 %v2557
  %2559 = vmatprep.subr.mxu0 0.0
  %v2560 = vand.u32 %v1869, 4294901760
  %v2561 = vsub.f32 %v1869, %v2560
  %2562 = vmatpush1.msra.mxu0 %v2561
  %2563 = vmatprep.subr.mxu0 0.0
  %v2564 = vand.u32 %v1870, 4294901760
  %v2565 = vsub.f32 %v1870, %v2564
  %2566 = vmatpush1.msra.mxu0 %v2565
  %2567 = vmatprep.subr.mxu0 0.0
  %2568 = vmatpush1.msra.mxu0 0.0
  %2569 = vmatprep.subr.mxu0 0.0
  %2570 = vmatpush1.msra.mxu0 0.0
  %2571 = vmatprep.subr.mxu0 0.0
  %2572 = vmatpush1.msra.mxu0 0.0
  %2573 = vmatprep.subr.mxu0 0.0
  %2574 = vmatpush1.msra.mxu0 0.0
  %2575 = vmatprep.subr.mxu0 0.0
  %2576 = vmatpush1.msra.mxu0 0.0
  %2577 = vmatprep.subr.mxu0 0.0
  %2578 = vmatpush1.msra.mxu0 0.0
  %2579 = vmatprep.subr.mxu0 0.0
  %2580 = vmatpush1.msra.mxu0 0.0
  %2581 = vmatprep.subr.mxu0 0.0
  %2582 = vmatpush1.msra.mxu0 0.0
  %2583 = vmatprep.subr.mxu0 0.0
  %2584 = vmatpush1.msra.mxu0 0.0
  %2585 = vmatprep.subr.mxu0 0.0
  %2586 = vmatpush1.msra.mxu0 0.0
  %2587 = vmatprep.subr.mxu0 0.0
  %2588 = vmatpush1.msra.mxu0 0.0
  %2589 = vmatprep.subr.mxu0 0.0
  %2590 = vmatpush1.msra.mxu0 0.0
  %2591 = vmatprep.subr.mxu0 0.0
  %2592 = vmatpush1.msra.mxu0 0.0
  %2593 = vmatprep.subr.mxu0 0.0
  %2594 = vmatpush1.msra.mxu0 0.0
  %2595 = vmatprep.subr.mxu0 0.0
  %2596 = vmatpush1.msra.mxu0 0.0
  %2597 = vmatprep.subr.mxu0 0.0
  %2598 = vmatpush1.msra.mxu0 0.0
  %2599 = vmatprep.subr.mxu0 0.0
  %2600 = vmatpush1.msra.mxu0 0.0
  %2601 = vmatprep.subr.mxu0 0.0
  %2602 = vmatpush1.msra.mxu0 0.0
  %2603 = vmatprep.subr.mxu0 0.0
  %2604 = vmatpush1.msra.mxu0 0.0
  %2605 = vmatprep.subr.mxu0 0.0
  %2606 = vmatpush1.msra.mxu0 0.0
  %2607 = vmatprep.subr.mxu0 0.0
  %2608 = vmatpush1.msra.mxu0 0.0
  %2609 = vmatprep.subr.mxu0 0.0
  %2610 = vmatpush1.msra.mxu0 0.0
  %2611 = vmatprep.subr.mxu0 0.0
  %2612 = vmatpush1.msra.mxu0 0.0
  %2613 = vmatprep.subr.mxu0 0.0
  %2614 = vmatpush1.msra.mxu0 0.0
  %2615 = vmatprep.subr.mxu0 0.0
  %2616 = vmatpush1.msra.mxu0 0.0
  %2617 = vmatprep.subr.mxu0 0.0
  %2618 = vmatpush1.msra.mxu0 0.0
  %2619 = vmatprep.subr.mxu0 0.0
  %2620 = vmatpush1.msra.mxu0 0.0
  %2621 = vmatprep.subr.mxu0 0.0
  %2622 = vmatpush1.msra.mxu0 0.0
  %2623 = vmatprep.mubr.f32.mxu0 0.0
  %v2624 = vand.u32 %v2379, 4294901760
  %v2625 = vsub.f32 %v2379, %v2624
  %2626 = vmatmul.mubr.f32.gmra.mrb[0].mxu0 %v2625
  %v2627 = vpop.f32.mrb[0].mxu0
  %v2628 = vadd.f32 %v2548, %v2627
  %v2629 = vpop.f32.mrb[0].mxu0
  %2630 = vdwg.mxu0
  %2631 = vmatprep.subr.mxu0 0.0
  %v2632 = vand.u32 %v1867, 4294901760
  %2633 = vmatpush1.msra.mxu0 %v2632
  %2634 = vmatprep.subr.mxu0 0.0
  %v2635 = vand.u32 %v1868, 4294901760
  %2636 = vmatpush1.msra.mxu0 %v2635
  %2637 = vmatprep.subr.mxu0 0.0
  %v2638 = vand.u32 %v1869, 4294901760
  %2639 = vmatpush1.msra.mxu0 %v2638
  %2640 = vmatprep.subr.mxu0 0.0
  %v2641 = vand.u32 %v1870, 4294901760
  %2642 = vmatpush1.msra.mxu0 %v2641
  %2643 = vmatprep.subr.mxu0 0.0
  %2644 = vmatpush1.msra.mxu0 0.0
  %2645 = vmatprep.subr.mxu0 0.0
  %2646 = vmatpush1.msra.mxu0 0.0
  %2647 = vmatprep.subr.mxu0 0.0
  %2648 = vmatpush1.msra.mxu0 0.0
  %2649 = vmatprep.subr.mxu0 0.0
  %2650 = vmatpush1.msra.mxu0 0.0
  %2651 = vmatprep.subr.mxu0 0.0
  %2652 = vmatpush1.msra.mxu0 0.0
  %2653 = vmatprep.subr.mxu0 0.0
  %2654 = vmatpush1.msra.mxu0 0.0
  %2655 = vmatprep.subr.mxu0 0.0
  %2656 = vmatpush1.msra.mxu0 0.0
  %2657 = vmatprep.subr.mxu0 0.0
  %2658 = vmatpush1.msra.mxu0 0.0
  %2659 = vmatprep.subr.mxu0 0.0
  %2660 = vmatpush1.msra.mxu0 0.0
  %2661 = vmatprep.subr.mxu0 0.0
  %2662 = vmatpush1.msra.mxu0 0.0
  %2663 = vmatprep.subr.mxu0 0.0
  %2664 = vmatpush1.msra.mxu0 0.0
  %2665 = vmatprep.subr.mxu0 0.0
  %2666 = vmatpush1.msra.mxu0 0.0
  %2667 = vmatprep.subr.mxu0 0.0
  %2668 = vmatpush1.msra.mxu0 0.0
  %2669 = vmatprep.subr.mxu0 0.0
  %2670 = vmatpush1.msra.mxu0 0.0
  %2671 = vmatprep.subr.mxu0 0.0
  %2672 = vmatpush1.msra.mxu0 0.0
  %2673 = vmatprep.subr.mxu0 0.0
  %2674 = vmatpush1.msra.mxu0 0.0
  %2675 = vmatprep.subr.mxu0 0.0
  %2676 = vmatpush1.msra.mxu0 0.0
  %2677 = vmatprep.subr.mxu0 0.0
  %2678 = vmatpush1.msra.mxu0 0.0
  %2679 = vmatprep.subr.mxu0 0.0
  %2680 = vmatpush1.msra.mxu0 0.0
  %2681 = vmatprep.subr.mxu0 0.0
  %2682 = vmatpush1.msra.mxu0 0.0
  %2683 = vmatprep.subr.mxu0 0.0
  %2684 = vmatpush1.msra.mxu0 0.0
  %2685 = vmatprep.subr.mxu0 0.0
  %2686 = vmatpush1.msra.mxu0 0.0
  %2687 = vmatprep.subr.mxu0 0.0
  %2688 = vmatpush1.msra.mxu0 0.0
  %2689 = vmatprep.subr.mxu0 0.0
  %2690 = vmatpush1.msra.mxu0 0.0
  %2691 = vmatprep.subr.mxu0 0.0
  %2692 = vmatpush1.msra.mxu0 0.0
  %2693 = vmatprep.subr.mxu0 0.0
  %2694 = vmatpush1.msra.mxu0 0.0
  %2695 = vmatprep.subr.mxu0 0.0
  %2696 = vmatpush1.msra.mxu0 0.0
  %2697 = vmatprep.subr.mxu0 0.0
  %2698 = vmatpush1.msra.mxu0 0.0
  %2699 = vmatprep.mubr.f32.mxu0 0.0
  %v2700 = vand.u32 %v2379, 4294901760
  %v2701 = vsub.f32 %v2379, %v2700
  %v2702 = vand.u32 %v2701, 4294901760
  %2703 = vmatmul.mubr.f32.gmra.mrb[0].mxu0 %v2702
  %v2704 = vpop.f32.mrb[0].mxu0
  %v2705 = vadd.f32 %v2628, %v2704
  %v2706 = vpop.f32.mrb[0].mxu0
  %2707 = vdwg.mxu0
  %2708 = vmatprep.subr.mxu0 0.0
  %v2709 = vand.u32 %v1867, 4294901760
  %v2710 = vsub.f32 %v1867, %v2709
  %v2711 = vand.u32 %v2710, 4294901760
  %2712 = vmatpush1.msra.mxu0 %v2711
  %2713 = vmatprep.subr.mxu0 0.0
  %v2714 = vand.u32 %v1868, 4294901760
  %v2715 = vsub.f32 %v1868, %v2714
  %v2716 = vand.u32 %v2715, 4294901760
  %2717 = vmatpush1.msra.mxu0 %v2716
  %2718 = vmatprep.subr.mxu0 0.0
  %v2719 = vand.u32 %v1869, 4294901760
  %v2720 = vsub.f32 %v1869, %v2719
  %v2721 = vand.u32 %v2720, 4294901760
  %2722 = vmatpush1.msra.mxu0 %v2721
  %2723 = vmatprep.subr.mxu0 0.0
  %v2724 = vand.u32 %v1870, 4294901760
  %v2725 = vsub.f32 %v1870, %v2724
  %v2726 = vand.u32 %v2725, 4294901760
  %2727 = vmatpush1.msra.mxu0 %v2726
  %2728 = vmatprep.subr.mxu0 0.0
  %2729 = vmatpush1.msra.mxu0 0.0
  %2730 = vmatprep.subr.mxu0 0.0
  %2731 = vmatpush1.msra.mxu0 0.0
  %2732 = vmatprep.subr.mxu0 0.0
  %2733 = vmatpush1.msra.mxu0 0.0
  %2734 = vmatprep.subr.mxu0 0.0
  %2735 = vmatpush1.msra.mxu0 0.0
  %2736 = vmatprep.subr.mxu0 0.0
  %2737 = vmatpush1.msra.mxu0 0.0
  %2738 = vmatprep.subr.mxu0 0.0
  %2739 = vmatpush1.msra.mxu0 0.0
  %2740 = vmatprep.subr.mxu0 0.0
  %2741 = vmatpush1.msra.mxu0 0.0
  %2742 = vmatprep.subr.mxu0 0.0
  %2743 = vmatpush1.msra.mxu0 0.0
  %2744 = vmatprep.subr.mxu0 0.0
  %2745 = vmatpush1.msra.mxu0 0.0
  %2746 = vmatprep.subr.mxu0 0.0
  %2747 = vmatpush1.msra.mxu0 0.0
  %2748 = vmatprep.subr.mxu0 0.0
  %2749 = vmatpush1.msra.mxu0 0.0
  %2750 = vmatprep.subr.mxu0 0.0
  %2751 = vmatpush1.msra.mxu0 0.0
  %2752 = vmatprep.subr.mxu0 0.0
  %2753 = vmatpush1.msra.mxu0 0.0
  %2754 = vmatprep.subr.mxu0 0.0
  %2755 = vmatpush1.msra.mxu0 0.0
  %2756 = vmatprep.subr.mxu0 0.0
  %2757 = vmatpush1.msra.mxu0 0.0
  %2758 = vmatprep.subr.mxu0 0.0
  %2759 = vmatpush1.msra.mxu0 0.0
  %2760 = vmatprep.subr.mxu0 0.0
  %2761 = vmatpush1.msra.mxu0 0.0
  %2762 = vmatprep.subr.mxu0 0.0
  %2763 = vmatpush1.msra.mxu0 0.0
  %2764 = vmatprep.subr.mxu0 0.0
  %2765 = vmatpush1.msra.mxu0 0.0
  %2766 = vmatprep.subr.mxu0 0.0
  %2767 = vmatpush1.msra.mxu0 0.0
  %2768 = vmatprep.subr.mxu0 0.0
  %2769 = vmatpush1.msra.mxu0 0.0
  %2770 = vmatprep.subr.mxu0 0.0
  %2771 = vmatpush1.msra.mxu0 0.0
  %2772 = vmatprep.subr.mxu0 0.0
  %2773 = vmatpush1.msra.mxu0 0.0
  %2774 = vmatprep.subr.mxu0 0.0
  %2775 = vmatpush1.msra.mxu0 0.0
  %2776 = vmatprep.subr.mxu0 0.0
  %2777 = vmatpush1.msra.mxu0 0.0
  %2778 = vmatprep.subr.mxu0 0.0
  %2779 = vmatpush1.msra.mxu0 0.0
  %2780 = vmatprep.subr.mxu0 0.0
  %2781 = vmatpush1.msra.mxu0 0.0
  %2782 = vmatprep.subr.mxu0 0.0
  %2783 = vmatpush1.msra.mxu0 0.0
  %2784 = vmatprep.mubr.f32.mxu0 0.0
  %v2785 = vand.u32 %v2379, 4294901760
  %2786 = vmatmul.mubr.f32.gmra.mrb[0].mxu0 %v2785
  %v2787 = vpop.f32.mrb[0].mxu0
  %v2788 = vadd.f32 %v2705, %v2787
  %v2789 = vpop.f32.mrb[0].mxu0
  %2790 = vdwg.mxu0
  %2791 = vmatprep.subr.mxu0 0.0
  %v2792 = vand.u32 %v1867, 4294901760
  %2793 = vmatpush1.msra.mxu0 %v2792
  %2794 = vmatprep.subr.mxu0 0.0
  %v2795 = vand.u32 %v1868, 4294901760
  %2796 = vmatpush1.msra.mxu0 %v2795
  %2797 = vmatprep.subr.mxu0 0.0
  %v2798 = vand.u32 %v1869, 4294901760
  %2799 = vmatpush1.msra.mxu0 %v2798
  %2800 = vmatprep.subr.mxu0 0.0
  %v2801 = vand.u32 %v1870, 4294901760
  %2802 = vmatpush1.msra.mxu0 %v2801
  %2803 = vmatprep.subr.mxu0 0.0
  %2804 = vmatpush1.msra.mxu0 0.0
  %2805 = vmatprep.subr.mxu0 0.0
  %2806 = vmatpush1.msra.mxu0 0.0
  %2807 = vmatprep.subr.mxu0 0.0
  %2808 = vmatpush1.msra.mxu0 0.0
  %2809 = vmatprep.subr.mxu0 0.0
  %2810 = vmatpush1.msra.mxu0 0.0
  %2811 = vmatprep.subr.mxu0 0.0
  %2812 = vmatpush1.msra.mxu0 0.0
  %2813 = vmatprep.subr.mxu0 0.0
  %2814 = vmatpush1.msra.mxu0 0.0
  %2815 = vmatprep.subr.mxu0 0.0
  %2816 = vmatpush1.msra.mxu0 0.0
  %2817 = vmatprep.subr.mxu0 0.0
  %2818 = vmatpush1.msra.mxu0 0.0
  %2819 = vmatprep.subr.mxu0 0.0
  %2820 = vmatpush1.msra.mxu0 0.0
  %2821 = vmatprep.subr.mxu0 0.0
  %2822 = vmatpush1.msra.mxu0 0.0
  %2823 = vmatprep.subr.mxu0 0.0
  %2824 = vmatpush1.msra.mxu0 0.0
  %2825 = vmatprep.subr.mxu0 0.0
  %2826 = vmatpush1.msra.mxu0 0.0
  %2827 = vmatprep.subr.mxu0 0.0
  %2828 = vmatpush1.msra.mxu0 0.0
  %2829 = vmatprep.subr.mxu0 0.0
  %2830 = vmatpush1.msra.mxu0 0.0
  %2831 = vmatprep.subr.mxu0 0.0
  %2832 = vmatpush1.msra.mxu0 0.0
  %2833 = vmatprep.subr.mxu0 0.0
  %2834 = vmatpush1.msra.mxu0 0.0
  %2835 = vmatprep.subr.mxu0 0.0
  %2836 = vmatpush1.msra.mxu0 0.0
  %2837 = vmatprep.subr.mxu0 0.0
  %2838 = vmatpush1.msra.mxu0 0.0
  %2839 = vmatprep.subr.mxu0 0.0
  %2840 = vmatpush1.msra.mxu0 0.0
  %2841 = vmatprep.subr.mxu0 0.0
  %2842 = vmatpush1.msra.mxu0 0.0
  %2843 = vmatprep.subr.mxu0 0.0
  %2844 = vmatpush1.msra.mxu0 0.0
  %2845 = vmatprep.subr.mxu0 0.0
  %2846 = vmatpush1.msra.mxu0 0.0
  %2847 = vmatprep.subr.mxu0 0.0
  %2848 = vmatpush1.msra.mxu0 0.0
  %2849 = vmatprep.subr.mxu0 0.0
  %2850 = vmatpush1.msra.mxu0 0.0
  %2851 = vmatprep.subr.mxu0 0.0
  %2852 = vmatpush1.msra.mxu0 0.0
  %2853 = vmatprep.subr.mxu0 0.0
  %2854 = vmatpush1.msra.mxu0 0.0
  %2855 = vmatprep.subr.mxu0 0.0
  %2856 = vmatpush1.msra.mxu0 0.0
  %2857 = vmatprep.subr.mxu0 0.0
  %2858 = vmatpush1.msra.mxu0 0.0
  %2859 = vmatprep.mubr.f32.mxu0 0.0
  %v2860 = vand.u32 %v2379, 4294901760
  %2861 = vmatmul.mubr.f32.gmra.mrb[0].mxu0 %v2860
  %v2862 = vpop.f32.mrb[0].mxu0
  %v2863 = vadd.f32 %v2788, %v2862
  %v2864 = vpop.f32.mrb[0].mxu0
  %2865 = vdwg.mxu0
  %v2866 = vxor.u32 %v2863, 2147483648
  %v2867 = vmul.f32 %v2866, 1.442695
  %v2868 = vpow.pop %v2867
  %v2869 = vadd.f32 %v2868, 1.0
  %v2870 = vrcp.pop %v2869
  %v2871 = vmul.f32 1.0, %v2870
  %2872 = vmatprep.subr.mxu0 0.0
  %v2873 = vand.u32 %v1882, 4294901760
  %2874 = vmatpush1.msra.mxu0 %v2873
  %2875 = vmatprep.subr.mxu0 0.0
  %v2876 = vand.u32 %v1884, 4294901760
  %2877 = vmatpush1.msra.mxu0 %v2876
  %2878 = vmatprep.subr.mxu0 0.0
  %v2879 = vand.u32 %v1886, 4294901760
  %2880 = vmatpush1.msra.mxu0 %v2879
  %2881 = vmatprep.subr.mxu0 0.0
  %v2882 = vand.u32 %v1888, 4294901760
  %2883 = vmatpush1.msra.mxu0 %v2882
  %2884 = vmatprep.subr.mxu0 0.0
  %2885 = vmatpush1.msra.mxu0 0.0
  %2886 = vmatprep.subr.mxu0 0.0
  %2887 = vmatpush1.msra.mxu0 0.0
  %2888 = vmatprep.subr.mxu0 0.0
  %2889 = vmatpush1.msra.mxu0 0.0
  %2890 = vmatprep.subr.mxu0 0.0
  %2891 = vmatpush1.msra.mxu0 0.0
  %2892 = vmatprep.subr.mxu0 0.0
  %2893 = vmatpush1.msra.mxu0 0.0
  %2894 = vmatprep.subr.mxu0 0.0
  %2895 = vmatpush1.msra.mxu0 0.0
  %2896 = vmatprep.subr.mxu0 0.0
  %2897 = vmatpush1.msra.mxu0 0.0
  %2898 = vmatprep.subr.mxu0 0.0
  %2899 = vmatpush1.msra.mxu0 0.0
  %2900 = vmatprep.subr.mxu0 0.0
  %2901 = vmatpush1.msra.mxu0 0.0
  %2902 = vmatprep.subr.mxu0 0.0
  %2903 = vmatpush1.msra.mxu0 0.0
  %2904 = vmatprep.subr.mxu0 0.0
  %2905 = vmatpush1.msra.mxu0 0.0
  %2906 = vmatprep.subr.mxu0 0.0
  %2907 = vmatpush1.msra.mxu0 0.0
  %2908 = vmatprep.subr.mxu0 0.0
  %2909 = vmatpush1.msra.mxu0 0.0
  %2910 = vmatprep.subr.mxu0 0.0
  %2911 = vmatpush1.msra.mxu0 0.0
  %2912 = vmatprep.subr.mxu0 0.0
  %2913 = vmatpush1.msra.mxu0 0.0
  %2914 = vmatprep.subr.mxu0 0.0
  %2915 = vmatpush1.msra.mxu0 0.0
  %2916 = vmatprep.subr.mxu0 0.0
  %2917 = vmatpush1.msra.mxu0 0.0
  %2918 = vmatprep.subr.mxu0 0.0
  %2919 = vmatpush1.msra.mxu0 0.0
  %2920 = vmatprep.subr.mxu0 0.0
  %2921 = vmatpush1.msra.mxu0 0.0
  %2922 = vmatprep.subr.mxu0 0.0
  %2923 = vmatpush1.msra.mxu0 0.0
  %2924 = vmatprep.subr.mxu0 0.0
  %2925 = vmatpush1.msra.mxu0 0.0
  %2926 = vmatprep.subr.mxu0 0.0
  %2927 = vmatpush1.msra.mxu0 0.0
  %2928 = vmatprep.subr.mxu0 0.0
  %2929 = vmatpush1.msra.mxu0 0.0
  %2930 = vmatprep.subr.mxu0 0.0
  %2931 = vmatpush1.msra.mxu0 0.0
  %2932 = vmatprep.subr.mxu0 0.0
  %2933 = vmatpush1.msra.mxu0 0.0
  %2934 = vmatprep.subr.mxu0 0.0
  %2935 = vmatpush1.msra.mxu0 0.0
  %2936 = vmatprep.subr.mxu0 0.0
  %2937 = vmatpush1.msra.mxu0 0.0
  %2938 = vmatprep.subr.mxu0 0.0
  %2939 = vmatpush1.msra.mxu0 0.0
  %2940 = vmatprep.mubr.f32.mxu0 0.0
  %v2941 = vand.u32 %v1891, 4294901760
  %v2942 = vsub.f32 %v1891, %v2941
  %v2943 = vand.u32 %v2942, 4294901760
  %v2944 = vsub.f32 %v2942, %v2943
  %v2945 = vand.u32 %v2944, 4294901760
  %2946 = vmatmul.mubr.f32.gmra.mrb[0].mxu0 %v2945
  %v2947 = vpop.f32.mrb[0].mxu0
  %v2948 = vadd.f32 0.0, %v2947
  %v2949 = vpop.f32.mrb[0].mxu0
  %2950 = vdwg.mxu0
  %2951 = vmatprep.subr.mxu0 0.0
  %v2952 = vand.u32 %v1882, 4294901760
  %v2953 = vsub.f32 %v1882, %v2952
  %v2954 = vand.u32 %v2953, 4294901760
  %v2955 = vsub.f32 %v2953, %v2954
  %v2956 = vand.u32 %v2955, 4294901760
  %2957 = vmatpush1.msra.mxu0 %v2956
  %2958 = vmatprep.subr.mxu0 0.0
  %v2959 = vand.u32 %v1884, 4294901760
  %v2960 = vsub.f32 %v1884, %v2959
  %v2961 = vand.u32 %v2960, 4294901760
  %v2962 = vsub.f32 %v2960, %v2961
  %v2963 = vand.u32 %v2962, 4294901760
  %2964 = vmatpush1.msra.mxu0 %v2963
  %2965 = vmatprep.subr.mxu0 0.0
  %v2966 = vand.u32 %v1886, 4294901760
  %v2967 = vsub.f32 %v1886, %v2966
  %v2968 = vand.u32 %v2967, 4294901760
  %v2969 = vsub.f32 %v2967, %v2968
  %v2970 = vand.u32 %v2969, 4294901760
  %2971 = vmatpush1.msra.mxu0 %v2970
  %2972 = vmatprep.subr.mxu0 0.0
  %v2973 = vand.u32 %v1888, 4294901760
  %v2974 = vsub.f32 %v1888, %v2973
  %v2975 = vand.u32 %v2974, 4294901760
  %v2976 = vsub.f32 %v2974, %v2975
  %v2977 = vand.u32 %v2976, 4294901760
  %2978 = vmatpush1.msra.mxu0 %v2977
  %2979 = vmatprep.subr.mxu0 0.0
  %2980 = vmatpush1.msra.mxu0 0.0
  %2981 = vmatprep.subr.mxu0 0.0
  %2982 = vmatpush1.msra.mxu0 0.0
  %2983 = vmatprep.subr.mxu0 0.0
  %2984 = vmatpush1.msra.mxu0 0.0
  %2985 = vmatprep.subr.mxu0 0.0
  %2986 = vmatpush1.msra.mxu0 0.0
  %2987 = vmatprep.subr.mxu0 0.0
  %2988 = vmatpush1.msra.mxu0 0.0
  %2989 = vmatprep.subr.mxu0 0.0
  %2990 = vmatpush1.msra.mxu0 0.0
  %2991 = vmatprep.subr.mxu0 0.0
  %2992 = vmatpush1.msra.mxu0 0.0
  %2993 = vmatprep.subr.mxu0 0.0
  %2994 = vmatpush1.msra.mxu0 0.0
  %2995 = vmatprep.subr.mxu0 0.0
  %2996 = vmatpush1.msra.mxu0 0.0
  %2997 = vmatprep.subr.mxu0 0.0
  %2998 = vmatpush1.msra.mxu0 0.0
  %2999 = vmatprep.subr.mxu0 0.0
  %3000 = vmatpush1.msra.mxu0 0.0
  %3001 = vmatprep.subr.mxu0 0.0
  %3002 = vmatpush1.msra.mxu0 0.0
  %3003 = vmatprep.subr.mxu0 0.0
  %3004 = vmatpush1.msra.mxu0 0.0
  %3005 = vmatprep.subr.mxu0 0.0
  %3006 = vmatpush1.msra.mxu0 0.0
  %3007 = vmatprep.subr.mxu0 0.0
  %3008 = vmatpush1.msra.mxu0 0.0
  %3009 = vmatprep.subr.mxu0 0.0
  %3010 = vmatpush1.msra.mxu0 0.0
  %3011 = vmatprep.subr.mxu0 0.0
  %3012 = vmatpush1.msra.mxu0 0.0
  %3013 = vmatprep.subr.mxu0 0.0
  %3014 = vmatpush1.msra.mxu0 0.0
  %3015 = vmatprep.subr.mxu0 0.0
  %3016 = vmatpush1.msra.mxu0 0.0
  %3017 = vmatprep.subr.mxu0 0.0
  %3018 = vmatpush1.msra.mxu0 0.0
  %3019 = vmatprep.subr.mxu0 0.0
  %3020 = vmatpush1.msra.mxu0 0.0
  %3021 = vmatprep.subr.mxu0 0.0
  %3022 = vmatpush1.msra.mxu0 0.0
  %3023 = vmatprep.subr.mxu0 0.0
  %3024 = vmatpush1.msra.mxu0 0.0
  %3025 = vmatprep.subr.mxu0 0.0
  %3026 = vmatpush1.msra.mxu0 0.0
  %3027 = vmatprep.subr.mxu0 0.0
  %3028 = vmatpush1.msra.mxu0 0.0
  %3029 = vmatprep.subr.mxu0 0.0
  %3030 = vmatpush1.msra.mxu0 0.0
  %3031 = vmatprep.subr.mxu0 0.0
  %3032 = vmatpush1.msra.mxu0 0.0
  %3033 = vmatprep.subr.mxu0 0.0
  %3034 = vmatpush1.msra.mxu0 0.0
  %3035 = vmatprep.mubr.f32.mxu0 0.0
  %v3036 = vand.u32 %v1891, 4294901760
  %3037 = vmatmul.mubr.f32.gmra.mrb[0].mxu0 %v3036
  %v3038 = vpop.f32.mrb[0].mxu0
  %v3039 = vadd.f32 %v2948, %v3038
  %v3040 = vpop.f32.mrb[0].mxu0
  %3041 = vdwg.mxu0
  %3042 = vmatprep.subr.mxu0 0.0
  %v3043 = vand.u32 %v1882, 4294901760
  %v3044 = vsub.f32 %v1882, %v3043
  %3045 = vmatpush1.msra.mxu0 %v3044
  %3046 = vmatprep.subr.mxu0 0.0
  %v3047 = vand.u32 %v1884, 4294901760
  %v3048 = vsub.f32 %v1884, %v3047
  %3049 = vmatpush1.msra.mxu0 %v3048
  %3050 = vmatprep.subr.mxu0 0.0
  %v3051 = vand.u32 %v1886, 4294901760
  %v3052 = vsub.f32 %v1886, %v3051
  %3053 = vmatpush1.msra.mxu0 %v3052
  %3054 = vmatprep.subr.mxu0 0.0
  %v3055 = vand.u32 %v1888, 4294901760
  %v3056 = vsub.f32 %v1888, %v3055
  %3057 = vmatpush1.msra.mxu0 %v3056
  %3058 = vmatprep.subr.mxu0 0.0
  %3059 = vmatpush1.msra.mxu0 0.0
  %3060 = vmatprep.subr.mxu0 0.0
  %3061 = vmatpush1.msra.mxu0 0.0
  %3062 = vmatprep.subr.mxu0 0.0
  %3063 = vmatpush1.msra.mxu0 0.0
  %3064 = vmatprep.subr.mxu0 0.0
  %3065 = vmatpush1.msra.mxu0 0.0
  %3066 = vmatprep.subr.mxu0 0.0
  %3067 = vmatpush1.msra.mxu0 0.0
  %3068 = vmatprep.subr.mxu0 0.0
  %3069 = vmatpush1.msra.mxu0 0.0
  %3070 = vmatprep.subr.mxu0 0.0
  %3071 = vmatpush1.msra.mxu0 0.0
  %3072 = vmatprep.subr.mxu0 0.0
  %3073 = vmatpush1.msra.mxu0 0.0
  %3074 = vmatprep.subr.mxu0 0.0
  %3075 = vmatpush1.msra.mxu0 0.0
  %3076 = vmatprep.subr.mxu0 0.0
  %3077 = vmatpush1.msra.mxu0 0.0
  %3078 = vmatprep.subr.mxu0 0.0
  %3079 = vmatpush1.msra.mxu0 0.0
  %3080 = vmatprep.subr.mxu0 0.0
  %3081 = vmatpush1.msra.mxu0 0.0
  %3082 = vmatprep.subr.mxu0 0.0
  %3083 = vmatpush1.msra.mxu0 0.0
  %3084 = vmatprep.subr.mxu0 0.0
  %3085 = vmatpush1.msra.mxu0 0.0
  %3086 = vmatprep.subr.mxu0 0.0
  %3087 = vmatpush1.msra.mxu0 0.0
  %3088 = vmatprep.subr.mxu0 0.0
  %3089 = vmatpush1.msra.mxu0 0.0
  %3090 = vmatprep.subr.mxu0 0.0
  %3091 = vmatpush1.msra.mxu0 0.0
  %3092 = vmatprep.subr.mxu0 0.0
  %3093 = vmatpush1.msra.mxu0 0.0
  %3094 = vmatprep.subr.mxu0 0.0
  %3095 = vmatpush1.msra.mxu0 0.0
  %3096 = vmatprep.subr.mxu0 0.0
  %3097 = vmatpush1.msra.mxu0 0.0
  %3098 = vmatprep.subr.mxu0 0.0
  %3099 = vmatpush1.msra.mxu0 0.0
  %3100 = vmatprep.subr.mxu0 0.0
  %3101 = vmatpush1.msra.mxu0 0.0
  %3102 = vmatprep.subr.mxu0 0.0
  %3103 = vmatpush1.msra.mxu0 0.0
  %3104 = vmatprep.subr.mxu0 0.0
  %3105 = vmatpush1.msra.mxu0 0.0
  %3106 = vmatprep.subr.mxu0 0.0
  %3107 = vmatpush1.msra.mxu0 0.0
  %3108 = vmatprep.subr.mxu0 0.0
  %3109 = vmatpush1.msra.mxu0 0.0
  %3110 = vmatprep.subr.mxu0 0.0
  %3111 = vmatpush1.msra.mxu0 0.0
  %3112 = vmatprep.subr.mxu0 0.0
  %3113 = vmatpush1.msra.mxu0 0.0
  %3114 = vmatprep.mubr.f32.mxu0 0.0
  %v3115 = vand.u32 %v1891, 4294901760
  %v3116 = vsub.f32 %v1891, %v3115
  %3117 = vmatmul.mubr.f32.gmra.mrb[0].mxu0 %v3116
  %v3118 = vpop.f32.mrb[0].mxu0
  %v3119 = vadd.f32 %v3039, %v3118
  %v3120 = vpop.f32.mrb[0].mxu0
  %3121 = vdwg.mxu0
  %3122 = vmatprep.subr.mxu0 0.0
  %v3123 = vand.u32 %v1882, 4294901760
  %3124 = vmatpush1.msra.mxu0 %v3123
  %3125 = vmatprep.subr.mxu0 0.0
  %v3126 = vand.u32 %v1884, 4294901760
  %3127 = vmatpush1.msra.mxu0 %v3126
  %3128 = vmatprep.subr.mxu0 0.0
  %v3129 = vand.u32 %v1886, 4294901760
  %3130 = vmatpush1.msra.mxu0 %v3129
  %3131 = vmatprep.subr.mxu0 0.0
  %v3132 = vand.u32 %v1888, 4294901760
  %3133 = vmatpush1.msra.mxu0 %v3132
  %3134 = vmatprep.subr.mxu0 0.0
  %3135 = vmatpush1.msra.mxu0 0.0
  %3136 = vmatprep.subr.mxu0 0.0
  %3137 = vmatpush1.msra.mxu0 0.0
  %3138 = vmatprep.subr.mxu0 0.0
  %3139 = vmatpush1.msra.mxu0 0.0
  %3140 = vmatprep.subr.mxu0 0.0
  %3141 = vmatpush1.msra.mxu0 0.0
  %3142 = vmatprep.subr.mxu0 0.0
  %3143 = vmatpush1.msra.mxu0 0.0
  %3144 = vmatprep.subr.mxu0 0.0
  %3145 = vmatpush1.msra.mxu0 0.0
  %3146 = vmatprep.subr.mxu0 0.0
  %3147 = vmatpush1.msra.mxu0 0.0
  %3148 = vmatprep.subr.mxu0 0.0
  %3149 = vmatpush1.msra.mxu0 0.0
  %3150 = vmatprep.subr.mxu0 0.0
  %3151 = vmatpush1.msra.mxu0 0.0
  %3152 = vmatprep.subr.mxu0 0.0
  %3153 = vmatpush1.msra.mxu0 0.0
  %3154 = vmatprep.subr.mxu0 0.0
  %3155 = vmatpush1.msra.mxu0 0.0
  %3156 = vmatprep.subr.mxu0 0.0
  %3157 = vmatpush1.msra.mxu0 0.0
  %3158 = vmatprep.subr.mxu0 0.0
  %3159 = vmatpush1.msra.mxu0 0.0
  %3160 = vmatprep.subr.mxu0 0.0
  %3161 = vmatpush1.msra.mxu0 0.0
  %3162 = vmatprep.subr.mxu0 0.0
  %3163 = vmatpush1.msra.mxu0 0.0
  %3164 = vmatprep.subr.mxu0 0.0
  %3165 = vmatpush1.msra.mxu0 0.0
  %3166 = vmatprep.subr.mxu0 0.0
  %3167 = vmatpush1.msra.mxu0 0.0
  %3168 = vmatprep.subr.mxu0 0.0
  %3169 = vmatpush1.msra.mxu0 0.0
  %3170 = vmatprep.subr.mxu0 0.0
  %3171 = vmatpush1.msra.mxu0 0.0
  %3172 = vmatprep.subr.mxu0 0.0
  %3173 = vmatpush1.msra.mxu0 0.0
  %3174 = vmatprep.subr.mxu0 0.0
  %3175 = vmatpush1.msra.mxu0 0.0
  %3176 = vmatprep.subr.mxu0 0.0
  %3177 = vmatpush1.msra.mxu0 0.0
  %3178 = vmatprep.subr.mxu0 0.0
  %3179 = vmatpush1.msra.mxu0 0.0
  %3180 = vmatprep.subr.mxu0 0.0
  %3181 = vmatpush1.msra.mxu0 0.0
  %3182 = vmatprep.subr.mxu0 0.0
  %3183 = vmatpush1.msra.mxu0 0.0
  %3184 = vmatprep.subr.mxu0 0.0
  %3185 = vmatpush1.msra.mxu0 0.0
  %3186 = vmatprep.subr.mxu0 0.0
  %3187 = vmatpush1.msra.mxu0 0.0
  %3188 = vmatprep.subr.mxu0 0.0
  %3189 = vmatpush1.msra.mxu0 0.0
  %3190 = vmatprep.mubr.f32.mxu0 0.0
  %v3191 = vand.u32 %v1891, 4294901760
  %v3192 = vsub.f32 %v1891, %v3191
  %v3193 = vand.u32 %v3192, 4294901760
  %3194 = vmatmul.mubr.f32.gmra.mrb[0].mxu0 %v3193
  %v3195 = vpop.f32.mrb[0].mxu0
  %v3196 = vadd.f32 %v3119, %v3195
  %v3197 = vpop.f32.mrb[0].mxu0
  %3198 = vdwg.mxu0
  %3199 = vmatprep.subr.mxu0 0.0
  %v3200 = vand.u32 %v1882, 4294901760
  %v3201 = vsub.f32 %v1882, %v3200
  %v3202 = vand.u32 %v3201, 4294901760
  %3203 = vmatpush1.msra.mxu0 %v3202
  %3204 = vmatprep.subr.mxu0 0.0
  %v3205 = vand.u32 %v1884, 4294901760
  %v3206 = vsub.f32 %v1884, %v3205
  %v3207 = vand.u32 %v3206, 4294901760
  %3208 = vmatpush1.msra.mxu0 %v3207
  %3209 = vmatprep.subr.mxu0 0.0
  %v3210 = vand.u32 %v1886, 4294901760
  %v3211 = vsub.f32 %v1886, %v3210
  %v3212 = vand.u32 %v3211, 4294901760
  %3213 = vmatpush1.msra.mxu0 %v3212
  %3214 = vmatprep.subr.mxu0 0.0
  %v3215 = vand.u32 %v1888, 4294901760
  %v3216 = vsub.f32 %v1888, %v3215
  %v3217 = vand.u32 %v3216, 4294901760
  %3218 = vmatpush1.msra.mxu0 %v3217
  %3219 = vmatprep.subr.mxu0 0.0
  %3220 = vmatpush1.msra.mxu0 0.0
  %3221 = vmatprep.subr.mxu0 0.0
  %3222 = vmatpush1.msra.mxu0 0.0
  %3223 = vmatprep.subr.mxu0 0.0
  %3224 = vmatpush1.msra.mxu0 0.0
  %3225 = vmatprep.subr.mxu0 0.0
  %3226 = vmatpush1.msra.mxu0 0.0
  %3227 = vmatprep.subr.mxu0 0.0
  %3228 = vmatpush1.msra.mxu0 0.0
  %3229 = vmatprep.subr.mxu0 0.0
  %3230 = vmatpush1.msra.mxu0 0.0
  %3231 = vmatprep.subr.mxu0 0.0
  %3232 = vmatpush1.msra.mxu0 0.0
  %3233 = vmatprep.subr.mxu0 0.0
  %3234 = vmatpush1.msra.mxu0 0.0
  %3235 = vmatprep.subr.mxu0 0.0
  %3236 = vmatpush1.msra.mxu0 0.0
  %3237 = vmatprep.subr.mxu0 0.0
  %3238 = vmatpush1.msra.mxu0 0.0
  %3239 = vmatprep.subr.mxu0 0.0
  %3240 = vmatpush1.msra.mxu0 0.0
  %3241 = vmatprep.subr.mxu0 0.0
  %3242 = vmatpush1.msra.mxu0 0.0
  %3243 = vmatprep.subr.mxu0 0.0
  %3244 = vmatpush1.msra.mxu0 0.0
  %3245 = vmatprep.subr.mxu0 0.0
  %3246 = vmatpush1.msra.mxu0 0.0
  %3247 = vmatprep.subr.mxu0 0.0
  %3248 = vmatpush1.msra.mxu0 0.0
  %3249 = vmatprep.subr.mxu0 0.0
  %3250 = vmatpush1.msra.mxu0 0.0
  %3251 = vmatprep.subr.mxu0 0.0
  %3252 = vmatpush1.msra.mxu0 0.0
  %3253 = vmatprep.subr.mxu0 0.0
  %3254 = vmatpush1.msra.mxu0 0.0
  %3255 = vmatprep.subr.mxu0 0.0
  %3256 = vmatpush1.msra.mxu0 0.0
  %3257 = vmatprep.subr.mxu0 0.0
  %3258 = vmatpush1.msra.mxu0 0.0
  %3259 = vmatprep.subr.mxu0 0.0
  %3260 = vmatpush1.msra.mxu0 0.0
  %3261 = vmatprep.subr.mxu0 0.0
  %3262 = vmatpush1.msra.mxu0 0.0
  %3263 = vmatprep.subr.mxu0 0.0
  %3264 = vmatpush1.msra.mxu0 0.0
  %3265 = vmatprep.subr.mxu0 0.0
  %3266 = vmatpush1.msra.mxu0 0.0
  %3267 = vmatprep.subr.mxu0 0.0
  %3268 = vmatpush1.msra.mxu0 0.0
  %3269 = vmatprep.subr.mxu0 0.0
  %3270 = vmatpush1.msra.mxu0 0.0
  %3271 = vmatprep.subr.mxu0 0.0
  %3272 = vmatpush1.msra.mxu0 0.0
  %3273 = vmatprep.subr.mxu0 0.0
  %3274 = vmatpush1.msra.mxu0 0.0
  %3275 = vmatprep.mubr.f32.mxu0 0.0
  %v3276 = vand.u32 %v1891, 4294901760
  %3277 = vmatmul.mubr.f32.gmra.mrb[0].mxu0 %v3276
  %v3278 = vpop.f32.mrb[0].mxu0
  %v3279 = vadd.f32 %v3196, %v3278
  %v3280 = vpop.f32.mrb[0].mxu0
  %3281 = vdwg.mxu0
  %3282 = vmatprep.subr.mxu0 0.0
  %v3283 = vand.u32 %v1882, 4294901760
  %3284 = vmatpush1.msra.mxu0 %v3283
  %3285 = vmatprep.subr.mxu0 0.0
  %v3286 = vand.u32 %v1884, 4294901760
  %3287 = vmatpush1.msra.mxu0 %v3286
  %3288 = vmatprep.subr.mxu0 0.0
  %v3289 = vand.u32 %v1886, 4294901760
  %3290 = vmatpush1.msra.mxu0 %v3289
  %3291 = vmatprep.subr.mxu0 0.0
  %v3292 = vand.u32 %v1888, 4294901760
  %3293 = vmatpush1.msra.mxu0 %v3292
  %3294 = vmatprep.subr.mxu0 0.0
  %3295 = vmatpush1.msra.mxu0 0.0
  %3296 = vmatprep.subr.mxu0 0.0
  %3297 = vmatpush1.msra.mxu0 0.0
  %3298 = vmatprep.subr.mxu0 0.0
  %3299 = vmatpush1.msra.mxu0 0.0
  %3300 = vmatprep.subr.mxu0 0.0
  %3301 = vmatpush1.msra.mxu0 0.0
  %3302 = vmatprep.subr.mxu0 0.0
  %3303 = vmatpush1.msra.mxu0 0.0
  %3304 = vmatprep.subr.mxu0 0.0
  %3305 = vmatpush1.msra.mxu0 0.0
  %3306 = vmatprep.subr.mxu0 0.0
  %3307 = vmatpush1.msra.mxu0 0.0
  %3308 = vmatprep.subr.mxu0 0.0
  %3309 = vmatpush1.msra.mxu0 0.0
  %3310 = vmatprep.subr.mxu0 0.0
  %3311 = vmatpush1.msra.mxu0 0.0
  %3312 = vmatprep.subr.mxu0 0.0
  %3313 = vmatpush1.msra.mxu0 0.0
  %3314 = vmatprep.subr.mxu0 0.0
  %3315 = vmatpush1.msra.mxu0 0.0
  %3316 = vmatprep.subr.mxu0 0.0
  %3317 = vmatpush1.msra.mxu0 0.0
  %3318 = vmatprep.subr.mxu0 0.0
  %3319 = vmatpush1.msra.mxu0 0.0
  %3320 = vmatprep.subr.mxu0 0.0
  %3321 = vmatpush1.msra.mxu0 0.0
  %3322 = vmatprep.subr.mxu0 0.0
  %3323 = vmatpush1.msra.mxu0 0.0
  %3324 = vmatprep.subr.mxu0 0.0
  %3325 = vmatpush1.msra.mxu0 0.0
  %3326 = vmatprep.subr.mxu0 0.0
  %3327 = vmatpush1.msra.mxu0 0.0
  %3328 = vmatprep.subr.mxu0 0.0
  %3329 = vmatpush1.msra.mxu0 0.0
  %3330 = vmatprep.subr.mxu0 0.0
  %3331 = vmatpush1.msra.mxu0 0.0
  %3332 = vmatprep.subr.mxu0 0.0
  %3333 = vmatpush1.msra.mxu0 0.0
  %3334 = vmatprep.subr.mxu0 0.0
  %3335 = vmatpush1.msra.mxu0 0.0
  %3336 = vmatprep.subr.mxu0 0.0
  %3337 = vmatpush1.msra.mxu0 0.0
  %3338 = vmatprep.subr.mxu0 0.0
  %3339 = vmatpush1.msra.mxu0 0.0
  %3340 = vmatprep.subr.mxu0 0.0
  %3341 = vmatpush1.msra.mxu0 0.0
  %3342 = vmatprep.subr.mxu0 0.0
  %3343 = vmatpush1.msra.mxu0 0.0
  %3344 = vmatprep.subr.mxu0 0.0
  %3345 = vmatpush1.msra.mxu0 0.0
  %3346 = vmatprep.subr.mxu0 0.0
  %3347 = vmatpush1.msra.mxu0 0.0
  %3348 = vmatprep.subr.mxu0 0.0
  %3349 = vmatpush1.msra.mxu0 0.0
  %3350 = vmatprep.mubr.f32.mxu0 0.0
  %v3351 = vand.u32 %v1891, 4294901760
  %3352 = vmatmul.mubr.f32.gmra.mrb[0].mxu0 %v3351
  %v3353 = vpop.f32.mrb[0].mxu0
  %v3354 = vadd.f32 %v3279, %v3353
  %v3355 = vpop.f32.mrb[0].mxu0
  %3356 = vdwg.mxu0
  %v3357 = vmul.f32 %v3354, 1.442695
  %v3358 = vpow.pop %v3357
  %v3359 = vsub.f32 %v2375, %v3358
  %v3360 = vmul.f32 %v2871, %v3359
  %v3361 = vadd.f32 %v3358, %v3360
  %vm3362 = vcmask 31744
  %3363 = vst.msk [vmem:[%s5] sm:$0xff] %vm3362, %v3361
  // Predicated region
  $region22: #{tpu_custom_call.1} parent=0 // pred_check
    _
  $region23: #{tpu_custom_call.1} parent=0 // pred_check_branch
    %3365 = sbr.rel (0) target = $region25
  $region24: #{tpu_custom_call.1} parent=0 // pred_region
    _
  $region25: #{tpu_custom_call.1} parent=0 // pred_fallthru
    _
  // Predicated region
  $region26: #{tpu_custom_call.1} parent=0 // pred_check
    _
  $region27: #{tpu_custom_call.1} parent=0 // pred_check_branch
    %3367 = sbr.rel (0) target = $region29
  $region28: #{tpu_custom_call.1} parent=0 // pred_region
    _
  $region29: #{tpu_custom_call.1} parent=0 // pred_fallthru
    _

</llo_original>
